<compile_context>
chip_gen: v7x
topology: tpu7x:2x2x1
jax: 0.10.0
libtpu: 0.0.40
codegen_flags: <defaults>
</compile_context>

<pallas_src>
import functools

import jax
import jax.numpy as jnp
from jax.experimental import pallas as pl
from jax.experimental.pallas import tpu as pltpu


# ----------------------------------------------------------------------------
# Small helpers
# ----------------------------------------------------------------------------
def _round_up(x, m):
    return ((x + m - 1) // m) * m


@functools.lru_cache(maxsize=None)
def _vmem_limit_bytes():
    """Generation-aware VMEM budget: 75% of physical per-core VMEM."""
    cap = 64 * 1024 * 1024
    try:
        cap = int(getattr(pltpu.get_tpu_info(), "vmem_capacity_bytes", cap))
    except Exception:
        pass
    return max(32 * 1024 * 1024, (cap * 3) // 4)


def _pick_cout_tile(c_out_pad):
    """Largest C_out tile <= 256 (multiple of 8) that divides c_out_pad."""
    if c_out_pad <= 256:
        return c_out_pad
    for t in range(256, 7, -8):
        if c_out_pad % t == 0:
            return t
    return c_out_pad


def _conv_geometry(h, w, k, s, p):
    """Geometry of the phase-decomposed, flattened conv layout."""
    ho = (h + 2 * p - k) // s + 1
    wo = (w + 2 * p - k) // s + 1
    hs = -(-(h + 2 * p) // s)              # phase-plane height
    ws = -(-(w + 2 * p) // s)              # phase-plane width == output row pitch
    pk = _round_up(ho * ws, 128)           # lane-dense output width
    off_max = ((k - 1) // s) * ws + (k - 1) // s
    l_pad = _round_up(max(hs * ws, pk + off_max), 128)
    return dict(ho=ho, wo=wo, hs=hs, ws=ws, pk=pk, l_pad=l_pad)


# ----------------------------------------------------------------------------
# Pallas kernel: in-kernel im2col + matmul + (bias) + (InstanceNorm) + LeakyReLU
# ----------------------------------------------------------------------------
def _conv_in_lrelu_kernel(x_ref, w_ref, *rest, taps, c_in_pad, apply_norm,
                          apply_act, has_bias, count, eps=1e-5, slope=0.2):
    # x_ref : (s*s, C_in_pad, L_pad)  phase-decomposed flat activation (bf16)
    # w_ref : (C_tile, k*k*C_in_pad)  flattened conv weight (bf16)
    # rest  : [b_ref (C_tile,1) f32]  [m_ref (1,Pk) f32]  o_ref (C_tile,Pk)
    #         patch_ref (k*k*C_in_pad, Pk) bf16 VMEM scratch
    rest = list(rest)
    b_ref = rest.pop(0) if has_bias else None
    m_ref = rest.pop(0) if apply_norm else None
    o_ref, patch_ref = rest
    pk = o_ref.shape[-1]

    # In-kernel im2col: gather the k*k taps straight from the VMEM-resident
    # activation block into the patch buffer.  Nothing K-amplified hits HBM.
    for t, (ph, off) in enumerate(taps):
        patch_ref[t * c_in_pad:(t + 1) * c_in_pad, :] = \
            x_ref[ph, :, off:off + pk]

    # One MXU matmul over the full K = k*k*C_in_pad, f32 accumulation.
    acc = jnp.dot(w_ref[...], patch_ref[...],
                  preferred_element_type=jnp.float32)

    if has_bias:
        # Only layers WITHOUT InstanceNorm carry a bias (the norm's mean
        # subtraction cancels a per-channel bias exactly).
        acc = acc + b_ref[...]

    if apply_norm:
        # InstanceNorm2d (affine=False, biased var, eps=1e-5) over the valid
        # spatial positions; the mask zeroes the row-pitch filler columns.
        # Two-pass (mean, then centred variance) for numerical robustness.
        m = m_ref[...]
        inv_cnt = 1.0 / count
        mean = jnp.sum(acc * m, axis=-1, keepdims=True) * inv_cnt
        centred = acc - mean
        var = jnp.sum(centred * centred * m, axis=-1, keepdims=True) * inv_cnt
        acc = centred * jax.lax.rsqrt(var + eps)

    if apply_act:
        acc = jnp.where(acc > 0, acc, slope * acc)        # LeakyReLU(0.2)

    o_ref[...] = acc.astype(o_ref.dtype)


def _conv_layer_pallas(xflat, w_flat, bias, mask, geo, *, k, s, c_in_pad,
                       apply_norm, apply_act, out_dtype):
    """xflat: (N, s*s, C_in_pad, L_pad) bf16; w_flat: (C_out_pad, k*k*C_in_pad)
       bf16 -> (N, C_out_pad, Pk) in out_dtype."""
    n, s2, _, l_pad = xflat.shape
    c_out_pad, k_pad = w_flat.shape
    pk, ws = geo["pk"], geo["ws"]
    assert k_pad == k * k * c_in_pad

    # Extra "parallel" C_out axis: gives both v7x TensorCores work at small N
    # and bounds the per-step weight / output block size.
    tc = _pick_cout_tile(c_out_pad)
    n_ct = c_out_pad // tc

    # (phase index, flat offset) of each of the k*k taps.
    taps = tuple(((ki % s) * s + (kj % s), (ki // s) * ws + (kj // s))
                 for ki in range(k) for kj in range(k))

    has_bias = bias is not None
    kernel = functools.partial(
        _conv_in_lrelu_kernel, taps=taps, c_in_pad=c_in_pad,
        apply_norm=apply_norm, apply_act=apply_act, has_bias=has_bias,
        count=float(geo["ho"] * geo["wo"]))

    in_specs = [
        pl.BlockSpec((None, s2, c_in_pad, l_pad), lambda i, j: (i, 0, 0, 0)),
        pl.BlockSpec((tc, k_pad), lambda i, j: (j, 0)),
    ]
    inputs = [xflat, w_flat]
    if has_bias:
        in_specs.append(pl.BlockSpec((tc, 1), lambda i, j: (j, 0)))
        inputs.append(bias)
    if apply_norm:
        in_specs.append(pl.BlockSpec((1, pk), lambda i, j: (0, 0)))
        inputs.append(mask)
    out_specs = pl.BlockSpec((None, tc, pk), lambda i, j: (i, j, 0))

    bytes_accessed = sum(int(a.size) * a.dtype.itemsize for a in inputs) \
        + n * c_out_pad * pk * jnp.dtype(out_dtype).itemsize
    cost = pl.CostEstimate(
        flops=2 * n * c_out_pad * k_pad * pk,
        transcendentals=n * c_out_pad if apply_norm else 0,
        bytes_accessed=int(bytes_accessed))

    return pl.pallas_call(
        kernel,
        out_shape=jax.ShapeDtypeStruct((n, c_out_pad, pk), out_dtype),
        grid=(n, n_ct),
        in_specs=in_specs,
        out_specs=out_specs,
        scratch_shapes=[pltpu.VMEM((k_pad, pk), jnp.bfloat16)],
        compiler_params=pltpu.CompilerParams(
            dimension_semantics=("parallel", "parallel"),
            vmem_limit_bytes=_vmem_limit_bytes()),
        cost_estimate=cost,
    )(*inputs)


# ----------------------------------------------------------------------------
# JAX-side layout prep (1x activation traffic: pad + space-to-depth + flatten)
# ----------------------------------------------------------------------------
def _prep_phase_flat(x, k, s, p, c_in_pad, geo):
    """NCHW (bf16) -> (N, s*s, C_in_pad, L_pad): stride-phase planes with
       flattened spatial so every tap is a contiguous flat-offset window."""
    n, c, h, w = x.shape
    hs, ws, l_pad = geo["hs"], geo["ws"], geo["l_pad"]
    hp2, wp2 = hs * s, ws * s
    xp = jnp.pad(x, ((0, 0), (0, c_in_pad - c),
                     (p, hp2 - h - p), (p, wp2 - w - p)))
    xp = xp.reshape(n, c_in_pad, hs, s, ws, s)
    xp = jnp.transpose(xp, (0, 3, 5, 1, 2, 4))          # (n, sy, sx, C, Hs, Ws)
    xflat = xp.reshape(n, s * s, c_in_pad, hs * ws)
    return jnp.pad(xflat, ((0, 0), (0, 0), (0, 0), (0, l_pad - hs * ws)))


def _valid_mask(geo):
    """(1, Pk) f32 mask of valid output positions (row pitch Ws, width Wo)."""
    idx = jnp.arange(geo["pk"], dtype=jnp.int32)
    valid = (idx < geo["ho"] * geo["ws"]) & ((idx % geo["ws"]) < geo["wo"])
    return valid.astype(jnp.float32)[None, :]


def _unflatten(y, c_out, geo):
    """(N, C_out_pad, Pk) -> (N, C_out, Ho, Wo) NCHW."""
    n = y.shape[0]
    ho, wo, ws = geo["ho"], geo["wo"], geo["ws"]
    y = y[:, :c_out, :ho * ws].reshape(n, c_out, ho, ws)
    return y[:, :, :, :wo]


# ----------------------------------------------------------------------------
# Discriminator: parameter init, one-time packing, forward
# ----------------------------------------------------------------------------
def init_params(key, filt=8):
    """Deterministic params mirroring CycleGAN_Discriminator(filter=filt)."""
    # (c_in, c_out, kernel, stride, pad, apply_norm, apply_act)
    cfg = [
        (3,        filt,     4, 2, 1, False, True),
        (filt,     filt * 2, 4, 2, 1, True,  True),
        (filt * 2, filt * 4, 4, 2, 1, True,  True),
        (filt * 4, filt * 8, 4, 1, 1, True,  True),
        (filt * 8, 1,        4, 1, 1, False, False),   # self.last
    ]
    params = []
    for (c_in, c_out, k, s, p, norm, act) in cfg:
        key, kw, kb = jax.random.split(key, 3)
        fan_in = c_in * k * k
        bound = 1.0 / jnp.sqrt(fan_in)
        w = jax.random.uniform(kw, (c_out, c_in, k, k), jnp.float32, -bound, bound)
        b = jax.random.uniform(kb, (c_out,), jnp.float32, -bound, bound)
        params.append(dict(w=w, b=b, k=k, stride=s, pad=p,
                           apply_norm=norm, apply_act=act))
    return params


def prepare_params(params):
    """One-time packing outside the traced forward.
       Conv layers: OIHW -> (C_out_pad, k*k*C_in_pad) bf16 (K is tap-major so
       it matches the in-kernel patch buffer).  Bias kept only where it is not
       cancelled by InstanceNorm.  The final 1-channel conv is left to XLA."""
    prepared = []
    n_layers = len(params)
    for idx, layer in enumerate(params):
        w, b = layer["w"], layer["b"]
        k, s, p = layer["k"], layer["stride"], layer["pad"]
        if idx == n_layers - 1:
            prepared.append(dict(xla_conv=True, w=w.astype(jnp.bfloat16),
                                 b=b.astype(jnp.float32), stride=s, pad=p))
            continue
        c_out, c_in = w.shape[0], w.shape[1]
        c_in_pad = _round_up(c_in, 16)      # bf16 sublane-tile aligned
        c_out_pad = _round_up(c_out, 8)
        w4 = jnp.pad(w, ((0, c_out_pad - c_out), (0, c_in_pad - c_in),
                         (0, 0), (0, 0)))
        w_flat = jnp.transpose(w4, (0, 2, 3, 1)).reshape(
            c_out_pad, k * k * c_in_pad).astype(jnp.bfloat16)
        b_col = jnp.pad(b, (0, c_out_pad - c_out)).reshape(
            c_out_pad, 1).astype(jnp.float32)
        prepared.append(dict(xla_conv=False, w_flat=w_flat,
                             b_col=None if layer["apply_norm"] else b_col,
                             c_out=c_out, c_in_pad=c_in_pad, k=k, stride=s,
                             pad=p, apply_norm=layer["apply_norm"],
                             apply_act=layer["apply_act"]))
    return prepared


def discriminator_forward(x_nchw, prepared):
    """x_nchw: (N, 3, H, W) -> (N, 1, H', W')  (PyTorch semantics, NCHW I/O)."""
    x = x_nchw.astype(jnp.bfloat16)                      # bf16 activations
    for layer in prepared:
        if layer["xla_conv"]:
            # Final 1-output-channel 4x4 conv: too small for a pallas_call to
            # pay off (masked 1-row stores, tiny P) -> plain XLA conv.
            s, p = layer["stride"], layer["pad"]
            y = jax.lax.conv_general_dilated(
                x, layer["w"], (s, s), [(p, p), (p, p)],
                dimension_numbers=("NCHW", "OIHW", "NCHW"),
                preferred_element_type=jnp.float32)
            x = y + layer["b"][None, :, None, None]
            continue
        n, c_in, h, w_sp = x.shape
        k, s, p = layer["k"], layer["stride"], layer["pad"]
        geo = _conv_geometry(h, w_sp, k, s, p)
        xflat = _prep_phase_flat(x, k, s, p, layer["c_in_pad"], geo)
        bias = layer["b_col"]
        mask = _valid_mask(geo) if layer["apply_norm"] else None
        y = _conv_layer_pallas(xflat, layer["w_flat"], bias, mask, geo,
                               k=k, s=s, c_in_pad=layer["c_in_pad"],
                               apply_norm=layer["apply_norm"],
                               apply_act=layer["apply_act"],
                               out_dtype=jnp.bfloat16)
        x = _unflatten(y, layer["c_out"], geo)
    return x


# ----------------------------------------------------------------------------
# Pure-JAX reference with identical bf16-in / f32-accumulate numerics
# ----------------------------------------------------------------------------
def _ref_forward(x_nchw, params):
    x = x_nchw.astype(jnp.bfloat16)
    n_layers = len(params)
    for idx, layer in enumerate(params):
        s, p = layer["stride"], layer["pad"]
        y = jax.lax.conv_general_dilated(
            x, layer["w"].astype(jnp.bfloat16), (s, s), [(p, p), (p, p)],
            dimension_numbers=("NCHW", "OIHW", "NCHW"),
            preferred_element_type=jnp.float32)
        y = y + layer["b"][None, :, None, None]
        if layer["apply_norm"]:
            mean = jnp.mean(y, axis=(2, 3), keepdims=True)
            var = jnp.mean(jnp.square(y - mean), axis=(2, 3), keepdims=True)
            y = (y - mean) * jax.lax.rsqrt(var + 1e-5)
        if layer["apply_act"]:
            y = jnp.where(y > 0, y, 0.2 * y)
        x = y.astype(jnp.float32) if idx == n_layers - 1 else y.astype(jnp.bfloat16)
    return x


if __name__ == "__main__":
    key = jax.random.PRNGKey(0)
    key, kx = jax.random.split(key)

    FILTER = 8                                              # small synthetic config
    x = jax.random.normal(kx, (2, 3, 32, 32), jnp.float32)  # NCHW input
    params = init_params(key, filt=FILTER)
    prepared = prepare_params(params)

    fwd = jax.jit(lambda inp: discriminator_forward(inp, prepared))
    out = jax.block_until_ready(fwd(x))

    ref = jax.block_until_ready(_ref_forward(x, params))
    assert out.shape == ref.shape == (2, 1, 2, 2), (out.shape, ref.shape)
    err = float(jnp.max(jnp.abs(out - ref)))
    assert err < 3e-2, err

    print("KERNEL_OK")
</pallas_src>

<mosaic_0001>
module attributes {stable_mosaic.version = 11 : i64} {
  func.func @_conv_in_lrelu_kernel(%arg0: i32, %arg1: i32, %arg2: memref<1x4x16x512xbf16, #tpu.memory_space<vmem>>, %arg3: memref<8x256xbf16, #tpu.memory_space<vmem>>, %arg4: memref<8x1xf32, #tpu.memory_space<vmem>>, %arg5: memref<1x8x384xbf16, #tpu.memory_space<vmem>>, %arg6: memref<256x384xbf16, #tpu.memory_space<vmem>>) attributes {dimension_semantics = [#tpu.dimension_semantics<parallel>, #tpu.dimension_semantics<parallel>], iteration_bounds = array<i64: 2, 1>, scalar_prefetch = 0 : i64, scratch_operands = 1 : i64, tpu.core_type = #tpu.core_type<tc>, window_params = [{transform_indices = @transform_0, window_bounds = array<i64: 1, 4, 16, 512>}, {transform_indices = @transform_1, window_bounds = array<i64: 8, 256>}, {transform_indices = @transform_2, window_bounds = array<i64: 8, 1>}, {transform_indices = @transform_3, window_bounds = array<i64: 1, 8, 384>}]} {
    %c0 = arith.constant 0 : index
    %c0_0 = arith.constant 0 : index
    %c0_1 = arith.constant 0 : index
    %c0_2 = arith.constant 0 : index
    %0 = vector.load %arg2[%c0, %c0_0, %c0_1, %c0_2] : memref<1x4x16x512xbf16, #tpu.memory_space<vmem>>, vector<1x1x16x384xbf16>
    %1 = vector.shape_cast %0 : vector<1x1x16x384xbf16> to vector<16x384xbf16>
    %c0_3 = arith.constant 0 : index
    %c0_4 = arith.constant 0 : index
    %2 = vector.load %arg6[%c0_3, %c0_4] : memref<256x384xbf16, #tpu.memory_space<vmem>>, vector<16x384xbf16>
    tpu.vector_store %arg6[%c0_3, %c0_4], %1 {strides = array<i32>} : memref<256x384xbf16, #tpu.memory_space<vmem>>, vector<16x384xbf16>,
    %c0_5 = arith.constant 0 : index
    %c1 = arith.constant 1 : index
    %c0_6 = arith.constant 0 : index
    %c0_7 = arith.constant 0 : index
    %3 = vector.load %arg2[%c0_5, %c1, %c0_6, %c0_7] : memref<1x4x16x512xbf16, #tpu.memory_space<vmem>>, vector<1x1x16x384xbf16>
    %4 = vector.shape_cast %3 : vector<1x1x16x384xbf16> to vector<16x384xbf16>
    %c16 = arith.constant 16 : index
    %c0_8 = arith.constant 0 : index
    %5 = vector.load %arg6[%c16, %c0_8] : memref<256x384xbf16, #tpu.memory_space<vmem>>, vector<16x384xbf16>
    tpu.vector_store %arg6[%c16, %c0_8], %4 {strides = array<i32>} : memref<256x384xbf16, #tpu.memory_space<vmem>>, vector<16x384xbf16>,
    %c0_9 = arith.constant 0 : index
    %c0_10 = arith.constant 0 : index
    %c0_11 = arith.constant 0 : index
    %c1_12 = arith.constant 1 : index
    %6 = vector.load %arg2[%c0_9, %c0_10, %c0_11, %c1_12] : memref<1x4x16x512xbf16, #tpu.memory_space<vmem>>, vector<1x1x16x384xbf16>
    %7 = vector.shape_cast %6 : vector<1x1x16x384xbf16> to vector<16x384xbf16>
    %c32 = arith.constant 32 : index
    %c0_13 = arith.constant 0 : index
    %8 = vector.load %arg6[%c32, %c0_13] : memref<256x384xbf16, #tpu.memory_space<vmem>>, vector<16x384xbf16>
    tpu.vector_store %arg6[%c32, %c0_13], %7 {strides = array<i32>} : memref<256x384xbf16, #tpu.memory_space<vmem>>, vector<16x384xbf16>,
    %c0_14 = arith.constant 0 : index
    %c1_15 = arith.constant 1 : index
    %c0_16 = arith.constant 0 : index
    %c1_17 = arith.constant 1 : index
    %9 = vector.load %arg2[%c0_14, %c1_15, %c0_16, %c1_17] : memref<1x4x16x512xbf16, #tpu.memory_space<vmem>>, vector<1x1x16x384xbf16>
    %10 = vector.shape_cast %9 : vector<1x1x16x384xbf16> to vector<16x384xbf16>
    %c48 = arith.constant 48 : index
    %c0_18 = arith.constant 0 : index
    %11 = vector.load %arg6[%c48, %c0_18] : memref<256x384xbf16, #tpu.memory_space<vmem>>, vector<16x384xbf16>
    tpu.vector_store %arg6[%c48, %c0_18], %10 {strides = array<i32>} : memref<256x384xbf16, #tpu.memory_space<vmem>>, vector<16x384xbf16>,
    %c0_19 = arith.constant 0 : index
    %c2 = arith.constant 2 : index
    %c0_20 = arith.constant 0 : index
    %c0_21 = arith.constant 0 : index
    %12 = vector.load %arg2[%c0_19, %c2, %c0_20, %c0_21] : memref<1x4x16x512xbf16, #tpu.memory_space<vmem>>, vector<1x1x16x384xbf16>
    %13 = vector.shape_cast %12 : vector<1x1x16x384xbf16> to vector<16x384xbf16>
    %c64 = arith.constant 64 : index
    %c0_22 = arith.constant 0 : index
    %14 = vector.load %arg6[%c64, %c0_22] : memref<256x384xbf16, #tpu.memory_space<vmem>>, vector<16x384xbf16>
    tpu.vector_store %arg6[%c64, %c0_22], %13 {strides = array<i32>} : memref<256x384xbf16, #tpu.memory_space<vmem>>, vector<16x384xbf16>,
    %c0_23 = arith.constant 0 : index
    %c3 = arith.constant 3 : index
    %c0_24 = arith.constant 0 : index
    %c0_25 = arith.constant 0 : index
    %15 = vector.load %arg2[%c0_23, %c3, %c0_24, %c0_25] : memref<1x4x16x512xbf16, #tpu.memory_space<vmem>>, vector<1x1x16x384xbf16>
    %16 = vector.shape_cast %15 : vector<1x1x16x384xbf16> to vector<16x384xbf16>
    %c80 = arith.constant 80 : index
    %c0_26 = arith.constant 0 : index
    %17 = vector.load %arg6[%c80, %c0_26] : memref<256x384xbf16, #tpu.memory_space<vmem>>, vector<16x384xbf16>
    tpu.vector_store %arg6[%c80, %c0_26], %16 {strides = array<i32>} : memref<256x384xbf16, #tpu.memory_space<vmem>>, vector<16x384xbf16>,
    %c0_27 = arith.constant 0 : index
    %c2_28 = arith.constant 2 : index
    %c0_29 = arith.constant 0 : index
    %c1_30 = arith.constant 1 : index
    %18 = vector.load %arg2[%c0_27, %c2_28, %c0_29, %c1_30] : memref<1x4x16x512xbf16, #tpu.memory_space<vmem>>, vector<1x1x16x384xbf16>
    %19 = vector.shape_cast %18 : vector<1x1x16x384xbf16> to vector<16x384xbf16>
    %c96 = arith.constant 96 : index
    %c0_31 = arith.constant 0 : index
    %20 = vector.load %arg6[%c96, %c0_31] : memref<256x384xbf16, #tpu.memory_space<vmem>>, vector<16x384xbf16>
    tpu.vector_store %arg6[%c96, %c0_31], %19 {strides = array<i32>} : memref<256x384xbf16, #tpu.memory_space<vmem>>, vector<16x384xbf16>,
    %c0_32 = arith.constant 0 : index
    %c3_33 = arith.constant 3 : index
    %c0_34 = arith.constant 0 : index
    %c1_35 = arith.constant 1 : index
    %21 = vector.load %arg2[%c0_32, %c3_33, %c0_34, %c1_35] : memref<1x4x16x512xbf16, #tpu.memory_space<vmem>>, vector<1x1x16x384xbf16>
    %22 = vector.shape_cast %21 : vector<1x1x16x384xbf16> to vector<16x384xbf16>
    %c112 = arith.constant 112 : index
    %c0_36 = arith.constant 0 : index
    %23 = vector.load %arg6[%c112, %c0_36] : memref<256x384xbf16, #tpu.memory_space<vmem>>, vector<16x384xbf16>
    tpu.vector_store %arg6[%c112, %c0_36], %22 {strides = array<i32>} : memref<256x384xbf16, #tpu.memory_space<vmem>>, vector<16x384xbf16>,
    %c0_37 = arith.constant 0 : index
    %c0_38 = arith.constant 0 : index
    %c0_39 = arith.constant 0 : index
    %c17 = arith.constant 17 : index
    %24 = vector.load %arg2[%c0_37, %c0_38, %c0_39, %c17] : memref<1x4x16x512xbf16, #tpu.memory_space<vmem>>, vector<1x1x16x384xbf16>
    %25 = vector.shape_cast %24 : vector<1x1x16x384xbf16> to vector<16x384xbf16>
    %c128 = arith.constant 128 : index
    %c0_40 = arith.constant 0 : index
    %26 = vector.load %arg6[%c128, %c0_40] : memref<256x384xbf16, #tpu.memory_space<vmem>>, vector<16x384xbf16>
    tpu.vector_store %arg6[%c128, %c0_40], %25 {strides = array<i32>} : memref<256x384xbf16, #tpu.memory_space<vmem>>, vector<16x384xbf16>,
    %c0_41 = arith.constant 0 : index
    %c1_42 = arith.constant 1 : index
    %c0_43 = arith.constant 0 : index
    %c17_44 = arith.constant 17 : index
    %27 = vector.load %arg2[%c0_41, %c1_42, %c0_43, %c17_44] : memref<1x4x16x512xbf16, #tpu.memory_space<vmem>>, vector<1x1x16x384xbf16>
    %28 = vector.shape_cast %27 : vector<1x1x16x384xbf16> to vector<16x384xbf16>
    %c144 = arith.constant 144 : index
    %c0_45 = arith.constant 0 : index
    %29 = vector.load %arg6[%c144, %c0_45] : memref<256x384xbf16, #tpu.memory_space<vmem>>, vector<16x384xbf16>
    tpu.vector_store %arg6[%c144, %c0_45], %28 {strides = array<i32>} : memref<256x384xbf16, #tpu.memory_space<vmem>>, vector<16x384xbf16>,
    %c0_46 = arith.constant 0 : index
    %c0_47 = arith.constant 0 : index
    %c0_48 = arith.constant 0 : index
    %c18 = arith.constant 18 : index
    %30 = vector.load %arg2[%c0_46, %c0_47, %c0_48, %c18] : memref<1x4x16x512xbf16, #tpu.memory_space<vmem>>, vector<1x1x16x384xbf16>
    %31 = vector.shape_cast %30 : vector<1x1x16x384xbf16> to vector<16x384xbf16>
    %c160 = arith.constant 160 : index
    %c0_49 = arith.constant 0 : index
    %32 = vector.load %arg6[%c160, %c0_49] : memref<256x384xbf16, #tpu.memory_space<vmem>>, vector<16x384xbf16>
    tpu.vector_store %arg6[%c160, %c0_49], %31 {strides = array<i32>} : memref<256x384xbf16, #tpu.memory_space<vmem>>, vector<16x384xbf16>,
    %c0_50 = arith.constant 0 : index
    %c1_51 = arith.constant 1 : index
    %c0_52 = arith.constant 0 : index
    %c18_53 = arith.constant 18 : index
    %33 = vector.load %arg2[%c0_50, %c1_51, %c0_52, %c18_53] : memref<1x4x16x512xbf16, #tpu.memory_space<vmem>>, vector<1x1x16x384xbf16>
    %34 = vector.shape_cast %33 : vector<1x1x16x384xbf16> to vector<16x384xbf16>
    %c176 = arith.constant 176 : index
    %c0_54 = arith.constant 0 : index
    %35 = vector.load %arg6[%c176, %c0_54] : memref<256x384xbf16, #tpu.memory_space<vmem>>, vector<16x384xbf16>
    tpu.vector_store %arg6[%c176, %c0_54], %34 {strides = array<i32>} : memref<256x384xbf16, #tpu.memory_space<vmem>>, vector<16x384xbf16>,
    %c0_55 = arith.constant 0 : index
    %c2_56 = arith.constant 2 : index
    %c0_57 = arith.constant 0 : index
    %c17_58 = arith.constant 17 : index
    %36 = vector.load %arg2[%c0_55, %c2_56, %c0_57, %c17_58] : memref<1x4x16x512xbf16, #tpu.memory_space<vmem>>, vector<1x1x16x384xbf16>
    %37 = vector.shape_cast %36 : vector<1x1x16x384xbf16> to vector<16x384xbf16>
    %c192 = arith.constant 192 : index
    %c0_59 = arith.constant 0 : index
    %38 = vector.load %arg6[%c192, %c0_59] : memref<256x384xbf16, #tpu.memory_space<vmem>>, vector<16x384xbf16>
    tpu.vector_store %arg6[%c192, %c0_59], %37 {strides = array<i32>} : memref<256x384xbf16, #tpu.memory_space<vmem>>, vector<16x384xbf16>,
    %c0_60 = arith.constant 0 : index
    %c3_61 = arith.constant 3 : index
    %c0_62 = arith.constant 0 : index
    %c17_63 = arith.constant 17 : index
    %39 = vector.load %arg2[%c0_60, %c3_61, %c0_62, %c17_63] : memref<1x4x16x512xbf16, #tpu.memory_space<vmem>>, vector<1x1x16x384xbf16>
    %40 = vector.shape_cast %39 : vector<1x1x16x384xbf16> to vector<16x384xbf16>
    %c208 = arith.constant 208 : index
    %c0_64 = arith.constant 0 : index
    %41 = vector.load %arg6[%c208, %c0_64] : memref<256x384xbf16, #tpu.memory_space<vmem>>, vector<16x384xbf16>
    tpu.vector_store %arg6[%c208, %c0_64], %40 {strides = array<i32>} : memref<256x384xbf16, #tpu.memory_space<vmem>>, vector<16x384xbf16>,
    %c0_65 = arith.constant 0 : index
    %c2_66 = arith.constant 2 : index
    %c0_67 = arith.constant 0 : index
    %c18_68 = arith.constant 18 : index
    %42 = vector.load %arg2[%c0_65, %c2_66, %c0_67, %c18_68] : memref<1x4x16x512xbf16, #tpu.memory_space<vmem>>, vector<1x1x16x384xbf16>
    %43 = vector.shape_cast %42 : vector<1x1x16x384xbf16> to vector<16x384xbf16>
    %c224 = arith.constant 224 : index
    %c0_69 = arith.constant 0 : index
    %44 = vector.load %arg6[%c224, %c0_69] : memref<256x384xbf16, #tpu.memory_space<vmem>>, vector<16x384xbf16>
    tpu.vector_store %arg6[%c224, %c0_69], %43 {strides = array<i32>} : memref<256x384xbf16, #tpu.memory_space<vmem>>, vector<16x384xbf16>,
    %c0_70 = arith.constant 0 : index
    %c3_71 = arith.constant 3 : index
    %c0_72 = arith.constant 0 : index
    %c18_73 = arith.constant 18 : index
    %45 = vector.load %arg2[%c0_70, %c3_71, %c0_72, %c18_73] : memref<1x4x16x512xbf16, #tpu.memory_space<vmem>>, vector<1x1x16x384xbf16>
    %46 = vector.shape_cast %45 : vector<1x1x16x384xbf16> to vector<16x384xbf16>
    %c240 = arith.constant 240 : index
    %c0_74 = arith.constant 0 : index
    %47 = vector.load %arg6[%c240, %c0_74] : memref<256x384xbf16, #tpu.memory_space<vmem>>, vector<16x384xbf16>
    tpu.vector_store %arg6[%c240, %c0_74], %46 {strides = array<i32>} : memref<256x384xbf16, #tpu.memory_space<vmem>>, vector<16x384xbf16>,
    %c0_75 = arith.constant 0 : index
    %c0_76 = arith.constant 0 : index
    %48 = vector.load %arg3[%c0_75, %c0_76] : memref<8x256xbf16, #tpu.memory_space<vmem>>, vector<8x256xbf16>
    %c0_77 = arith.constant 0 : index
    %c0_78 = arith.constant 0 : index
    %49 = vector.load %arg6[%c0_77, %c0_78] : memref<256x384xbf16, #tpu.memory_space<vmem>>, vector<256x384xbf16>
    %cst = arith.constant dense<0.000000e+00> : vector<8x384xf32>
    %50 = tpu.matmul %48, %49, %cst {dimension_numbers = #tpu.dot_dimension_numbers<[1], [0], [0], [1], [0, 0, 1, 1], [], []>} : vector<8x256xbf16>, vector<256x384xbf16>, vector<8x384xf32> -> vector<8x384xf32>
    %c0_79 = arith.constant 0 : index
    %c0_80 = arith.constant 0 : index
    %51 = vector.load %arg4[%c0_79, %c0_80] : memref<8x1xf32, #tpu.memory_space<vmem>>, vector<8x1xf32>
    %52 = vector.broadcast %51 : vector<8x1xf32> to vector<8x384xf32>
    %53 = arith.addf %50, %52 : vector<8x384xf32>
    %cst_81 = arith.constant 0.000000e+00 : f32
    %54 = vector.broadcast %cst_81 : f32 to vector<8x384xf32>
    %55 = arith.cmpf ogt, %53, %54 : vector<8x384xf32>
    %cst_82 = arith.constant 2.000000e-01 : f32
    %56 = vector.broadcast %cst_82 : f32 to vector<8x384xf32>
    %57 = arith.mulf %56, %53 : vector<8x384xf32>
    %58 = arith.select %55, %53, %57 : vector<8x384xi1>, vector<8x384xf32>
    %59 = arith.truncf %58 : vector<8x384xf32> to vector<8x384xbf16>
    %c0_83 = arith.constant 0 : index
    %c0_84 = arith.constant 0 : index
    %c0_85 = arith.constant 0 : index
    %60 = vector.load %arg5[%c0_83, %c0_84, %c0_85] : memref<1x8x384xbf16, #tpu.memory_space<vmem>>, vector<1x8x384xbf16>
    %61 = vector.shape_cast %60 : vector<1x8x384xbf16> to vector<8x384xbf16>
    %62 = vector.shape_cast %59 : vector<8x384xbf16> to vector<1x8x384xbf16>
    tpu.vector_store %arg5[%c0_83, %c0_84, %c0_85], %62 {strides = array<i32>} : memref<1x8x384xbf16, #tpu.memory_space<vmem>>, vector<1x8x384xbf16>,
    return
  }
  func.func @transform_0(%arg0: i32, %arg1: i32) -> (i32, i32, i32, i32) {
    %c0_i32 = arith.constant 0 : i32
    %c0_i32_0 = arith.constant 0 : i32
    %c0_i32_1 = arith.constant 0 : i32
    %c0_i32_2 = arith.constant 0 : i32
    return %arg0, %c0_i32, %c0_i32_0, %c0_i32_1 : i32, i32, i32, i32
  }
  func.func @transform_1(%arg0: i32, %arg1: i32) -> (i32, i32) {
    %c0_i32 = arith.constant 0 : i32
    %c0_i32_0 = arith.constant 0 : i32
    return %arg1, %c0_i32 : i32, i32
  }
  func.func @transform_2(%arg0: i32, %arg1: i32) -> (i32, i32) {
    %c0_i32 = arith.constant 0 : i32
    %c0_i32_0 = arith.constant 0 : i32
    return %arg1, %c0_i32 : i32, i32
  }
  func.func @transform_3(%arg0: i32, %arg1: i32) -> (i32, i32, i32) {
    %c0_i32 = arith.constant 0 : i32
    %c0_i32_0 = arith.constant 0 : i32
    return %arg0, %arg1, %c0_i32 : i32, i32, i32
  }
}

module attributes {stable_mosaic.version = 11 : i64} {
  func.func @_conv_in_lrelu_kernel(%arg0: i32, %arg1: i32, %arg2: memref<1x4x16x256xbf16, #tpu.memory_space<vmem>>, %arg3: memref<16x256xbf16, #tpu.memory_space<vmem>>, %arg4: memref<1x128xf32, #tpu.memory_space<vmem>>, %arg5: memref<1x16x128xbf16, #tpu.memory_space<vmem>>, %arg6: memref<256x128xbf16, #tpu.memory_space<vmem>>) attributes {dimension_semantics = [#tpu.dimension_semantics<parallel>, #tpu.dimension_semantics<parallel>], iteration_bounds = array<i64: 2, 1>, scalar_prefetch = 0 : i64, scratch_operands = 1 : i64, tpu.core_type = #tpu.core_type<tc>, window_params = [{transform_indices = @transform_0, window_bounds = array<i64: 1, 4, 16, 256>}, {transform_indices = @transform_1, window_bounds = array<i64: 16, 256>}, {pipeline_mode = #tpu.pipeline_mode<synchronous>, transform_indices = @transform_2, window_bounds = array<i64: 1, 128>}, {transform_indices = @transform_3, window_bounds = array<i64: 1, 16, 128>}]} {
    %c0 = arith.constant 0 : index
    %c0_0 = arith.constant 0 : index
    %c0_1 = arith.constant 0 : index
    %c0_2 = arith.constant 0 : index
    %0 = vector.load %arg2[%c0, %c0_0, %c0_1, %c0_2] : memref<1x4x16x256xbf16, #tpu.memory_space<vmem>>, vector<1x1x16x128xbf16>
    %1 = vector.shape_cast %0 : vector<1x1x16x128xbf16> to vector<16x128xbf16>
    %c0_3 = arith.constant 0 : index
    %c0_4 = arith.constant 0 : index
    %2 = vector.load %arg6[%c0_3, %c0_4] : memref<256x128xbf16, #tpu.memory_space<vmem>>, vector<16x128xbf16>
    tpu.vector_store %arg6[%c0_3, %c0_4], %1 {strides = array<i32>} : memref<256x128xbf16, #tpu.memory_space<vmem>>, vector<16x128xbf16>,
    %c0_5 = arith.constant 0 : index
    %c1 = arith.constant 1 : index
    %c0_6 = arith.constant 0 : index
    %c0_7 = arith.constant 0 : index
    %3 = vector.load %arg2[%c0_5, %c1, %c0_6, %c0_7] : memref<1x4x16x256xbf16, #tpu.memory_space<vmem>>, vector<1x1x16x128xbf16>
    %4 = vector.shape_cast %3 : vector<1x1x16x128xbf16> to vector<16x128xbf16>
    %c16 = arith.constant 16 : index
    %c0_8 = arith.constant 0 : index
    %5 = vector.load %arg6[%c16, %c0_8] : memref<256x128xbf16, #tpu.memory_space<vmem>>, vector<16x128xbf16>
    tpu.vector_store %arg6[%c16, %c0_8], %4 {strides = array<i32>} : memref<256x128xbf16, #tpu.memory_space<vmem>>, vector<16x128xbf16>,
    %c0_9 = arith.constant 0 : index
    %c0_10 = arith.constant 0 : index
    %c0_11 = arith.constant 0 : index
    %c1_12 = arith.constant 1 : index
    %6 = vector.load %arg2[%c0_9, %c0_10, %c0_11, %c1_12] : memref<1x4x16x256xbf16, #tpu.memory_space<vmem>>, vector<1x1x16x128xbf16>
    %7 = vector.shape_cast %6 : vector<1x1x16x128xbf16> to vector<16x128xbf16>
    %c32 = arith.constant 32 : index
    %c0_13 = arith.constant 0 : index
    %8 = vector.load %arg6[%c32, %c0_13] : memref<256x128xbf16, #tpu.memory_space<vmem>>, vector<16x128xbf16>
    tpu.vector_store %arg6[%c32, %c0_13], %7 {strides = array<i32>} : memref<256x128xbf16, #tpu.memory_space<vmem>>, vector<16x128xbf16>,
    %c0_14 = arith.constant 0 : index
    %c1_15 = arith.constant 1 : index
    %c0_16 = arith.constant 0 : index
    %c1_17 = arith.constant 1 : index
    %9 = vector.load %arg2[%c0_14, %c1_15, %c0_16, %c1_17] : memref<1x4x16x256xbf16, #tpu.memory_space<vmem>>, vector<1x1x16x128xbf16>
    %10 = vector.shape_cast %9 : vector<1x1x16x128xbf16> to vector<16x128xbf16>
    %c48 = arith.constant 48 : index
    %c0_18 = arith.constant 0 : index
    %11 = vector.load %arg6[%c48, %c0_18] : memref<256x128xbf16, #tpu.memory_space<vmem>>, vector<16x128xbf16>
    tpu.vector_store %arg6[%c48, %c0_18], %10 {strides = array<i32>} : memref<256x128xbf16, #tpu.memory_space<vmem>>, vector<16x128xbf16>,
    %c0_19 = arith.constant 0 : index
    %c2 = arith.constant 2 : index
    %c0_20 = arith.constant 0 : index
    %c0_21 = arith.constant 0 : index
    %12 = vector.load %arg2[%c0_19, %c2, %c0_20, %c0_21] : memref<1x4x16x256xbf16, #tpu.memory_space<vmem>>, vector<1x1x16x128xbf16>
    %13 = vector.shape_cast %12 : vector<1x1x16x128xbf16> to vector<16x128xbf16>
    %c64 = arith.constant 64 : index
    %c0_22 = arith.constant 0 : index
    %14 = vector.load %arg6[%c64, %c0_22] : memref<256x128xbf16, #tpu.memory_space<vmem>>, vector<16x128xbf16>
    tpu.vector_store %arg6[%c64, %c0_22], %13 {strides = array<i32>} : memref<256x128xbf16, #tpu.memory_space<vmem>>, vector<16x128xbf16>,
    %c0_23 = arith.constant 0 : index
    %c3 = arith.constant 3 : index
    %c0_24 = arith.constant 0 : index
    %c0_25 = arith.constant 0 : index
    %15 = vector.load %arg2[%c0_23, %c3, %c0_24, %c0_25] : memref<1x4x16x256xbf16, #tpu.memory_space<vmem>>, vector<1x1x16x128xbf16>
    %16 = vector.shape_cast %15 : vector<1x1x16x128xbf16> to vector<16x128xbf16>
    %c80 = arith.constant 80 : index
    %c0_26 = arith.constant 0 : index
    %17 = vector.load %arg6[%c80, %c0_26] : memref<256x128xbf16, #tpu.memory_space<vmem>>, vector<16x128xbf16>
    tpu.vector_store %arg6[%c80, %c0_26], %16 {strides = array<i32>} : memref<256x128xbf16, #tpu.memory_space<vmem>>, vector<16x128xbf16>,
    %c0_27 = arith.constant 0 : index
    %c2_28 = arith.constant 2 : index
    %c0_29 = arith.constant 0 : index
    %c1_30 = arith.constant 1 : index
    %18 = vector.load %arg2[%c0_27, %c2_28, %c0_29, %c1_30] : memref<1x4x16x256xbf16, #tpu.memory_space<vmem>>, vector<1x1x16x128xbf16>
    %19 = vector.shape_cast %18 : vector<1x1x16x128xbf16> to vector<16x128xbf16>
    %c96 = arith.constant 96 : index
    %c0_31 = arith.constant 0 : index
    %20 = vector.load %arg6[%c96, %c0_31] : memref<256x128xbf16, #tpu.memory_space<vmem>>, vector<16x128xbf16>
    tpu.vector_store %arg6[%c96, %c0_31], %19 {strides = array<i32>} : memref<256x128xbf16, #tpu.memory_space<vmem>>, vector<16x128xbf16>,
    %c0_32 = arith.constant 0 : index
    %c3_33 = arith.constant 3 : index
    %c0_34 = arith.constant 0 : index
    %c1_35 = arith.constant 1 : index
    %21 = vector.load %arg2[%c0_32, %c3_33, %c0_34, %c1_35] : memref<1x4x16x256xbf16, #tpu.memory_space<vmem>>, vector<1x1x16x128xbf16>
    %22 = vector.shape_cast %21 : vector<1x1x16x128xbf16> to vector<16x128xbf16>
    %c112 = arith.constant 112 : index
    %c0_36 = arith.constant 0 : index
    %23 = vector.load %arg6[%c112, %c0_36] : memref<256x128xbf16, #tpu.memory_space<vmem>>, vector<16x128xbf16>
    tpu.vector_store %arg6[%c112, %c0_36], %22 {strides = array<i32>} : memref<256x128xbf16, #tpu.memory_space<vmem>>, vector<16x128xbf16>,
    %c0_37 = arith.constant 0 : index
    %c0_38 = arith.constant 0 : index
    %c0_39 = arith.constant 0 : index
    %c9 = arith.constant 9 : index
    %24 = vector.load %arg2[%c0_37, %c0_38, %c0_39, %c9] : memref<1x4x16x256xbf16, #tpu.memory_space<vmem>>, vector<1x1x16x128xbf16>
    %25 = vector.shape_cast %24 : vector<1x1x16x128xbf16> to vector<16x128xbf16>
    %c128 = arith.constant 128 : index
    %c0_40 = arith.constant 0 : index
    %26 = vector.load %arg6[%c128, %c0_40] : memref<256x128xbf16, #tpu.memory_space<vmem>>, vector<16x128xbf16>
    tpu.vector_store %arg6[%c128, %c0_40], %25 {strides = array<i32>} : memref<256x128xbf16, #tpu.memory_space<vmem>>, vector<16x128xbf16>,
    %c0_41 = arith.constant 0 : index
    %c1_42 = arith.constant 1 : index
    %c0_43 = arith.constant 0 : index
    %c9_44 = arith.constant 9 : index
    %27 = vector.load %arg2[%c0_41, %c1_42, %c0_43, %c9_44] : memref<1x4x16x256xbf16, #tpu.memory_space<vmem>>, vector<1x1x16x128xbf16>
    %28 = vector.shape_cast %27 : vector<1x1x16x128xbf16> to vector<16x128xbf16>
    %c144 = arith.constant 144 : index
    %c0_45 = arith.constant 0 : index
    %29 = vector.load %arg6[%c144, %c0_45] : memref<256x128xbf16, #tpu.memory_space<vmem>>, vector<16x128xbf16>
    tpu.vector_store %arg6[%c144, %c0_45], %28 {strides = array<i32>} : memref<256x128xbf16, #tpu.memory_space<vmem>>, vector<16x128xbf16>,
    %c0_46 = arith.constant 0 : index
    %c0_47 = arith.constant 0 : index
    %c0_48 = arith.constant 0 : index
    %c10 = arith.constant 10 : index
    %30 = vector.load %arg2[%c0_46, %c0_47, %c0_48, %c10] : memref<1x4x16x256xbf16, #tpu.memory_space<vmem>>, vector<1x1x16x128xbf16>
    %31 = vector.shape_cast %30 : vector<1x1x16x128xbf16> to vector<16x128xbf16>
    %c160 = arith.constant 160 : index
    %c0_49 = arith.constant 0 : index
    %32 = vector.load %arg6[%c160, %c0_49] : memref<256x128xbf16, #tpu.memory_space<vmem>>, vector<16x128xbf16>
    tpu.vector_store %arg6[%c160, %c0_49], %31 {strides = array<i32>} : memref<256x128xbf16, #tpu.memory_space<vmem>>, vector<16x128xbf16>,
    %c0_50 = arith.constant 0 : index
    %c1_51 = arith.constant 1 : index
    %c0_52 = arith.constant 0 : index
    %c10_53 = arith.constant 10 : index
    %33 = vector.load %arg2[%c0_50, %c1_51, %c0_52, %c10_53] : memref<1x4x16x256xbf16, #tpu.memory_space<vmem>>, vector<1x1x16x128xbf16>
    %34 = vector.shape_cast %33 : vector<1x1x16x128xbf16> to vector<16x128xbf16>
    %c176 = arith.constant 176 : index
    %c0_54 = arith.constant 0 : index
    %35 = vector.load %arg6[%c176, %c0_54] : memref<256x128xbf16, #tpu.memory_space<vmem>>, vector<16x128xbf16>
    tpu.vector_store %arg6[%c176, %c0_54], %34 {strides = array<i32>} : memref<256x128xbf16, #tpu.memory_space<vmem>>, vector<16x128xbf16>,
    %c0_55 = arith.constant 0 : index
    %c2_56 = arith.constant 2 : index
    %c0_57 = arith.constant 0 : index
    %c9_58 = arith.constant 9 : index
    %36 = vector.load %arg2[%c0_55, %c2_56, %c0_57, %c9_58] : memref<1x4x16x256xbf16, #tpu.memory_space<vmem>>, vector<1x1x16x128xbf16>
    %37 = vector.shape_cast %36 : vector<1x1x16x128xbf16> to vector<16x128xbf16>
    %c192 = arith.constant 192 : index
    %c0_59 = arith.constant 0 : index
    %38 = vector.load %arg6[%c192, %c0_59] : memref<256x128xbf16, #tpu.memory_space<vmem>>, vector<16x128xbf16>
    tpu.vector_store %arg6[%c192, %c0_59], %37 {strides = array<i32>} : memref<256x128xbf16, #tpu.memory_space<vmem>>, vector<16x128xbf16>,
    %c0_60 = arith.constant 0 : index
    %c3_61 = arith.constant 3 : index
    %c0_62 = arith.constant 0 : index
    %c9_63 = arith.constant 9 : index
    %39 = vector.load %arg2[%c0_60, %c3_61, %c0_62, %c9_63] : memref<1x4x16x256xbf16, #tpu.memory_space<vmem>>, vector<1x1x16x128xbf16>
    %40 = vector.shape_cast %39 : vector<1x1x16x128xbf16> to vector<16x128xbf16>
    %c208 = arith.constant 208 : index
    %c0_64 = arith.constant 0 : index
    %41 = vector.load %arg6[%c208, %c0_64] : memref<256x128xbf16, #tpu.memory_space<vmem>>, vector<16x128xbf16>
    tpu.vector_store %arg6[%c208, %c0_64], %40 {strides = array<i32>} : memref<256x128xbf16, #tpu.memory_space<vmem>>, vector<16x128xbf16>,
    %c0_65 = arith.constant 0 : index
    %c2_66 = arith.constant 2 : index
    %c0_67 = arith.constant 0 : index
    %c10_68 = arith.constant 10 : index
    %42 = vector.load %arg2[%c0_65, %c2_66, %c0_67, %c10_68] : memref<1x4x16x256xbf16, #tpu.memory_space<vmem>>, vector<1x1x16x128xbf16>
    %43 = vector.shape_cast %42 : vector<1x1x16x128xbf16> to vector<16x128xbf16>
    %c224 = arith.constant 224 : index
    %c0_69 = arith.constant 0 : index
    %44 = vector.load %arg6[%c224, %c0_69] : memref<256x128xbf16, #tpu.memory_space<vmem>>, vector<16x128xbf16>
    tpu.vector_store %arg6[%c224, %c0_69], %43 {strides = array<i32>} : memref<256x128xbf16, #tpu.memory_space<vmem>>, vector<16x128xbf16>,
    %c0_70 = arith.constant 0 : index
    %c3_71 = arith.constant 3 : index
    %c0_72 = arith.constant 0 : index
    %c10_73 = arith.constant 10 : index
    %45 = vector.load %arg2[%c0_70, %c3_71, %c0_72, %c10_73] : memref<1x4x16x256xbf16, #tpu.memory_space<vmem>>, vector<1x1x16x128xbf16>
    %46 = vector.shape_cast %45 : vector<1x1x16x128xbf16> to vector<16x128xbf16>
    %c240 = arith.constant 240 : index
    %c0_74 = arith.constant 0 : index
    %47 = vector.load %arg6[%c240, %c0_74] : memref<256x128xbf16, #tpu.memory_space<vmem>>, vector<16x128xbf16>
    tpu.vector_store %arg6[%c240, %c0_74], %46 {strides = array<i32>} : memref<256x128xbf16, #tpu.memory_space<vmem>>, vector<16x128xbf16>,
    %c0_75 = arith.constant 0 : index
    %c0_76 = arith.constant 0 : index
    %48 = vector.load %arg3[%c0_75, %c0_76] : memref<16x256xbf16, #tpu.memory_space<vmem>>, vector<16x256xbf16>
    %c0_77 = arith.constant 0 : index
    %c0_78 = arith.constant 0 : index
    %49 = vector.load %arg6[%c0_77, %c0_78] : memref<256x128xbf16, #tpu.memory_space<vmem>>, vector<256x128xbf16>
    %cst = arith.constant dense<0.000000e+00> : vector<16x128xf32>
    %50 = tpu.matmul %48, %49, %cst {dimension_numbers = #tpu.dot_dimension_numbers<[1], [0], [0], [1], [0, 0, 1, 1], [], []>} : vector<16x256xbf16>, vector<256x128xbf16>, vector<16x128xf32> -> vector<16x128xf32>
    %c0_79 = arith.constant 0 : index
    %c0_80 = arith.constant 0 : index
    %51 = vector.load %arg4[%c0_79, %c0_80] : memref<1x128xf32, #tpu.memory_space<vmem>>, vector<1x128xf32>
    %52 = vector.broadcast %51 : vector<1x128xf32> to vector<16x128xf32>
    %53 = arith.mulf %50, %52 : vector<16x128xf32>
    %cst_81 = arith.constant dense<0.000000e+00> : vector<16xf32>
    %54 = vector.multi_reduction <add>, %53, %cst_81 [1] : vector<16x128xf32> to vector<16xf32>
    %55 = vector.shape_cast %54 : vector<16xf32> to vector<16x1xf32>
    %cst_82 = arith.constant 1.562500e-02 : f32
    %56 = vector.broadcast %cst_82 : f32 to vector<16x1xf32>
    %57 = arith.mulf %55, %56 : vector<16x1xf32>
    %58 = vector.broadcast %57 : vector<16x1xf32> to vector<16x128xf32>
    %59 = arith.subf %50, %58 : vector<16x128xf32>
    %60 = arith.mulf %59, %59 : vector<16x128xf32>
    %61 = vector.broadcast %51 : vector<1x128xf32> to vector<16x128xf32>
    %62 = arith.mulf %60, %61 : vector<16x128xf32>
    %cst_83 = arith.constant dense<0.000000e+00> : vector<16xf32>
    %63 = vector.multi_reduction <add>, %62, %cst_83 [1] : vector<16x128xf32> to vector<16xf32>
    %64 = vector.shape_cast %63 : vector<16xf32> to vector<16x1xf32>
    %cst_84 = arith.constant 1.562500e-02 : f32
    %65 = vector.broadcast %cst_84 : f32 to vector<16x1xf32>
    %66 = arith.mulf %64, %65 : vector<16x1xf32>
    %cst_85 = arith.constant 9.99999974E-6 : f32
    %67 = vector.broadcast %cst_85 : f32 to vector<16x1xf32>
    %68 = arith.addf %66, %67 : vector<16x1xf32>
    %69 = math.rsqrt %68 : vector<16x1xf32>
    %70 = vector.broadcast %69 : vector<16x1xf32> to vector<16x128xf32>
    %71 = arith.mulf %59, %70 : vector<16x128xf32>
    %cst_86 = arith.constant 0.000000e+00 : f32
    %72 = vector.broadcast %cst_86 : f32 to vector<16x128xf32>
    %73 = arith.cmpf ogt, %71, %72 : vector<16x128xf32>
    %cst_87 = arith.constant 2.000000e-01 : f32
    %74 = vector.broadcast %cst_87 : f32 to vector<16x128xf32>
    %75 = arith.mulf %74, %71 : vector<16x128xf32>
    %76 = arith.select %73, %71, %75 : vector<16x128xi1>, vector<16x128xf32>
    %77 = arith.truncf %76 : vector<16x128xf32> to vector<16x128xbf16>
    %c0_88 = arith.constant 0 : index
    %c0_89 = arith.constant 0 : index
    %c0_90 = arith.constant 0 : index
    %78 = vector.load %arg5[%c0_88, %c0_89, %c0_90] : memref<1x16x128xbf16, #tpu.memory_space<vmem>>, vector<1x16x128xbf16>
    %79 = vector.shape_cast %78 : vector<1x16x128xbf16> to vector<16x128xbf16>
    %80 = vector.shape_cast %77 : vector<16x128xbf16> to vector<1x16x128xbf16>
    tpu.vector_store %arg5[%c0_88, %c0_89, %c0_90], %80 {strides = array<i32>} : memref<1x16x128xbf16, #tpu.memory_space<vmem>>, vector<1x16x128xbf16>,
    return
  }
  func.func @transform_0(%arg0: i32, %arg1: i32) -> (i32, i32, i32, i32) {
    %c0_i32 = arith.constant 0 : i32
    %c0_i32_0 = arith.constant 0 : i32
    %c0_i32_1 = arith.constant 0 : i32
    %c0_i32_2 = arith.constant 0 : i32
    return %arg0, %c0_i32, %c0_i32_0, %c0_i32_1 : i32, i32, i32, i32
  }
  func.func @transform_1(%arg0: i32, %arg1: i32) -> (i32, i32) {
    %c0_i32 = arith.constant 0 : i32
    %c0_i32_0 = arith.constant 0 : i32
    return %arg1, %c0_i32 : i32, i32
  }
  func.func @transform_2(%arg0: i32, %arg1: i32) -> (i32, i32) {
    %c0_i32 = arith.constant 0 : i32
    %c0_i32_0 = arith.constant 0 : i32
    %c0_i32_1 = arith.constant 0 : i32
    return %c0_i32, %c0_i32_0 : i32, i32
  }
  func.func @transform_3(%arg0: i32, %arg1: i32) -> (i32, i32, i32) {
    %c0_i32 = arith.constant 0 : i32
    %c0_i32_0 = arith.constant 0 : i32
    return %arg0, %arg1, %c0_i32 : i32, i32, i32
  }
}

module attributes {stable_mosaic.version = 11 : i64} {
  func.func @_conv_in_lrelu_kernel(%arg0: i32, %arg1: i32, %arg2: memref<1x4x16x256xbf16, #tpu.memory_space<vmem>>, %arg3: memref<32x256xbf16, #tpu.memory_space<vmem>>, %arg4: memref<1x128xf32, #tpu.memory_space<vmem>>, %arg5: memref<1x32x128xbf16, #tpu.memory_space<vmem>>, %arg6: memref<256x128xbf16, #tpu.memory_space<vmem>>) attributes {dimension_semantics = [#tpu.dimension_semantics<parallel>, #tpu.dimension_semantics<parallel>], iteration_bounds = array<i64: 2, 1>, scalar_prefetch = 0 : i64, scratch_operands = 1 : i64, tpu.core_type = #tpu.core_type<tc>, window_params = [{transform_indices = @transform_0, window_bounds = array<i64: 1, 4, 16, 256>}, {transform_indices = @transform_1, window_bounds = array<i64: 32, 256>}, {pipeline_mode = #tpu.pipeline_mode<synchronous>, transform_indices = @transform_2, window_bounds = array<i64: 1, 128>}, {transform_indices = @transform_3, window_bounds = array<i64: 1, 32, 128>}]} {
    %c0 = arith.constant 0 : index
    %c0_0 = arith.constant 0 : index
    %c0_1 = arith.constant 0 : index
    %c0_2 = arith.constant 0 : index
    %0 = vector.load %arg2[%c0, %c0_0, %c0_1, %c0_2] : memref<1x4x16x256xbf16, #tpu.memory_space<vmem>>, vector<1x1x16x128xbf16>
    %1 = vector.shape_cast %0 : vector<1x1x16x128xbf16> to vector<16x128xbf16>
    %c0_3 = arith.constant 0 : index
    %c0_4 = arith.constant 0 : index
    %2 = vector.load %arg6[%c0_3, %c0_4] : memref<256x128xbf16, #tpu.memory_space<vmem>>, vector<16x128xbf16>
    tpu.vector_store %arg6[%c0_3, %c0_4], %1 {strides = array<i32>} : memref<256x128xbf16, #tpu.memory_space<vmem>>, vector<16x128xbf16>,
    %c0_5 = arith.constant 0 : index
    %c1 = arith.constant 1 : index
    %c0_6 = arith.constant 0 : index
    %c0_7 = arith.constant 0 : index
    %3 = vector.load %arg2[%c0_5, %c1, %c0_6, %c0_7] : memref<1x4x16x256xbf16, #tpu.memory_space<vmem>>, vector<1x1x16x128xbf16>
    %4 = vector.shape_cast %3 : vector<1x1x16x128xbf16> to vector<16x128xbf16>
    %c16 = arith.constant 16 : index
    %c0_8 = arith.constant 0 : index
    %5 = vector.load %arg6[%c16, %c0_8] : memref<256x128xbf16, #tpu.memory_space<vmem>>, vector<16x128xbf16>
    tpu.vector_store %arg6[%c16, %c0_8], %4 {strides = array<i32>} : memref<256x128xbf16, #tpu.memory_space<vmem>>, vector<16x128xbf16>,
    %c0_9 = arith.constant 0 : index
    %c0_10 = arith.constant 0 : index
    %c0_11 = arith.constant 0 : index
    %c1_12 = arith.constant 1 : index
    %6 = vector.load %arg2[%c0_9, %c0_10, %c0_11, %c1_12] : memref<1x4x16x256xbf16, #tpu.memory_space<vmem>>, vector<1x1x16x128xbf16>
    %7 = vector.shape_cast %6 : vector<1x1x16x128xbf16> to vector<16x128xbf16>
    %c32 = arith.constant 32 : index
    %c0_13 = arith.constant 0 : index
    %8 = vector.load %arg6[%c32, %c0_13] : memref<256x128xbf16, #tpu.memory_space<vmem>>, vector<16x128xbf16>
    tpu.vector_store %arg6[%c32, %c0_13], %7 {strides = array<i32>} : memref<256x128xbf16, #tpu.memory_space<vmem>>, vector<16x128xbf16>,
    %c0_14 = arith.constant 0 : index
    %c1_15 = arith.constant 1 : index
    %c0_16 = arith.constant 0 : index
    %c1_17 = arith.constant 1 : index
    %9 = vector.load %arg2[%c0_14, %c1_15, %c0_16, %c1_17] : memref<1x4x16x256xbf16, #tpu.memory_space<vmem>>, vector<1x1x16x128xbf16>
    %10 = vector.shape_cast %9 : vector<1x1x16x128xbf16> to vector<16x128xbf16>
    %c48 = arith.constant 48 : index
    %c0_18 = arith.constant 0 : index
    %11 = vector.load %arg6[%c48, %c0_18] : memref<256x128xbf16, #tpu.memory_space<vmem>>, vector<16x128xbf16>
    tpu.vector_store %arg6[%c48, %c0_18], %10 {strides = array<i32>} : memref<256x128xbf16, #tpu.memory_space<vmem>>, vector<16x128xbf16>,
    %c0_19 = arith.constant 0 : index
    %c2 = arith.constant 2 : index
    %c0_20 = arith.constant 0 : index
    %c0_21 = arith.constant 0 : index
    %12 = vector.load %arg2[%c0_19, %c2, %c0_20, %c0_21] : memref<1x4x16x256xbf16, #tpu.memory_space<vmem>>, vector<1x1x16x128xbf16>
    %13 = vector.shape_cast %12 : vector<1x1x16x128xbf16> to vector<16x128xbf16>
    %c64 = arith.constant 64 : index
    %c0_22 = arith.constant 0 : index
    %14 = vector.load %arg6[%c64, %c0_22] : memref<256x128xbf16, #tpu.memory_space<vmem>>, vector<16x128xbf16>
    tpu.vector_store %arg6[%c64, %c0_22], %13 {strides = array<i32>} : memref<256x128xbf16, #tpu.memory_space<vmem>>, vector<16x128xbf16>,
    %c0_23 = arith.constant 0 : index
    %c3 = arith.constant 3 : index
    %c0_24 = arith.constant 0 : index
    %c0_25 = arith.constant 0 : index
    %15 = vector.load %arg2[%c0_23, %c3, %c0_24, %c0_25] : memref<1x4x16x256xbf16, #tpu.memory_space<vmem>>, vector<1x1x16x128xbf16>
    %16 = vector.shape_cast %15 : vector<1x1x16x128xbf16> to vector<16x128xbf16>
    %c80 = arith.constant 80 : index
    %c0_26 = arith.constant 0 : index
    %17 = vector.load %arg6[%c80, %c0_26] : memref<256x128xbf16, #tpu.memory_space<vmem>>, vector<16x128xbf16>
    tpu.vector_store %arg6[%c80, %c0_26], %16 {strides = array<i32>} : memref<256x128xbf16, #tpu.memory_space<vmem>>, vector<16x128xbf16>,
    %c0_27 = arith.constant 0 : index
    %c2_28 = arith.constant 2 : index
    %c0_29 = arith.constant 0 : index
    %c1_30 = arith.constant 1 : index
    %18 = vector.load %arg2[%c0_27, %c2_28, %c0_29, %c1_30] : memref<1x4x16x256xbf16, #tpu.memory_space<vmem>>, vector<1x1x16x128xbf16>
    %19 = vector.shape_cast %18 : vector<1x1x16x128xbf16> to vector<16x128xbf16>
    %c96 = arith.constant 96 : index
    %c0_31 = arith.constant 0 : index
    %20 = vector.load %arg6[%c96, %c0_31] : memref<256x128xbf16, #tpu.memory_space<vmem>>, vector<16x128xbf16>
    tpu.vector_store %arg6[%c96, %c0_31], %19 {strides = array<i32>} : memref<256x128xbf16, #tpu.memory_space<vmem>>, vector<16x128xbf16>,
    %c0_32 = arith.constant 0 : index
    %c3_33 = arith.constant 3 : index
    %c0_34 = arith.constant 0 : index
    %c1_35 = arith.constant 1 : index
    %21 = vector.load %arg2[%c0_32, %c3_33, %c0_34, %c1_35] : memref<1x4x16x256xbf16, #tpu.memory_space<vmem>>, vector<1x1x16x128xbf16>
    %22 = vector.shape_cast %21 : vector<1x1x16x128xbf16> to vector<16x128xbf16>
    %c112 = arith.constant 112 : index
    %c0_36 = arith.constant 0 : index
    %23 = vector.load %arg6[%c112, %c0_36] : memref<256x128xbf16, #tpu.memory_space<vmem>>, vector<16x128xbf16>
    tpu.vector_store %arg6[%c112, %c0_36], %22 {strides = array<i32>} : memref<256x128xbf16, #tpu.memory_space<vmem>>, vector<16x128xbf16>,
    %c0_37 = arith.constant 0 : index
    %c0_38 = arith.constant 0 : index
    %c0_39 = arith.constant 0 : index
    %c5 = arith.constant 5 : index
    %24 = vector.load %arg2[%c0_37, %c0_38, %c0_39, %c5] : memref<1x4x16x256xbf16, #tpu.memory_space<vmem>>, vector<1x1x16x128xbf16>
    %25 = vector.shape_cast %24 : vector<1x1x16x128xbf16> to vector<16x128xbf16>
    %c128 = arith.constant 128 : index
    %c0_40 = arith.constant 0 : index
    %26 = vector.load %arg6[%c128, %c0_40] : memref<256x128xbf16, #tpu.memory_space<vmem>>, vector<16x128xbf16>
    tpu.vector_store %arg6[%c128, %c0_40], %25 {strides = array<i32>} : memref<256x128xbf16, #tpu.memory_space<vmem>>, vector<16x128xbf16>,
    %c0_41 = arith.constant 0 : index
    %c1_42 = arith.constant 1 : index
    %c0_43 = arith.constant 0 : index
    %c5_44 = arith.constant 5 : index
    %27 = vector.load %arg2[%c0_41, %c1_42, %c0_43, %c5_44] : memref<1x4x16x256xbf16, #tpu.memory_space<vmem>>, vector<1x1x16x128xbf16>
    %28 = vector.shape_cast %27 : vector<1x1x16x128xbf16> to vector<16x128xbf16>
    %c144 = arith.constant 144 : index
    %c0_45 = arith.constant 0 : index
    %29 = vector.load %arg6[%c144, %c0_45] : memref<256x128xbf16, #tpu.memory_space<vmem>>, vector<16x128xbf16>
    tpu.vector_store %arg6[%c144, %c0_45], %28 {strides = array<i32>} : memref<256x128xbf16, #tpu.memory_space<vmem>>, vector<16x128xbf16>,
    %c0_46 = arith.constant 0 : index
    %c0_47 = arith.constant 0 : index
    %c0_48 = arith.constant 0 : index
    %c6 = arith.constant 6 : index
    %30 = vector.load %arg2[%c0_46, %c0_47, %c0_48, %c6] : memref<1x4x16x256xbf16, #tpu.memory_space<vmem>>, vector<1x1x16x128xbf16>
    %31 = vector.shape_cast %30 : vector<1x1x16x128xbf16> to vector<16x128xbf16>
    %c160 = arith.constant 160 : index
    %c0_49 = arith.constant 0 : index
    %32 = vector.load %arg6[%c160, %c0_49] : memref<256x128xbf16, #tpu.memory_space<vmem>>, vector<16x128xbf16>
    tpu.vector_store %arg6[%c160, %c0_49], %31 {strides = array<i32>} : memref<256x128xbf16, #tpu.memory_space<vmem>>, vector<16x128xbf16>,
    %c0_50 = arith.constant 0 : index
    %c1_51 = arith.constant 1 : index
    %c0_52 = arith.constant 0 : index
    %c6_53 = arith.constant 6 : index
    %33 = vector.load %arg2[%c0_50, %c1_51, %c0_52, %c6_53] : memref<1x4x16x256xbf16, #tpu.memory_space<vmem>>, vector<1x1x16x128xbf16>
    %34 = vector.shape_cast %33 : vector<1x1x16x128xbf16> to vector<16x128xbf16>
    %c176 = arith.constant 176 : index
    %c0_54 = arith.constant 0 : index
    %35 = vector.load %arg6[%c176, %c0_54] : memref<256x128xbf16, #tpu.memory_space<vmem>>, vector<16x128xbf16>
    tpu.vector_store %arg6[%c176, %c0_54], %34 {strides = array<i32>} : memref<256x128xbf16, #tpu.memory_space<vmem>>, vector<16x128xbf16>,
    %c0_55 = arith.constant 0 : index
    %c2_56 = arith.constant 2 : index
    %c0_57 = arith.constant 0 : index
    %c5_58 = arith.constant 5 : index
    %36 = vector.load %arg2[%c0_55, %c2_56, %c0_57, %c5_58] : memref<1x4x16x256xbf16, #tpu.memory_space<vmem>>, vector<1x1x16x128xbf16>
    %37 = vector.shape_cast %36 : vector<1x1x16x128xbf16> to vector<16x128xbf16>
    %c192 = arith.constant 192 : index
    %c0_59 = arith.constant 0 : index
    %38 = vector.load %arg6[%c192, %c0_59] : memref<256x128xbf16, #tpu.memory_space<vmem>>, vector<16x128xbf16>
    tpu.vector_store %arg6[%c192, %c0_59], %37 {strides = array<i32>} : memref<256x128xbf16, #tpu.memory_space<vmem>>, vector<16x128xbf16>,
    %c0_60 = arith.constant 0 : index
    %c3_61 = arith.constant 3 : index
    %c0_62 = arith.constant 0 : index
    %c5_63 = arith.constant 5 : index
    %39 = vector.load %arg2[%c0_60, %c3_61, %c0_62, %c5_63] : memref<1x4x16x256xbf16, #tpu.memory_space<vmem>>, vector<1x1x16x128xbf16>
    %40 = vector.shape_cast %39 : vector<1x1x16x128xbf16> to vector<16x128xbf16>
    %c208 = arith.constant 208 : index
    %c0_64 = arith.constant 0 : index
    %41 = vector.load %arg6[%c208, %c0_64] : memref<256x128xbf16, #tpu.memory_space<vmem>>, vector<16x128xbf16>
    tpu.vector_store %arg6[%c208, %c0_64], %40 {strides = array<i32>} : memref<256x128xbf16, #tpu.memory_space<vmem>>, vector<16x128xbf16>,
    %c0_65 = arith.constant 0 : index
    %c2_66 = arith.constant 2 : index
    %c0_67 = arith.constant 0 : index
    %c6_68 = arith.constant 6 : index
    %42 = vector.load %arg2[%c0_65, %c2_66, %c0_67, %c6_68] : memref<1x4x16x256xbf16, #tpu.memory_space<vmem>>, vector<1x1x16x128xbf16>
    %43 = vector.shape_cast %42 : vector<1x1x16x128xbf16> to vector<16x128xbf16>
    %c224 = arith.constant 224 : index
    %c0_69 = arith.constant 0 : index
    %44 = vector.load %arg6[%c224, %c0_69] : memref<256x128xbf16, #tpu.memory_space<vmem>>, vector<16x128xbf16>
    tpu.vector_store %arg6[%c224, %c0_69], %43 {strides = array<i32>} : memref<256x128xbf16, #tpu.memory_space<vmem>>, vector<16x128xbf16>,
    %c0_70 = arith.constant 0 : index
    %c3_71 = arith.constant 3 : index
    %c0_72 = arith.constant 0 : index
    %c6_73 = arith.constant 6 : index
    %45 = vector.load %arg2[%c0_70, %c3_71, %c0_72, %c6_73] : memref<1x4x16x256xbf16, #tpu.memory_space<vmem>>, vector<1x1x16x128xbf16>
    %46 = vector.shape_cast %45 : vector<1x1x16x128xbf16> to vector<16x128xbf16>
    %c240 = arith.constant 240 : index
    %c0_74 = arith.constant 0 : index
    %47 = vector.load %arg6[%c240, %c0_74] : memref<256x128xbf16, #tpu.memory_space<vmem>>, vector<16x128xbf16>
    tpu.vector_store %arg6[%c240, %c0_74], %46 {strides = array<i32>} : memref<256x128xbf16, #tpu.memory_space<vmem>>, vector<16x128xbf16>,
    %c0_75 = arith.constant 0 : index
    %c0_76 = arith.constant 0 : index
    %48 = vector.load %arg3[%c0_75, %c0_76] : memref<32x256xbf16, #tpu.memory_space<vmem>>, vector<32x256xbf16>
    %c0_77 = arith.constant 0 : index
    %c0_78 = arith.constant 0 : index
    %49 = vector.load %arg6[%c0_77, %c0_78] : memref<256x128xbf16, #tpu.memory_space<vmem>>, vector<256x128xbf16>
    %cst = arith.constant dense<0.000000e+00> : vector<32x128xf32>
    %50 = tpu.matmul %48, %49, %cst {dimension_numbers = #tpu.dot_dimension_numbers<[1], [0], [0], [1], [0, 0, 1, 1], [], []>} : vector<32x256xbf16>, vector<256x128xbf16>, vector<32x128xf32> -> vector<32x128xf32>
    %c0_79 = arith.constant 0 : index
    %c0_80 = arith.constant 0 : index
    %51 = vector.load %arg4[%c0_79, %c0_80] : memref<1x128xf32, #tpu.memory_space<vmem>>, vector<1x128xf32>
    %52 = vector.broadcast %51 : vector<1x128xf32> to vector<32x128xf32>
    %53 = arith.mulf %50, %52 : vector<32x128xf32>
    %cst_81 = arith.constant dense<0.000000e+00> : vector<32xf32>
    %54 = vector.multi_reduction <add>, %53, %cst_81 [1] : vector<32x128xf32> to vector<32xf32>
    %55 = vector.shape_cast %54 : vector<32xf32> to vector<32x1xf32>
    %cst_82 = arith.constant 6.250000e-02 : f32
    %56 = vector.broadcast %cst_82 : f32 to vector<32x1xf32>
    %57 = arith.mulf %55, %56 : vector<32x1xf32>
    %58 = vector.broadcast %57 : vector<32x1xf32> to vector<32x128xf32>
    %59 = arith.subf %50, %58 : vector<32x128xf32>
    %60 = arith.mulf %59, %59 : vector<32x128xf32>
    %61 = vector.broadcast %51 : vector<1x128xf32> to vector<32x128xf32>
    %62 = arith.mulf %60, %61 : vector<32x128xf32>
    %cst_83 = arith.constant dense<0.000000e+00> : vector<32xf32>
    %63 = vector.multi_reduction <add>, %62, %cst_83 [1] : vector<32x128xf32> to vector<32xf32>
    %64 = vector.shape_cast %63 : vector<32xf32> to vector<32x1xf32>
    %cst_84 = arith.constant 6.250000e-02 : f32
    %65 = vector.broadcast %cst_84 : f32 to vector<32x1xf32>
    %66 = arith.mulf %64, %65 : vector<32x1xf32>
    %cst_85 = arith.constant 9.99999974E-6 : f32
    %67 = vector.broadcast %cst_85 : f32 to vector<32x1xf32>
    %68 = arith.addf %66, %67 : vector<32x1xf32>
    %69 = math.rsqrt %68 : vector<32x1xf32>
    %70 = vector.broadcast %69 : vector<32x1xf32> to vector<32x128xf32>
    %71 = arith.mulf %59, %70 : vector<32x128xf32>
    %cst_86 = arith.constant 0.000000e+00 : f32
    %72 = vector.broadcast %cst_86 : f32 to vector<32x128xf32>
    %73 = arith.cmpf ogt, %71, %72 : vector<32x128xf32>
    %cst_87 = arith.constant 2.000000e-01 : f32
    %74 = vector.broadcast %cst_87 : f32 to vector<32x128xf32>
    %75 = arith.mulf %74, %71 : vector<32x128xf32>
    %76 = arith.select %73, %71, %75 : vector<32x128xi1>, vector<32x128xf32>
    %77 = arith.truncf %76 : vector<32x128xf32> to vector<32x128xbf16>
    %c0_88 = arith.constant 0 : index
    %c0_89 = arith.constant 0 : index
    %c0_90 = arith.constant 0 : index
    %78 = vector.load %arg5[%c0_88, %c0_89, %c0_90] : memref<1x32x128xbf16, #tpu.memory_space<vmem>>, vector<1x32x128xbf16>
    %79 = vector.shape_cast %78 : vector<1x32x128xbf16> to vector<32x128xbf16>
    %80 = vector.shape_cast %77 : vector<32x128xbf16> to vector<1x32x128xbf16>
    tpu.vector_store %arg5[%c0_88, %c0_89, %c0_90], %80 {strides = array<i32>} : memref<1x32x128xbf16, #tpu.memory_space<vmem>>, vector<1x32x128xbf16>,
    return
  }
  func.func @transform_0(%arg0: i32, %arg1: i32) -> (i32, i32, i32, i32) {
    %c0_i32 = arith.constant 0 : i32
    %c0_i32_0 = arith.constant 0 : i32
    %c0_i32_1 = arith.constant 0 : i32
    %c0_i32_2 = arith.constant 0 : i32
    return %arg0, %c0_i32, %c0_i32_0, %c0_i32_1 : i32, i32, i32, i32
  }
  func.func @transform_1(%arg0: i32, %arg1: i32) -> (i32, i32) {
    %c0_i32 = arith.constant 0 : i32
    %c0_i32_0 = arith.constant 0 : i32
    return %arg1, %c0_i32 : i32, i32
  }
  func.func @transform_2(%arg0: i32, %arg1: i32) -> (i32, i32) {
    %c0_i32 = arith.constant 0 : i32
    %c0_i32_0 = arith.constant 0 : i32
    %c0_i32_1 = arith.constant 0 : i32
    return %c0_i32, %c0_i32_0 : i32, i32
  }
  func.func @transform_3(%arg0: i32, %arg1: i32) -> (i32, i32, i32) {
    %c0_i32 = arith.constant 0 : i32
    %c0_i32_0 = arith.constant 0 : i32
    return %arg0, %arg1, %c0_i32 : i32, i32, i32
  }
}

module attributes {stable_mosaic.version = 11 : i64} {
  func.func @_conv_in_lrelu_kernel(%arg0: i32, %arg1: i32, %arg2: memref<1x1x32x256xbf16, #tpu.memory_space<vmem>>, %arg3: memref<64x512xbf16, #tpu.memory_space<vmem>>, %arg4: memref<1x128xf32, #tpu.memory_space<vmem>>, %arg5: memref<1x64x128xbf16, #tpu.memory_space<vmem>>, %arg6: memref<512x128xbf16, #tpu.memory_space<vmem>>) attributes {dimension_semantics = [#tpu.dimension_semantics<parallel>, #tpu.dimension_semantics<parallel>], iteration_bounds = array<i64: 2, 1>, scalar_prefetch = 0 : i64, scratch_operands = 1 : i64, tpu.core_type = #tpu.core_type<tc>, window_params = [{transform_indices = @transform_0, window_bounds = array<i64: 1, 1, 32, 256>}, {transform_indices = @transform_1, window_bounds = array<i64: 64, 512>}, {pipeline_mode = #tpu.pipeline_mode<synchronous>, transform_indices = @transform_2, window_bounds = array<i64: 1, 128>}, {transform_indices = @transform_3, window_bounds = array<i64: 1, 64, 128>}]} {
    %c0 = arith.constant 0 : index
    %c0_0 = arith.constant 0 : index
    %c0_1 = arith.constant 0 : index
    %c0_2 = arith.constant 0 : index
    %0 = vector.load %arg2[%c0, %c0_0, %c0_1, %c0_2] : memref<1x1x32x256xbf16, #tpu.memory_space<vmem>>, vector<1x1x32x128xbf16>
    %1 = vector.shape_cast %0 : vector<1x1x32x128xbf16> to vector<32x128xbf16>
    %c0_3 = arith.constant 0 : index
    %c0_4 = arith.constant 0 : index
    %2 = vector.load %arg6[%c0_3, %c0_4] : memref<512x128xbf16, #tpu.memory_space<vmem>>, vector<32x128xbf16>
    tpu.vector_store %arg6[%c0_3, %c0_4], %1 {strides = array<i32>} : memref<512x128xbf16, #tpu.memory_space<vmem>>, vector<32x128xbf16>,
    %c0_5 = arith.constant 0 : index
    %c0_6 = arith.constant 0 : index
    %c0_7 = arith.constant 0 : index
    %c1 = arith.constant 1 : index
    %3 = vector.load %arg2[%c0_5, %c0_6, %c0_7, %c1] : memref<1x1x32x256xbf16, #tpu.memory_space<vmem>>, vector<1x1x32x128xbf16>
    %4 = vector.shape_cast %3 : vector<1x1x32x128xbf16> to vector<32x128xbf16>
    %c32 = arith.constant 32 : index
    %c0_8 = arith.constant 0 : index
    %5 = vector.load %arg6[%c32, %c0_8] : memref<512x128xbf16, #tpu.memory_space<vmem>>, vector<32x128xbf16>
    tpu.vector_store %arg6[%c32, %c0_8], %4 {strides = array<i32>} : memref<512x128xbf16, #tpu.memory_space<vmem>>, vector<32x128xbf16>,
    %c0_9 = arith.constant 0 : index
    %c0_10 = arith.constant 0 : index
    %c0_11 = arith.constant 0 : index
    %c2 = arith.constant 2 : index
    %6 = vector.load %arg2[%c0_9, %c0_10, %c0_11, %c2] : memref<1x1x32x256xbf16, #tpu.memory_space<vmem>>, vector<1x1x32x128xbf16>
    %7 = vector.shape_cast %6 : vector<1x1x32x128xbf16> to vector<32x128xbf16>
    %c64 = arith.constant 64 : index
    %c0_12 = arith.constant 0 : index
    %8 = vector.load %arg6[%c64, %c0_12] : memref<512x128xbf16, #tpu.memory_space<vmem>>, vector<32x128xbf16>
    tpu.vector_store %arg6[%c64, %c0_12], %7 {strides = array<i32>} : memref<512x128xbf16, #tpu.memory_space<vmem>>, vector<32x128xbf16>,
    %c0_13 = arith.constant 0 : index
    %c0_14 = arith.constant 0 : index
    %c0_15 = arith.constant 0 : index
    %c3 = arith.constant 3 : index
    %9 = vector.load %arg2[%c0_13, %c0_14, %c0_15, %c3] : memref<1x1x32x256xbf16, #tpu.memory_space<vmem>>, vector<1x1x32x128xbf16>
    %10 = vector.shape_cast %9 : vector<1x1x32x128xbf16> to vector<32x128xbf16>
    %c96 = arith.constant 96 : index
    %c0_16 = arith.constant 0 : index
    %11 = vector.load %arg6[%c96, %c0_16] : memref<512x128xbf16, #tpu.memory_space<vmem>>, vector<32x128xbf16>
    tpu.vector_store %arg6[%c96, %c0_16], %10 {strides = array<i32>} : memref<512x128xbf16, #tpu.memory_space<vmem>>, vector<32x128xbf16>,
    %c0_17 = arith.constant 0 : index
    %c0_18 = arith.constant 0 : index
    %c0_19 = arith.constant 0 : index
    %c6 = arith.constant 6 : index
    %12 = vector.load %arg2[%c0_17, %c0_18, %c0_19, %c6] : memref<1x1x32x256xbf16, #tpu.memory_space<vmem>>, vector<1x1x32x128xbf16>
    %13 = vector.shape_cast %12 : vector<1x1x32x128xbf16> to vector<32x128xbf16>
    %c128 = arith.constant 128 : index
    %c0_20 = arith.constant 0 : index
    %14 = vector.load %arg6[%c128, %c0_20] : memref<512x128xbf16, #tpu.memory_space<vmem>>, vector<32x128xbf16>
    tpu.vector_store %arg6[%c128, %c0_20], %13 {strides = array<i32>} : memref<512x128xbf16, #tpu.memory_space<vmem>>, vector<32x128xbf16>,
    %c0_21 = arith.constant 0 : index
    %c0_22 = arith.constant 0 : index
    %c0_23 = arith.constant 0 : index
    %c7 = arith.constant 7 : index
    %15 = vector.load %arg2[%c0_21, %c0_22, %c0_23, %c7] : memref<1x1x32x256xbf16, #tpu.memory_space<vmem>>, vector<1x1x32x128xbf16>
    %16 = vector.shape_cast %15 : vector<1x1x32x128xbf16> to vector<32x128xbf16>
    %c160 = arith.constant 160 : index
    %c0_24 = arith.constant 0 : index
    %17 = vector.load %arg6[%c160, %c0_24] : memref<512x128xbf16, #tpu.memory_space<vmem>>, vector<32x128xbf16>
    tpu.vector_store %arg6[%c160, %c0_24], %16 {strides = array<i32>} : memref<512x128xbf16, #tpu.memory_space<vmem>>, vector<32x128xbf16>,
    %c0_25 = arith.constant 0 : index
    %c0_26 = arith.constant 0 : index
    %c0_27 = arith.constant 0 : index
    %c8 = arith.constant 8 : index
    %18 = vector.load %arg2[%c0_25, %c0_26, %c0_27, %c8] : memref<1x1x32x256xbf16, #tpu.memory_space<vmem>>, vector<1x1x32x128xbf16>
    %19 = vector.shape_cast %18 : vector<1x1x32x128xbf16> to vector<32x128xbf16>
    %c192 = arith.constant 192 : index
    %c0_28 = arith.constant 0 : index
    %20 = vector.load %arg6[%c192, %c0_28] : memref<512x128xbf16, #tpu.memory_space<vmem>>, vector<32x128xbf16>
    tpu.vector_store %arg6[%c192, %c0_28], %19 {strides = array<i32>} : memref<512x128xbf16, #tpu.memory_space<vmem>>, vector<32x128xbf16>,
    %c0_29 = arith.constant 0 : index
    %c0_30 = arith.constant 0 : index
    %c0_31 = arith.constant 0 : index
    %c9 = arith.constant 9 : index
    %21 = vector.load %arg2[%c0_29, %c0_30, %c0_31, %c9] : memref<1x1x32x256xbf16, #tpu.memory_space<vmem>>, vector<1x1x32x128xbf16>
    %22 = vector.shape_cast %21 : vector<1x1x32x128xbf16> to vector<32x128xbf16>
    %c224 = arith.constant 224 : index
    %c0_32 = arith.constant 0 : index
    %23 = vector.load %arg6[%c224, %c0_32] : memref<512x128xbf16, #tpu.memory_space<vmem>>, vector<32x128xbf16>
    tpu.vector_store %arg6[%c224, %c0_32], %22 {strides = array<i32>} : memref<512x128xbf16, #tpu.memory_space<vmem>>, vector<32x128xbf16>,
    %c0_33 = arith.constant 0 : index
    %c0_34 = arith.constant 0 : index
    %c0_35 = arith.constant 0 : index
    %c12 = arith.constant 12 : index
    %24 = vector.load %arg2[%c0_33, %c0_34, %c0_35, %c12] : memref<1x1x32x256xbf16, #tpu.memory_space<vmem>>, vector<1x1x32x128xbf16>
    %25 = vector.shape_cast %24 : vector<1x1x32x128xbf16> to vector<32x128xbf16>
    %c256 = arith.constant 256 : index
    %c0_36 = arith.constant 0 : index
    %26 = vector.load %arg6[%c256, %c0_36] : memref<512x128xbf16, #tpu.memory_space<vmem>>, vector<32x128xbf16>
    tpu.vector_store %arg6[%c256, %c0_36], %25 {strides = array<i32>} : memref<512x128xbf16, #tpu.memory_space<vmem>>, vector<32x128xbf16>,
    %c0_37 = arith.constant 0 : index
    %c0_38 = arith.constant 0 : index
    %c0_39 = arith.constant 0 : index
    %c13 = arith.constant 13 : index
    %27 = vector.load %arg2[%c0_37, %c0_38, %c0_39, %c13] : memref<1x1x32x256xbf16, #tpu.memory_space<vmem>>, vector<1x1x32x128xbf16>
    %28 = vector.shape_cast %27 : vector<1x1x32x128xbf16> to vector<32x128xbf16>
    %c288 = arith.constant 288 : index
    %c0_40 = arith.constant 0 : index
    %29 = vector.load %arg6[%c288, %c0_40] : memref<512x128xbf16, #tpu.memory_space<vmem>>, vector<32x128xbf16>
    tpu.vector_store %arg6[%c288, %c0_40], %28 {strides = array<i32>} : memref<512x128xbf16, #tpu.memory_space<vmem>>, vector<32x128xbf16>,
    %c0_41 = arith.constant 0 : index
    %c0_42 = arith.constant 0 : index
    %c0_43 = arith.constant 0 : index
    %c14 = arith.constant 14 : index
    %30 = vector.load %arg2[%c0_41, %c0_42, %c0_43, %c14] : memref<1x1x32x256xbf16, #tpu.memory_space<vmem>>, vector<1x1x32x128xbf16>
    %31 = vector.shape_cast %30 : vector<1x1x32x128xbf16> to vector<32x128xbf16>
    %c320 = arith.constant 320 : index
    %c0_44 = arith.constant 0 : index
    %32 = vector.load %arg6[%c320, %c0_44] : memref<512x128xbf16, #tpu.memory_space<vmem>>, vector<32x128xbf16>
    tpu.vector_store %arg6[%c320, %c0_44], %31 {strides = array<i32>} : memref<512x128xbf16, #tpu.memory_space<vmem>>, vector<32x128xbf16>,
    %c0_45 = arith.constant 0 : index
    %c0_46 = arith.constant 0 : index
    %c0_47 = arith.constant 0 : index
    %c15 = arith.constant 15 : index
    %33 = vector.load %arg2[%c0_45, %c0_46, %c0_47, %c15] : memref<1x1x32x256xbf16, #tpu.memory_space<vmem>>, vector<1x1x32x128xbf16>
    %34 = vector.shape_cast %33 : vector<1x1x32x128xbf16> to vector<32x128xbf16>
    %c352 = arith.constant 352 : index
    %c0_48 = arith.constant 0 : index
    %35 = vector.load %arg6[%c352, %c0_48] : memref<512x128xbf16, #tpu.memory_space<vmem>>, vector<32x128xbf16>
    tpu.vector_store %arg6[%c352, %c0_48], %34 {strides = array<i32>} : memref<512x128xbf16, #tpu.memory_space<vmem>>, vector<32x128xbf16>,
    %c0_49 = arith.constant 0 : index
    %c0_50 = arith.constant 0 : index
    %c0_51 = arith.constant 0 : index
    %c18 = arith.constant 18 : index
    %36 = vector.load %arg2[%c0_49, %c0_50, %c0_51, %c18] : memref<1x1x32x256xbf16, #tpu.memory_space<vmem>>, vector<1x1x32x128xbf16>
    %37 = vector.shape_cast %36 : vector<1x1x32x128xbf16> to vector<32x128xbf16>
    %c384 = arith.constant 384 : index
    %c0_52 = arith.constant 0 : index
    %38 = vector.load %arg6[%c384, %c0_52] : memref<512x128xbf16, #tpu.memory_space<vmem>>, vector<32x128xbf16>
    tpu.vector_store %arg6[%c384, %c0_52], %37 {strides = array<i32>} : memref<512x128xbf16, #tpu.memory_space<vmem>>, vector<32x128xbf16>,
    %c0_53 = arith.constant 0 : index
    %c0_54 = arith.constant 0 : index
    %c0_55 = arith.constant 0 : index
    %c19 = arith.constant 19 : index
    %39 = vector.load %arg2[%c0_53, %c0_54, %c0_55, %c19] : memref<1x1x32x256xbf16, #tpu.memory_space<vmem>>, vector<1x1x32x128xbf16>
    %40 = vector.shape_cast %39 : vector<1x1x32x128xbf16> to vector<32x128xbf16>
    %c416 = arith.constant 416 : index
    %c0_56 = arith.constant 0 : index
    %41 = vector.load %arg6[%c416, %c0_56] : memref<512x128xbf16, #tpu.memory_space<vmem>>, vector<32x128xbf16>
    tpu.vector_store %arg6[%c416, %c0_56], %40 {strides = array<i32>} : memref<512x128xbf16, #tpu.memory_space<vmem>>, vector<32x128xbf16>,
    %c0_57 = arith.constant 0 : index
    %c0_58 = arith.constant 0 : index
    %c0_59 = arith.constant 0 : index
    %c20 = arith.constant 20 : index
    %42 = vector.load %arg2[%c0_57, %c0_58, %c0_59, %c20] : memref<1x1x32x256xbf16, #tpu.memory_space<vmem>>, vector<1x1x32x128xbf16>
    %43 = vector.shape_cast %42 : vector<1x1x32x128xbf16> to vector<32x128xbf16>
    %c448 = arith.constant 448 : index
    %c0_60 = arith.constant 0 : index
    %44 = vector.load %arg6[%c448, %c0_60] : memref<512x128xbf16, #tpu.memory_space<vmem>>, vector<32x128xbf16>
    tpu.vector_store %arg6[%c448, %c0_60], %43 {strides = array<i32>} : memref<512x128xbf16, #tpu.memory_space<vmem>>, vector<32x128xbf16>,
    %c0_61 = arith.constant 0 : index
    %c0_62 = arith.constant 0 : index
    %c0_63 = arith.constant 0 : index
    %c21 = arith.constant 21 : index
    %45 = vector.load %arg2[%c0_61, %c0_62, %c0_63, %c21] : memref<1x1x32x256xbf16, #tpu.memory_space<vmem>>, vector<1x1x32x128xbf16>
    %46 = vector.shape_cast %45 : vector<1x1x32x128xbf16> to vector<32x128xbf16>
    %c480 = arith.constant 480 : index
    %c0_64 = arith.constant 0 : index
    %47 = vector.load %arg6[%c480, %c0_64] : memref<512x128xbf16, #tpu.memory_space<vmem>>, vector<32x128xbf16>
    tpu.vector_store %arg6[%c480, %c0_64], %46 {strides = array<i32>} : memref<512x128xbf16, #tpu.memory_space<vmem>>, vector<32x128xbf16>,
    %c0_65 = arith.constant 0 : index
    %c0_66 = arith.constant 0 : index
    %48 = vector.load %arg3[%c0_65, %c0_66] : memref<64x512xbf16, #tpu.memory_space<vmem>>, vector<64x512xbf16>
    %c0_67 = arith.constant 0 : index
    %c0_68 = arith.constant 0 : index
    %49 = vector.load %arg6[%c0_67, %c0_68] : memref<512x128xbf16, #tpu.memory_space<vmem>>, vector<512x128xbf16>
    %cst = arith.constant dense<0.000000e+00> : vector<64x128xf32>
    %50 = tpu.matmul %48, %49, %cst {dimension_numbers = #tpu.dot_dimension_numbers<[1], [0], [0], [1], [0, 0, 1, 1], [], []>} : vector<64x512xbf16>, vector<512x128xbf16>, vector<64x128xf32> -> vector<64x128xf32>
    %c0_69 = arith.constant 0 : index
    %c0_70 = arith.constant 0 : index
    %51 = vector.load %arg4[%c0_69, %c0_70] : memref<1x128xf32, #tpu.memory_space<vmem>>, vector<1x128xf32>
    %52 = vector.broadcast %51 : vector<1x128xf32> to vector<64x128xf32>
    %53 = arith.mulf %50, %52 : vector<64x128xf32>
    %cst_71 = arith.constant dense<0.000000e+00> : vector<64xf32>
    %54 = vector.multi_reduction <add>, %53, %cst_71 [1] : vector<64x128xf32> to vector<64xf32>
    %55 = vector.shape_cast %54 : vector<64xf32> to vector<64x1xf32>
    %cst_72 = arith.constant 0.111111112 : f32
    %56 = vector.broadcast %cst_72 : f32 to vector<64x1xf32>
    %57 = arith.mulf %55, %56 : vector<64x1xf32>
    %58 = vector.broadcast %57 : vector<64x1xf32> to vector<64x128xf32>
    %59 = arith.subf %50, %58 : vector<64x128xf32>
    %60 = arith.mulf %59, %59 : vector<64x128xf32>
    %61 = vector.broadcast %51 : vector<1x128xf32> to vector<64x128xf32>
    %62 = arith.mulf %60, %61 : vector<64x128xf32>
    %cst_73 = arith.constant dense<0.000000e+00> : vector<64xf32>
    %63 = vector.multi_reduction <add>, %62, %cst_73 [1] : vector<64x128xf32> to vector<64xf32>
    %64 = vector.shape_cast %63 : vector<64xf32> to vector<64x1xf32>
    %cst_74 = arith.constant 0.111111112 : f32
    %65 = vector.broadcast %cst_74 : f32 to vector<64x1xf32>
    %66 = arith.mulf %64, %65 : vector<64x1xf32>
    %cst_75 = arith.constant 9.99999974E-6 : f32
    %67 = vector.broadcast %cst_75 : f32 to vector<64x1xf32>
    %68 = arith.addf %66, %67 : vector<64x1xf32>
    %69 = math.rsqrt %68 : vector<64x1xf32>
    %70 = vector.broadcast %69 : vector<64x1xf32> to vector<64x128xf32>
    %71 = arith.mulf %59, %70 : vector<64x128xf32>
    %cst_76 = arith.constant 0.000000e+00 : f32
    %72 = vector.broadcast %cst_76 : f32 to vector<64x128xf32>
    %73 = arith.cmpf ogt, %71, %72 : vector<64x128xf32>
    %cst_77 = arith.constant 2.000000e-01 : f32
    %74 = vector.broadcast %cst_77 : f32 to vector<64x128xf32>
    %75 = arith.mulf %74, %71 : vector<64x128xf32>
    %76 = arith.select %73, %71, %75 : vector<64x128xi1>, vector<64x128xf32>
    %77 = arith.truncf %76 : vector<64x128xf32> to vector<64x128xbf16>
    %c0_78 = arith.constant 0 : index
    %c0_79 = arith.constant 0 : index
    %c0_80 = arith.constant 0 : index
    %78 = vector.load %arg5[%c0_78, %c0_79, %c0_80] : memref<1x64x128xbf16, #tpu.memory_space<vmem>>, vector<1x64x128xbf16>
    %79 = vector.shape_cast %78 : vector<1x64x128xbf16> to vector<64x128xbf16>
    %80 = vector.shape_cast %77 : vector<64x128xbf16> to vector<1x64x128xbf16>
    tpu.vector_store %arg5[%c0_78, %c0_79, %c0_80], %80 {strides = array<i32>} : memref<1x64x128xbf16, #tpu.memory_space<vmem>>, vector<1x64x128xbf16>,
    return
  }
  func.func @transform_0(%arg0: i32, %arg1: i32) -> (i32, i32, i32, i32) {
    %c0_i32 = arith.constant 0 : i32
    %c0_i32_0 = arith.constant 0 : i32
    %c0_i32_1 = arith.constant 0 : i32
    %c0_i32_2 = arith.constant 0 : i32
    return %arg0, %c0_i32, %c0_i32_0, %c0_i32_1 : i32, i32, i32, i32
  }
  func.func @transform_1(%arg0: i32, %arg1: i32) -> (i32, i32) {
    %c0_i32 = arith.constant 0 : i32
    %c0_i32_0 = arith.constant 0 : i32
    return %arg1, %c0_i32 : i32, i32
  }
  func.func @transform_2(%arg0: i32, %arg1: i32) -> (i32, i32) {
    %c0_i32 = arith.constant 0 : i32
    %c0_i32_0 = arith.constant 0 : i32
    %c0_i32_1 = arith.constant 0 : i32
    return %c0_i32, %c0_i32_0 : i32, i32
  }
  func.func @transform_3(%arg0: i32, %arg1: i32) -> (i32, i32, i32) {
    %c0_i32 = arith.constant 0 : i32
    %c0_i32_0 = arith.constant 0 : i32
    return %arg0, %arg1, %c0_i32 : i32, i32, i32
  }
}

</mosaic_0001>

<llo_original>
// kernel: _lambda_.4
$region0: #{_lambda_.4}
  #allocation0 [shape = 'u32[]', space=smem, size = 0x4, offset = 0x4, fixed_abs, tag = 'smem constant byte address 0x4 - core index']
  #allocation1 [shape = 'u32[144,128]{1,0:T(1,128)}', space=vmem, size = 0x12000, scoped, tag = 'internal scratch']
  #allocation2 [shape = 'bf16[256,384]{1,0:T(16,128)(2,1)}', space=vmem, size = 0x30000, scoped, tag = 'scratch operand']
  %s0 = inlined_call_operand.vmem [shape: bf16[2,4,16,512], index: 0, kind: input, shape index: {}]
  %s1 = inlined_call_operand.vmem [shape: bf16[8,256], index: 1, kind: input, shape index: {}]
  %s2 = inlined_call_operand.vmem [shape: f32[8,1], index: 2, kind: input, shape index: {}]
  %s3 = inlined_call_operand.vmem [shape: bf16[2,8,384], index: 3, kind: output, shape index: {}]
  %s4 = sld [smem:[#allocation0]]
  $region45: #{_lambda_.4} parent=0
    _
  %s6 = ssub.s32 1, %s4
  %s7 = scalar_select 0, %s6, %s4
  loop: start=0, step=1, limit=4
  $region2: #{_lambda_.4} parent=0 // loop_pre_header
    _
  $region3: #{_lambda_.4} parent=0 // loop_header
    %s9 = sphi 0, %s13
    %p10 = scmp.ge.s32.totalorder %s9, 4
    %s16 = sphi 0, %s28
    %s17 = sphi 0, %s24
    %s18 = sphi 0, %s16
    %s19 = sphi 0, %s17
    %s20 = sphi 0, %s18
    %s21 = sphi 0, %s19
    %s31 = sphi 0, %s33
    %s34 = sphi 0, %s31
    %s35 = sphi 0, %s34
    %s51 = sphi 0, %s35
    %s57 = sphi 0, %s59
    %s60 = sphi 0, %s57
    %s61 = sphi 0, %s60
    %s77 = sphi 0, %s61
    %s83 = sphi 0, %s85
    %s86 = sphi 0, %s83
    %s87 = sphi 0, %s86
    %s103 = sphi 0, %s87
    %s111 = sphi 0, %s113
    %s114 = sphi 0, %s111
    %s115 = sphi 0, %s114
    %s131 = sphi 0, %s115
  $region4: #{_lambda_.4} parent=0 // loop_header_branch
    %12 = sbr.rel (%p10) target = $region8
  $region5: #{_lambda_.4} parent=0 // loop_body
    %s14 = ssub.s32 %s9, 1
    %s15 = ssub.s32 %s9, 2
    %s22 = sadd.s32 1, %s17
    %p23 = scmp.ge.s32.totalorder %s22, 1
    %s24 = scalar_select %p23, 0, %s22
    %s25 = sadd.s32 1, %s16
    %s26 = scalar_select %p23, %s25, %s16
    %p27 = scmp.ge.s32.totalorder %s26, 2
    %s28 = scalar_select %p27, 0, %s26
    %s29 = ssub.s32 %s16, %s28
    %p30 = scmp.eq.s32.totalorder %s29, 0
    %s32 = sadd.s32 %s31, 1
    %s33 = scalar_select %p30, %s31, %s32
    %p36 = pneg %p30
    %p37 = scmp.eq.s32.totalorder %s9, 1
    %p38 = por %p36, %p37
    %p39 = scmp.ne.s32.totalorder %s31, %s34
    %p40 = scmp.eq.s32.totalorder %s9, 0
    %p41 = por %p39, %p40
    %p42 = scmp.ne.s32.totalorder %s31, %s34
    %p43 = scmp.eq.s32.totalorder %s14, 1
    %p44 = por %p42, %p43
    %p45 = scmp.ne.s32.totalorder %s34, %s35
    %p46 = scmp.eq.s32.totalorder %s14, 0
    %p47 = por %p45, %p46
    %p48 = scmp.ne.s32.totalorder %s34, %s35
    %p49 = scmp.eq.s32.totalorder %s15, 1
    %p50 = por %p48, %p49
    %p52 = scmp.ne.s32.totalorder %s35, %s51
    %p53 = scmp.eq.s32.totalorder %s15, 0
    %p54 = por %p52, %p53
    %s55 = ssub.s32 %s17, %s24
    %p56 = scmp.eq.s32.totalorder %s55, 0
    %s58 = sadd.s32 %s57, 1
    %s59 = scalar_select %p56, %s57, %s58
    %p62 = pneg %p56
    %p63 = scmp.eq.s32.totalorder %s9, 1
    %p64 = por %p62, %p63
    %p65 = scmp.ne.s32.totalorder %s57, %s60
    %p66 = scmp.eq.s32.totalorder %s9, 0
    %p67 = por %p65, %p66
    %p68 = scmp.ne.s32.totalorder %s57, %s60
    %p69 = scmp.eq.s32.totalorder %s14, 1
    %p70 = por %p68, %p69
    %p71 = scmp.ne.s32.totalorder %s60, %s61
    %p72 = scmp.eq.s32.totalorder %s14, 0
    %p73 = por %p71, %p72
    %p74 = scmp.ne.s32.totalorder %s60, %s61
    %p75 = scmp.eq.s32.totalorder %s15, 1
    %p76 = por %p74, %p75
    %p78 = scmp.ne.s32.totalorder %s61, %s77
    %p79 = scmp.eq.s32.totalorder %s15, 0
    %p80 = por %p78, %p79
    %s81 = ssub.s32 %s17, %s24
    %p82 = scmp.eq.s32.totalorder %s81, 0
    %s84 = sadd.s32 %s83, 1
    %s85 = scalar_select %p82, %s83, %s84
    %p88 = pneg %p82
    %p89 = scmp.eq.s32.totalorder %s9, 1
    %p90 = por %p88, %p89
    %p91 = scmp.ne.s32.totalorder %s83, %s86
    %p92 = scmp.eq.s32.totalorder %s9, 0
    %p93 = por %p91, %p92
    %p94 = scmp.ne.s32.totalorder %s83, %s86
    %p95 = scmp.eq.s32.totalorder %s14, 1
    %p96 = por %p94, %p95
    %p97 = scmp.ne.s32.totalorder %s86, %s87
    %p98 = scmp.eq.s32.totalorder %s14, 0
    %p99 = por %p97, %p98
    %p100 = scmp.ne.s32.totalorder %s86, %s87
    %p101 = scmp.eq.s32.totalorder %s15, 1
    %p102 = por %p100, %p101
    %p104 = scmp.ne.s32.totalorder %s87, %s103
    %p105 = scmp.eq.s32.totalorder %s15, 0
    %p106 = por %p104, %p105
    %s107 = ssub.s32 %s16, %s28
    %s108 = ssub.s32 %s17, %s24
    %s109 = sor.u32 %s107, %s108
    %p110 = scmp.eq.s32.totalorder %s109, 0
    %s112 = sadd.s32 %s111, 1
    %s113 = scalar_select %p110, %s111, %s112
    %p116 = pneg %p110
    %p117 = scmp.eq.s32.totalorder %s9, 1
    %p118 = por %p116, %p117
    %p119 = scmp.ne.s32.totalorder %s111, %s114
    %p120 = scmp.eq.s32.totalorder %s9, 0
    %p121 = por %p119, %p120
    %p122 = scmp.ne.s32.totalorder %s111, %s114
    %p123 = scmp.eq.s32.totalorder %s14, 1
    %p124 = por %p122, %p123
    %p125 = scmp.ne.s32.totalorder %s114, %s115
    %p126 = scmp.eq.s32.totalorder %s14, 0
    %p127 = por %p125, %p126
    %p128 = scmp.ne.s32.totalorder %s114, %s115
    %p129 = scmp.eq.s32.totalorder %s15, 1
    %p130 = por %p128, %p129
    %p132 = scmp.ne.s32.totalorder %s115, %s131
    %p133 = scmp.eq.s32.totalorder %s15, 0
    %p134 = por %p132, %p133
    %p135 = scmp.le.s32.totalorder 1, %s9
    %p136 = scmp.lt.s32.totalorder %s9, 3
    %p137 = pnand %p135, %p136
    %p138 = pneg %p137
    // Predicated region
    $region9: #{_lambda_.4} parent=5 // pred_check
      _
    $region10: #{_lambda_.4} parent=5 // pred_check_branch
      %140 = sbr.rel (%p137) target = $region12
    $region11: #{_lambda_.4} parent=5 // pred_region
      %s141 = ssub.s32 %s9, 1
      // Predicated region
      $region13: #{_lambda_.4} parent=11 // pred_check
        %p142 = pneg %p73
      $region14: #{_lambda_.4} parent=11 // pred_check_branch
        %144 = sbr.rel (%p142) target = $region16
      $region15: #{_lambda_.4} parent=11 // pred_region
        %p145 = scmp.lt.s32.totalorder %s19, 0
        %s146 = scalar_select %p145, %s19, 0
        %s147 = smul.addr %s146, 2
        %s148 = smul.addr %s147, 4
        %s149 = scalar_lea.vmem %s1, %s148
      $region16: #{_lambda_.4} parent=11 // pred_fallthru
        _
      // Predicated region
      $region17: #{_lambda_.4} parent=11 // pred_check
        %p150 = pneg %p99
      $region18: #{_lambda_.4} parent=11 // pred_check_branch
        %152 = sbr.rel (%p150) target = $region20
      $region19: #{_lambda_.4} parent=11 // pred_region
        %p153 = scmp.lt.s32.totalorder %s19, 0
        %s154 = scalar_select %p153, %s19, 0
        %s155 = smul.addr %s154, 8
        %s156 = scalar_lea.vmem %s2, %s155
      $region20: #{_lambda_.4} parent=11 // pred_fallthru
        _
    $region12: #{_lambda_.4} parent=5 // pred_fallthru
      _
    %p157 = scmp.lt.s32.totalorder %s9, 2
    // Predicated region
    $region21: #{_lambda_.4} parent=5 // pred_check
      %p158 = pneg %p157
    $region22: #{_lambda_.4} parent=5 // pred_check_branch
      %160 = sbr.rel (%p158) target = $region24
    $region23: #{_lambda_.4} parent=5 // pred_region
      // Predicated region
      $region25: #{_lambda_.4} parent=23 // pred_check
        %p161 = pneg %p41
      $region26: #{_lambda_.4} parent=23 // pred_check_branch
        %163 = sbr.rel (%p161) target = $region28
      $region27: #{_lambda_.4} parent=23 // pred_region
        %p164 = scmp.lt.s32.totalorder %s16, 1
        %s165 = scalar_select %p164, %s16, 1
        %s166 = smul.addr %s165, 32
        %s167 = smul.addr %s166, 4
        %s168 = scalar_lea.vmem %s0, %s167
      $region28: #{_lambda_.4} parent=23 // pred_fallthru
        _
    $region24: #{_lambda_.4} parent=5 // pred_fallthru
      _
    %p169 = scmp.le.s32.totalorder 1, %s9
    %p170 = scmp.lt.s32.totalorder %s9, 3
    %p171 = pnand %p169, %p170
    %p172 = pneg %p171
    // Predicated region
    $region29: #{_lambda_.4} parent=5 // pred_check
      _
    $region30: #{_lambda_.4} parent=5 // pred_check_branch
      %174 = sbr.rel (%p171) target = $region32
    $region31: #{_lambda_.4} parent=5 // pred_region
      %s175 = ssub.s32 %s9, 1
      %p176 = scmp.lt.s32.totalorder %s18, 1
      %s177 = scalar_select %p176, %s18, 1
      %s178 = smul.addr %s177, 32
      %s179 = smul.addr %s178, 4
      %s180 = scalar_lea.vmem %s0, %s179
      %p181 = pneg %p47
      %p182 = pneg %p44
      %p183 = scmp.lt.s32.totalorder %s19, 0
      %s184 = scalar_select %p183, %s19, 0
      %s185 = smul.addr %s184, 2
      %s186 = smul.addr %s185, 4
      %s187 = scalar_lea.vmem %s1, %s186
      %p188 = pneg %p73
      %p189 = pneg %p70
      %p190 = scmp.lt.s32.totalorder %s19, 0
      %s191 = scalar_select %p190, %s19, 0
      %s192 = smul.addr %s191, 8
      %s193 = scalar_lea.vmem %s2, %s192
      %p194 = pneg %p99
      %p195 = pneg %p96
      %p196 = pneg %p127
      %p197 = pneg %p124
      %p198 = scmp.lt.s32.totalorder %s18, 1
      %s199 = scalar_select %p198, %s18, 1
      %p200 = scmp.lt.s32.totalorder %s19, 0
      %s201 = scalar_select %p200, %s19, 0
      %s202 = smul.addr %s201, 3
      %s203 = smul.addr %s199, 3
      %s204 = sadd.s32 %s202, %s203
      %s205 = smul.addr %s204, 4
      %s206 = scalar_lea.vmem %s3, %s205
      %p207 = scmp.lt.s32.totalorder %s18, 1
      %s208 = scalar_select %p207, %s18, 1
      %s209 = smul.addr %s208, 32
      %s210 = smul.addr %s209, 4
      %s211 = scalar_lea.vmem %s0, %s210
      %p212 = scmp.lt.s32.totalorder %s19, 0
      %s213 = scalar_select %p212, %s19, 0
      %s214 = smul.addr %s213, 2
      %s215 = smul.addr %s214, 4
      %s216 = scalar_lea.vmem %s1, %s215
      %p217 = scmp.lt.s32.totalorder %s19, 0
      %s218 = scalar_select %p217, %s19, 0
      %s219 = smul.addr %s218, 8
      %s220 = scalar_lea.vmem %s2, %s219
      %p221 = scmp.lt.s32.totalorder %s18, 1
      %s222 = scalar_select %p221, %s18, 1
      %p223 = scmp.lt.s32.totalorder %s19, 0
      %s224 = scalar_select %p223, %s19, 0
      %s225 = smul.addr %s224, 3
      %s226 = smul.addr %s222, 3
      %s227 = sadd.s32 %s225, %s226
      %s228 = smul.addr %s227, 4
      %s229 = scalar_lea.vmem %s3, %s228
      %v231 = vld [vmem:[%s211] sm:$0xff]
      %v232 = vld [vmem:[%s211 + $0x8] sm:$0xf]
      %v233 = vld [vmem:[%s211 + $0x10] sm:$0xff]
      %v234 = vld [vmem:[%s211 + $0x18] sm:$0xf]
      %v239 = vunpack.c.l.b16 %v231
      %v240 = vunpack.c.h.b16 %v231
      %v241 = vunpack.c.l.b16 %v232
      %v242 = vunpack.c.l.b16 %v233
      %v243 = vunpack.c.h.b16 %v233
      %v244 = vunpack.c.l.b16 %v234
      %v245 = vpack.c.b16 %v242, %v239
      %v246 = vpack.c.b16 %v243, %v240
      %v247 = vpack.c.b16 %v244, %v241
      %251 = vst [vmem:[#allocation2] sm:$0xff] %v245
      %252 = vst [vmem:[#allocation2 + $0x8] sm:$0xff] %v246
      %253 = vst [vmem:[#allocation2 + $0x10] sm:$0xff] %v247
      %s254 = scalar_lea.vmem %s211, 32
      %v255 = vld [vmem:[%s254] sm:$0xff]
      %v256 = vld [vmem:[%s254 + $0x8] sm:$0xf]
      %v257 = vld [vmem:[%s254 + $0x10] sm:$0xff]
      %v258 = vld [vmem:[%s254 + $0x18] sm:$0xf]
      %v263 = vunpack.c.l.b16 %v255
      %v264 = vunpack.c.h.b16 %v255
      %v265 = vunpack.c.l.b16 %v256
      %v266 = vunpack.c.l.b16 %v257
      %v267 = vunpack.c.h.b16 %v257
      %v268 = vunpack.c.l.b16 %v258
      %v269 = vpack.c.b16 %v266, %v263
      %v270 = vpack.c.b16 %v267, %v264
      %v271 = vpack.c.b16 %v268, %v265
      %275 = vst [vmem:[#allocation2 + $0x18] sm:$0xff] %v269
      %276 = vst [vmem:[#allocation2 + $0x20] sm:$0xff] %v270
      %277 = vst [vmem:[#allocation2 + $0x28] sm:$0xff] %v271
      %v278 = vld [vmem:[%s211] sm:$0xff]
      %v279 = vld [vmem:[%s211 + $0x8] sm:$0xff]
      %v280 = vld [vmem:[%s211 + $0x10] sm:$0xff]
      %v281 = vld [vmem:[%s211 + $0x18] sm:$0xff]
      %v286 = vunpack.c.l.b16 %v278
      %v287 = vunpack.c.h.b16 %v278
      %v288 = vunpack.c.l.b16 %v279
      %v289 = vunpack.c.h.b16 %v279
      %v290 = vunpack.c.l.b16 %v280
      %v291 = vunpack.c.h.b16 %v280
      %v292 = vunpack.c.l.b16 %v281
      %v293 = vunpack.c.h.b16 %v281
      %v294 = vpack.c.b16 %v290, %v286
      %v295 = vpack.c.b16 %v291, %v287
      %v296 = vpack.c.b16 %v292, %v288
      %v297 = vpack.c.b16 %v293, %v289
      %298 = vrot.lane.b32.xlu0 %v294, 127
      %v299 = vpop.permute.xlu0 %298
      %300 = vrot.lane.b32.xlu0 %v295, 127
      %v301 = vpop.permute.xlu0 %300
      %302 = vrot.lane.b32.xlu0 %v296, 127
      %v303 = vpop.permute.xlu0 %302
      %304 = vrot.lane.b32.xlu0 %v297, 127
      %v305 = vpop.permute.xlu0 %304
      %vm306 = vcmask 1039360
      %v307 = vsel %vm306, %v299, %v301
      %v308 = vsel %vm306, %v301, %v303
      %v309 = vsel %vm306, %v303, %v305
      %313 = vst [vmem:[#allocation2 + $0x30] sm:$0xff] %v307
      %314 = vst [vmem:[#allocation2 + $0x38] sm:$0xff] %v308
      %315 = vst [vmem:[#allocation2 + $0x40] sm:$0xff] %v309
      %v316 = vld [vmem:[%s254] sm:$0xff]
      %v317 = vld [vmem:[%s254 + $0x8] sm:$0xff]
      %v318 = vld [vmem:[%s254 + $0x10] sm:$0xff]
      %v319 = vld [vmem:[%s254 + $0x18] sm:$0xff]
      %v324 = vunpack.c.l.b16 %v316
      %v325 = vunpack.c.h.b16 %v316
      %v326 = vunpack.c.l.b16 %v317
      %v327 = vunpack.c.h.b16 %v317
      %v328 = vunpack.c.l.b16 %v318
      %v329 = vunpack.c.h.b16 %v318
      %v330 = vunpack.c.l.b16 %v319
      %v331 = vunpack.c.h.b16 %v319
      %v332 = vpack.c.b16 %v328, %v324
      %v333 = vpack.c.b16 %v329, %v325
      %v334 = vpack.c.b16 %v330, %v326
      %v335 = vpack.c.b16 %v331, %v327
      %336 = vrot.lane.b32.xlu0 %v332, 127
      %v337 = vpop.permute.xlu0 %336
      %338 = vrot.lane.b32.xlu0 %v333, 127
      %v339 = vpop.permute.xlu0 %338
      %340 = vrot.lane.b32.xlu0 %v334, 127
      %v341 = vpop.permute.xlu0 %340
      %342 = vrot.lane.b32.xlu0 %v335, 127
      %v343 = vpop.permute.xlu0 %342
      %v344 = vsel %vm306, %v337, %v339
      %v345 = vsel %vm306, %v339, %v341
      %v346 = vsel %vm306, %v341, %v343
      %350 = vst [vmem:[#allocation2 + $0x48] sm:$0xff] %v344
      %351 = vst [vmem:[#allocation2 + $0x50] sm:$0xff] %v345
      %352 = vst [vmem:[#allocation2 + $0x58] sm:$0xff] %v346
      %s353 = scalar_lea.vmem %s211, 64
      %v354 = vld [vmem:[%s353] sm:$0xff]
      %v355 = vld [vmem:[%s353 + $0x8] sm:$0xf]
      %v356 = vld [vmem:[%s353 + $0x10] sm:$0xff]
      %v357 = vld [vmem:[%s353 + $0x18] sm:$0xf]
      %v362 = vunpack.c.l.b16 %v354
      %v363 = vunpack.c.h.b16 %v354
      %v364 = vunpack.c.l.b16 %v355
      %v365 = vunpack.c.l.b16 %v356
      %v366 = vunpack.c.h.b16 %v356
      %v367 = vunpack.c.l.b16 %v357
      %v368 = vpack.c.b16 %v365, %v362
      %v369 = vpack.c.b16 %v366, %v363
      %v370 = vpack.c.b16 %v367, %v364
      %374 = vst [vmem:[#allocation2 + $0x60] sm:$0xff] %v368
      %375 = vst [vmem:[#allocation2 + $0x68] sm:$0xff] %v369
      %376 = vst [vmem:[#allocation2 + $0x70] sm:$0xff] %v370
      %s377 = scalar_lea.vmem %s211, 96
      %v378 = vld [vmem:[%s377] sm:$0xff]
      %v379 = vld [vmem:[%s377 + $0x8] sm:$0xf]
      %v380 = vld [vmem:[%s377 + $0x10] sm:$0xff]
      %v381 = vld [vmem:[%s377 + $0x18] sm:$0xf]
      %v386 = vunpack.c.l.b16 %v378
      %v387 = vunpack.c.h.b16 %v378
      %v388 = vunpack.c.l.b16 %v379
      %v389 = vunpack.c.l.b16 %v380
      %v390 = vunpack.c.h.b16 %v380
      %v391 = vunpack.c.l.b16 %v381
      %v392 = vpack.c.b16 %v389, %v386
      %v393 = vpack.c.b16 %v390, %v387
      %v394 = vpack.c.b16 %v391, %v388
      %398 = vst [vmem:[#allocation2 + $0x78] sm:$0xff] %v392
      %399 = vst [vmem:[#allocation2 + $0x80] sm:$0xff] %v393
      %400 = vst [vmem:[#allocation2 + $0x88] sm:$0xff] %v394
      %v401 = vld [vmem:[%s353] sm:$0xff]
      %v402 = vld [vmem:[%s353 + $0x8] sm:$0xff]
      %v403 = vld [vmem:[%s353 + $0x10] sm:$0xff]
      %v404 = vld [vmem:[%s353 + $0x18] sm:$0xff]
      %v409 = vunpack.c.l.b16 %v401
      %v410 = vunpack.c.h.b16 %v401
      %v411 = vunpack.c.l.b16 %v402
      %v412 = vunpack.c.h.b16 %v402
      %v413 = vunpack.c.l.b16 %v403
      %v414 = vunpack.c.h.b16 %v403
      %v415 = vunpack.c.l.b16 %v404
      %v416 = vunpack.c.h.b16 %v404
      %v417 = vpack.c.b16 %v413, %v409
      %v418 = vpack.c.b16 %v414, %v410
      %v419 = vpack.c.b16 %v415, %v411
      %v420 = vpack.c.b16 %v416, %v412
      %421 = vrot.lane.b32.xlu0 %v417, 127
      %v422 = vpop.permute.xlu0 %421
      %423 = vrot.lane.b32.xlu0 %v418, 127
      %v424 = vpop.permute.xlu0 %423
      %425 = vrot.lane.b32.xlu0 %v419, 127
      %v426 = vpop.permute.xlu0 %425
      %427 = vrot.lane.b32.xlu0 %v420, 127
      %v428 = vpop.permute.xlu0 %427
      %v429 = vsel %vm306, %v422, %v424
      %v430 = vsel %vm306, %v424, %v426
      %v431 = vsel %vm306, %v426, %v428
      %435 = vst [vmem:[#allocation2 + $0x90] sm:$0xff] %v429
      %436 = vst [vmem:[#allocation2 + $0x98] sm:$0xff] %v430
      %437 = vst [vmem:[#allocation2 + $0xa0] sm:$0xff] %v431
      %v438 = vld [vmem:[%s377] sm:$0xff]
      %v439 = vld [vmem:[%s377 + $0x8] sm:$0xff]
      %v440 = vld [vmem:[%s377 + $0x10] sm:$0xff]
      %v441 = vld [vmem:[%s377 + $0x18] sm:$0xff]
      %v446 = vunpack.c.l.b16 %v438
      %v447 = vunpack.c.h.b16 %v438
      %v448 = vunpack.c.l.b16 %v439
      %v449 = vunpack.c.h.b16 %v439
      %v450 = vunpack.c.l.b16 %v440
      %v451 = vunpack.c.h.b16 %v440
      %v452 = vunpack.c.l.b16 %v441
      %v453 = vunpack.c.h.b16 %v441
      %v454 = vpack.c.b16 %v450, %v446
      %v455 = vpack.c.b16 %v451, %v447
      %v456 = vpack.c.b16 %v452, %v448
      %v457 = vpack.c.b16 %v453, %v449
      %458 = vrot.lane.b32.xlu0 %v454, 127
      %v459 = vpop.permute.xlu0 %458
      %460 = vrot.lane.b32.xlu0 %v455, 127
      %v461 = vpop.permute.xlu0 %460
      %462 = vrot.lane.b32.xlu0 %v456, 127
      %v463 = vpop.permute.xlu0 %462
      %464 = vrot.lane.b32.xlu0 %v457, 127
      %v465 = vpop.permute.xlu0 %464
      %v466 = vsel %vm306, %v459, %v461
      %v467 = vsel %vm306, %v461, %v463
      %v468 = vsel %vm306, %v463, %v465
      %472 = vst [vmem:[#allocation2 + $0xa8] sm:$0xff] %v466
      %473 = vst [vmem:[#allocation2 + $0xb0] sm:$0xff] %v467
      %474 = vst [vmem:[#allocation2 + $0xb8] sm:$0xff] %v468
      %v475 = vld [vmem:[%s211] sm:$0xff]
      %v476 = vld [vmem:[%s211 + $0x8] sm:$0xff]
      %v477 = vld [vmem:[%s211 + $0x10] sm:$0xff]
      %v478 = vld [vmem:[%s211 + $0x18] sm:$0xff]
      %v483 = vunpack.c.l.b16 %v475
      %v484 = vunpack.c.h.b16 %v475
      %v485 = vunpack.c.l.b16 %v476
      %v486 = vunpack.c.h.b16 %v476
      %v487 = vunpack.c.l.b16 %v477
      %v488 = vunpack.c.h.b16 %v477
      %v489 = vunpack.c.l.b16 %v478
      %v490 = vunpack.c.h.b16 %v478
      %v491 = vpack.c.b16 %v487, %v483
      %v492 = vpack.c.b16 %v488, %v484
      %v493 = vpack.c.b16 %v489, %v485
      %v494 = vpack.c.b16 %v490, %v486
      %495 = vrot.lane.b32.xlu0 %v491, 111
      %v496 = vpop.permute.xlu0 %495
      %497 = vrot.lane.b32.xlu0 %v492, 111
      %v498 = vpop.permute.xlu0 %497
      %499 = vrot.lane.b32.xlu0 %v493, 111
      %v500 = vpop.permute.xlu0 %499
      %501 = vrot.lane.b32.xlu0 %v494, 111
      %v502 = vpop.permute.xlu0 %501
      %vm503 = vcmask 908288
      %v504 = vsel %vm503, %v496, %v498
      %v505 = vsel %vm503, %v498, %v500
      %v506 = vsel %vm503, %v500, %v502
      %510 = vst [vmem:[#allocation2 + $0xc0] sm:$0xff] %v504
      %511 = vst [vmem:[#allocation2 + $0xc8] sm:$0xff] %v505
      %512 = vst [vmem:[#allocation2 + $0xd0] sm:$0xff] %v506
      %v513 = vld [vmem:[%s254] sm:$0xff]
      %v514 = vld [vmem:[%s254 + $0x8] sm:$0xff]
      %v515 = vld [vmem:[%s254 + $0x10] sm:$0xff]
      %v516 = vld [vmem:[%s254 + $0x18] sm:$0xff]
      %v521 = vunpack.c.l.b16 %v513
      %v522 = vunpack.c.h.b16 %v513
      %v523 = vunpack.c.l.b16 %v514
      %v524 = vunpack.c.h.b16 %v514
      %v525 = vunpack.c.l.b16 %v515
      %v526 = vunpack.c.h.b16 %v515
      %v527 = vunpack.c.l.b16 %v516
      %v528 = vunpack.c.h.b16 %v516
      %v529 = vpack.c.b16 %v525, %v521
      %v530 = vpack.c.b16 %v526, %v522
      %v531 = vpack.c.b16 %v527, %v523
      %v532 = vpack.c.b16 %v528, %v524
      %533 = vrot.lane.b32.xlu0 %v529, 111
      %v534 = vpop.permute.xlu0 %533
      %535 = vrot.lane.b32.xlu0 %v530, 111
      %v536 = vpop.permute.xlu0 %535
      %537 = vrot.lane.b32.xlu0 %v531, 111
      %v538 = vpop.permute.xlu0 %537
      %539 = vrot.lane.b32.xlu0 %v532, 111
      %v540 = vpop.permute.xlu0 %539
      %v541 = vsel %vm503, %v534, %v536
      %v542 = vsel %vm503, %v536, %v538
      %v543 = vsel %vm503, %v538, %v540
      %547 = vst [vmem:[#allocation2 + $0xd8] sm:$0xff] %v541
      %548 = vst [vmem:[#allocation2 + $0xe0] sm:$0xff] %v542
      %549 = vst [vmem:[#allocation2 + $0xe8] sm:$0xff] %v543
      %v550 = vld [vmem:[%s211] sm:$0xff]
      %v551 = vld [vmem:[%s211 + $0x8] sm:$0xff]
      %v552 = vld [vmem:[%s211 + $0x10] sm:$0xff]
      %v553 = vld [vmem:[%s211 + $0x18] sm:$0xff]
      %v558 = vunpack.c.l.b16 %v550
      %v559 = vunpack.c.h.b16 %v550
      %v560 = vunpack.c.l.b16 %v551
      %v561 = vunpack.c.h.b16 %v551
      %v562 = vunpack.c.l.b16 %v552
      %v563 = vunpack.c.h.b16 %v552
      %v564 = vunpack.c.l.b16 %v553
      %v565 = vunpack.c.h.b16 %v553
      %v566 = vpack.c.b16 %v562, %v558
      %v567 = vpack.c.b16 %v563, %v559
      %v568 = vpack.c.b16 %v564, %v560
      %v569 = vpack.c.b16 %v565, %v561
      %570 = vrot.lane.b32.xlu0 %v566, 110
      %v571 = vpop.permute.xlu0 %570
      %572 = vrot.lane.b32.xlu0 %v567, 110
      %v573 = vpop.permute.xlu0 %572
      %574 = vrot.lane.b32.xlu0 %v568, 110
      %v575 = vpop.permute.xlu0 %574
      %576 = vrot.lane.b32.xlu0 %v569, 110
      %v577 = vpop.permute.xlu0 %576
      %vm578 = vcmask 900096
      %v579 = vsel %vm578, %v571, %v573
      %v580 = vsel %vm578, %v573, %v575
      %v581 = vsel %vm578, %v575, %v577
      %585 = vst [vmem:[#allocation2 + $0xf0] sm:$0xff] %v579
      %586 = vst [vmem:[#allocation2 + $0xf8] sm:$0xff] %v580
      %587 = vst [vmem:[#allocation2 + $0x100] sm:$0xff] %v581
      %v588 = vld [vmem:[%s254] sm:$0xff]
      %v589 = vld [vmem:[%s254 + $0x8] sm:$0xff]
      %v590 = vld [vmem:[%s254 + $0x10] sm:$0xff]
      %v591 = vld [vmem:[%s254 + $0x18] sm:$0xff]
      %v596 = vunpack.c.l.b16 %v588
      %v597 = vunpack.c.h.b16 %v588
      %v598 = vunpack.c.l.b16 %v589
      %v599 = vunpack.c.h.b16 %v589
      %v600 = vunpack.c.l.b16 %v590
      %v601 = vunpack.c.h.b16 %v590
      %v602 = vunpack.c.l.b16 %v591
      %v603 = vunpack.c.h.b16 %v591
      %v604 = vpack.c.b16 %v600, %v596
      %v605 = vpack.c.b16 %v601, %v597
      %v606 = vpack.c.b16 %v602, %v598
      %v607 = vpack.c.b16 %v603, %v599
      %608 = vrot.lane.b32.xlu0 %v604, 110
      %v609 = vpop.permute.xlu0 %608
      %610 = vrot.lane.b32.xlu0 %v605, 110
      %v611 = vpop.permute.xlu0 %610
      %612 = vrot.lane.b32.xlu0 %v606, 110
      %v613 = vpop.permute.xlu0 %612
      %614 = vrot.lane.b32.xlu0 %v607, 110
      %v615 = vpop.permute.xlu0 %614
      %v616 = vsel %vm578, %v609, %v611
      %v617 = vsel %vm578, %v611, %v613
      %v618 = vsel %vm578, %v613, %v615
      %622 = vst [vmem:[#allocation2 + $0x108] sm:$0xff] %v616
      %623 = vst [vmem:[#allocation2 + $0x110] sm:$0xff] %v617
      %624 = vst [vmem:[#allocation2 + $0x118] sm:$0xff] %v618
      %v625 = vld [vmem:[%s353] sm:$0xff]
      %v626 = vld [vmem:[%s353 + $0x8] sm:$0xff]
      %v627 = vld [vmem:[%s353 + $0x10] sm:$0xff]
      %v628 = vld [vmem:[%s353 + $0x18] sm:$0xff]
      %v633 = vunpack.c.l.b16 %v625
      %v634 = vunpack.c.h.b16 %v625
      %v635 = vunpack.c.l.b16 %v626
      %v636 = vunpack.c.h.b16 %v626
      %v637 = vunpack.c.l.b16 %v627
      %v638 = vunpack.c.h.b16 %v627
      %v639 = vunpack.c.l.b16 %v628
      %v640 = vunpack.c.h.b16 %v628
      %v641 = vpack.c.b16 %v637, %v633
      %v642 = vpack.c.b16 %v638, %v634
      %v643 = vpack.c.b16 %v639, %v635
      %v644 = vpack.c.b16 %v640, %v636
      %645 = vrot.lane.b32.xlu0 %v641, 111
      %v646 = vpop.permute.xlu0 %645
      %647 = vrot.lane.b32.xlu0 %v642, 111
      %v648 = vpop.permute.xlu0 %647
      %649 = vrot.lane.b32.xlu0 %v643, 111
      %v650 = vpop.permute.xlu0 %649
      %651 = vrot.lane.b32.xlu0 %v644, 111
      %v652 = vpop.permute.xlu0 %651
      %v653 = vsel %vm503, %v646, %v648
      %v654 = vsel %vm503, %v648, %v650
      %v655 = vsel %vm503, %v650, %v652
      %659 = vst [vmem:[#allocation2 + $0x120] sm:$0xff] %v653
      %660 = vst [vmem:[#allocation2 + $0x128] sm:$0xff] %v654
      %661 = vst [vmem:[#allocation2 + $0x130] sm:$0xff] %v655
      %v662 = vld [vmem:[%s377] sm:$0xff]
      %v663 = vld [vmem:[%s377 + $0x8] sm:$0xff]
      %v664 = vld [vmem:[%s377 + $0x10] sm:$0xff]
      %v665 = vld [vmem:[%s377 + $0x18] sm:$0xff]
      %v670 = vunpack.c.l.b16 %v662
      %v671 = vunpack.c.h.b16 %v662
      %v672 = vunpack.c.l.b16 %v663
      %v673 = vunpack.c.h.b16 %v663
      %v674 = vunpack.c.l.b16 %v664
      %v675 = vunpack.c.h.b16 %v664
      %v676 = vunpack.c.l.b16 %v665
      %v677 = vunpack.c.h.b16 %v665
      %v678 = vpack.c.b16 %v674, %v670
      %v679 = vpack.c.b16 %v675, %v671
      %v680 = vpack.c.b16 %v676, %v672
      %v681 = vpack.c.b16 %v677, %v673
      %682 = vrot.lane.b32.xlu0 %v678, 111
      %v683 = vpop.permute.xlu0 %682
      %684 = vrot.lane.b32.xlu0 %v679, 111
      %v685 = vpop.permute.xlu0 %684
      %686 = vrot.lane.b32.xlu0 %v680, 111
      %v687 = vpop.permute.xlu0 %686
      %688 = vrot.lane.b32.xlu0 %v681, 111
      %v689 = vpop.permute.xlu0 %688
      %v690 = vsel %vm503, %v683, %v685
      %v691 = vsel %vm503, %v685, %v687
      %v692 = vsel %vm503, %v687, %v689
      %696 = vst [vmem:[#allocation2 + $0x138] sm:$0xff] %v690
      %697 = vst [vmem:[#allocation2 + $0x140] sm:$0xff] %v691
      %698 = vst [vmem:[#allocation2 + $0x148] sm:$0xff] %v692
      %v699 = vld [vmem:[%s353] sm:$0xff]
      %v700 = vld [vmem:[%s353 + $0x8] sm:$0xff]
      %v701 = vld [vmem:[%s353 + $0x10] sm:$0xff]
      %v702 = vld [vmem:[%s353 + $0x18] sm:$0xff]
      %v707 = vunpack.c.l.b16 %v699
      %v708 = vunpack.c.h.b16 %v699
      %v709 = vunpack.c.l.b16 %v700
      %v710 = vunpack.c.h.b16 %v700
      %v711 = vunpack.c.l.b16 %v701
      %v712 = vunpack.c.h.b16 %v701
      %v713 = vunpack.c.l.b16 %v702
      %v714 = vunpack.c.h.b16 %v702
      %v715 = vpack.c.b16 %v711, %v707
      %v716 = vpack.c.b16 %v712, %v708
      %v717 = vpack.c.b16 %v713, %v709
      %v718 = vpack.c.b16 %v714, %v710
      %719 = vrot.lane.b32.xlu0 %v715, 110
      %v720 = vpop.permute.xlu0 %719
      %721 = vrot.lane.b32.xlu0 %v716, 110
      %v722 = vpop.permute.xlu0 %721
      %723 = vrot.lane.b32.xlu0 %v717, 110
      %v724 = vpop.permute.xlu0 %723
      %725 = vrot.lane.b32.xlu0 %v718, 110
      %v726 = vpop.permute.xlu0 %725
      %v727 = vsel %vm578, %v720, %v722
      %v728 = vsel %vm578, %v722, %v724
      %v729 = vsel %vm578, %v724, %v726
      %733 = vst [vmem:[#allocation2 + $0x150] sm:$0xff] %v727
      %734 = vst [vmem:[#allocation2 + $0x158] sm:$0xff] %v728
      %735 = vst [vmem:[#allocation2 + $0x160] sm:$0xff] %v729
      %v736 = vld [vmem:[%s377] sm:$0xff]
      %v737 = vld [vmem:[%s377 + $0x8] sm:$0xff]
      %v738 = vld [vmem:[%s377 + $0x10] sm:$0xff]
      %v739 = vld [vmem:[%s377 + $0x18] sm:$0xff]
      %v744 = vunpack.c.l.b16 %v736
      %v745 = vunpack.c.h.b16 %v736
      %v746 = vunpack.c.l.b16 %v737
      %v747 = vunpack.c.h.b16 %v737
      %v748 = vunpack.c.l.b16 %v738
      %v749 = vunpack.c.h.b16 %v738
      %v750 = vunpack.c.l.b16 %v739
      %v751 = vunpack.c.h.b16 %v739
      %v752 = vpack.c.b16 %v748, %v744
      %v753 = vpack.c.b16 %v749, %v745
      %v754 = vpack.c.b16 %v750, %v746
      %v755 = vpack.c.b16 %v751, %v747
      %756 = vrot.lane.b32.xlu0 %v752, 110
      %v757 = vpop.permute.xlu0 %756
      %758 = vrot.lane.b32.xlu0 %v753, 110
      %v759 = vpop.permute.xlu0 %758
      %760 = vrot.lane.b32.xlu0 %v754, 110
      %v761 = vpop.permute.xlu0 %760
      %762 = vrot.lane.b32.xlu0 %v755, 110
      %v763 = vpop.permute.xlu0 %762
      %v764 = vsel %vm578, %v757, %v759
      %v765 = vsel %vm578, %v759, %v761
      %v766 = vsel %vm578, %v761, %v763
      %770 = vst [vmem:[#allocation2 + $0x168] sm:$0xff] %v764
      %771 = vst [vmem:[#allocation2 + $0x170] sm:$0xff] %v765
      %772 = vst [vmem:[#allocation2 + $0x178] sm:$0xff] %v766
      %v773 = vld [vmem:[%s216] sm:$0xff]
      %v774 = vld [vmem:[#allocation2] sm:$0xff]
      %v775 = vld [vmem:[#allocation2 + $0x8] sm:$0xff]
      %v776 = vld [vmem:[#allocation2 + $0x10] sm:$0xff]
      %v777 = vld [vmem:[#allocation2 + $0x18] sm:$0xff]
      %v778 = vld [vmem:[#allocation2 + $0x20] sm:$0xff]
      %v779 = vld [vmem:[#allocation2 + $0x28] sm:$0xff]
      %v780 = vld [vmem:[#allocation2 + $0x30] sm:$0xff]
      %v781 = vld [vmem:[#allocation2 + $0x38] sm:$0xff]
      %v782 = vld [vmem:[#allocation2 + $0x40] sm:$0xff]
      %v783 = vld [vmem:[#allocation2 + $0x48] sm:$0xff]
      %v784 = vld [vmem:[#allocation2 + $0x50] sm:$0xff]
      %v785 = vld [vmem:[#allocation2 + $0x58] sm:$0xff]
      %v786 = vld [vmem:[#allocation2 + $0x60] sm:$0xff]
      %v787 = vld [vmem:[#allocation2 + $0x68] sm:$0xff]
      %v788 = vld [vmem:[#allocation2 + $0x70] sm:$0xff]
      %v789 = vld [vmem:[#allocation2 + $0x78] sm:$0xff]
      %v790 = vld [vmem:[#allocation2 + $0x80] sm:$0xff]
      %v791 = vld [vmem:[#allocation2 + $0x88] sm:$0xff]
      %v792 = vld [vmem:[#allocation2 + $0x90] sm:$0xff]
      %v793 = vld [vmem:[#allocation2 + $0x98] sm:$0xff]
      %v794 = vld [vmem:[#allocation2 + $0xa0] sm:$0xff]
      %v795 = vld [vmem:[#allocation2 + $0xa8] sm:$0xff]
      %v796 = vld [vmem:[#allocation2 + $0xb0] sm:$0xff]
      %v797 = vld [vmem:[#allocation2 + $0xb8] sm:$0xff]
      %v798 = vld [vmem:[#allocation2 + $0xc0] sm:$0xff]
      %v799 = vld [vmem:[#allocation2 + $0xc8] sm:$0xff]
      %v800 = vld [vmem:[#allocation2 + $0xd0] sm:$0xff]
      %v801 = vld [vmem:[#allocation2 + $0xd8] sm:$0xff]
      %v802 = vld [vmem:[#allocation2 + $0xe0] sm:$0xff]
      %v803 = vld [vmem:[#allocation2 + $0xe8] sm:$0xff]
      %v804 = vld [vmem:[#allocation2 + $0xf0] sm:$0xff]
      %v805 = vld [vmem:[#allocation2 + $0xf8] sm:$0xff]
      %v806 = vld [vmem:[#allocation2 + $0x100] sm:$0xff]
      %v807 = vld [vmem:[#allocation2 + $0x108] sm:$0xff]
      %v808 = vld [vmem:[#allocation2 + $0x110] sm:$0xff]
      %v809 = vld [vmem:[#allocation2 + $0x118] sm:$0xff]
      %v810 = vld [vmem:[#allocation2 + $0x120] sm:$0xff]
      %v811 = vld [vmem:[#allocation2 + $0x128] sm:$0xff]
      %v812 = vld [vmem:[#allocation2 + $0x130] sm:$0xff]
      %v813 = vld [vmem:[#allocation2 + $0x138] sm:$0xff]
      %v814 = vld [vmem:[#allocation2 + $0x140] sm:$0xff]
      %v815 = vld [vmem:[#allocation2 + $0x148] sm:$0xff]
      %v816 = vld [vmem:[#allocation2 + $0x150] sm:$0xff]
      %v817 = vld [vmem:[#allocation2 + $0x158] sm:$0xff]
      %v818 = vld [vmem:[#allocation2 + $0x160] sm:$0xff]
      %v819 = vld [vmem:[#allocation2 + $0x168] sm:$0xff]
      %v820 = vld [vmem:[#allocation2 + $0x170] sm:$0xff]
      %v821 = vld [vmem:[#allocation2 + $0x178] sm:$0xff]
      %v822 = vld [vmem:[%s220] sm:$0xff]
      %824 = vset.pattern.permute.xlu0 0
      %825 = vperm.xlu0 %824, %v822
      %v826 = vpop.permute.xlu0 %825
      %v829 = vunpack.c.l.b16 %v773
      %v830 = vunpack.c.h.b16 %v773
      %v831 = vpack.c.b16 %v829, %v829
      %v832 = vpack.c.b16 %v830, %v830
      %835 = vmatprep.subr.bf16.mxu0 %v775
      %836 = vmatpush1.bf16.msra.mxu0 %v774
      %837 = vmatprep.subr.bf16.mxu0 %v778
      %838 = vmatpush1.bf16.msra.mxu0 %v777
      %839 = vmatprep.subr.bf16.mxu0 %v781
      %840 = vmatpush1.bf16.msra.mxu0 %v780
      %841 = vmatprep.subr.bf16.mxu0 %v784
      %842 = vmatpush1.bf16.msra.mxu0 %v783
      %843 = vmatprep.subr.bf16.mxu0 %v787
      %844 = vmatpush1.bf16.msra.mxu0 %v786
      %845 = vmatprep.subr.bf16.mxu0 %v790
      %846 = vmatpush1.bf16.msra.mxu0 %v789
      %847 = vmatprep.subr.bf16.mxu0 %v793
      %848 = vmatpush1.bf16.msra.mxu0 %v792
      %849 = vmatprep.subr.bf16.mxu0 %v796
      %850 = vmatpush1.bf16.msra.mxu0 %v795
      %851 = vmatprep.subr.bf16.mxu0 %v799
      %852 = vmatpush1.bf16.msra.mxu0 %v798
      %853 = vmatprep.subr.bf16.mxu0 %v802
      %854 = vmatpush1.bf16.msra.mxu0 %v801
      %855 = vmatprep.subr.bf16.mxu0 %v805
      %856 = vmatpush1.bf16.msra.mxu0 %v804
      %857 = vmatprep.subr.bf16.mxu0 %v808
      %858 = vmatpush1.bf16.msra.mxu0 %v807
      %859 = vmatprep.subr.bf16.mxu0 %v811
      %860 = vmatpush1.bf16.msra.mxu0 %v810
      %861 = vmatprep.subr.bf16.mxu0 %v814
      %862 = vmatpush1.bf16.msra.mxu0 %v813
      %863 = vmatprep.subr.bf16.mxu0 %v817
      %864 = vmatpush1.bf16.msra.mxu0 %v816
      %865 = vmatprep.subr.bf16.mxu0 %v820
      %866 = vmatpush1.bf16.msra.mxu0 %v819
      %867 = vmatprep.mubr.bf16.mxu0 %v832
      %868 = vmatmul.mubr.bf16.gmra.mrb[0].mxu0 %v831
      %v869 = vpop.f32.mrb[0].mxu0
      %v870 = vadd.f32 %v826, %v869
      %v871 = vpop.f32.mrb[0].mxu0
      %v872 = vadd.f32 %v826, %v871
      %v873 = vpop.f32.mrb[0].mxu0
      %v874 = vpop.f32.mrb[0].mxu0
      %875 = vdwg.mxu0
      %876 = vmatprep.subr.bf16.mxu0 0
      %877 = vmatpush1.bf16.msra.mxu0 %v776
      %878 = vmatprep.subr.bf16.mxu0 0
      %879 = vmatpush1.bf16.msra.mxu0 %v779
      %880 = vmatprep.subr.bf16.mxu0 0
      %881 = vmatpush1.bf16.msra.mxu0 %v782
      %882 = vmatprep.subr.bf16.mxu0 0
      %883 = vmatpush1.bf16.msra.mxu0 %v785
      %884 = vmatprep.subr.bf16.mxu0 0
      %885 = vmatpush1.bf16.msra.mxu0 %v788
      %886 = vmatprep.subr.bf16.mxu0 0
      %887 = vmatpush1.bf16.msra.mxu0 %v791
      %888 = vmatprep.subr.bf16.mxu0 0
      %889 = vmatpush1.bf16.msra.mxu0 %v794
      %890 = vmatprep.subr.bf16.mxu0 0
      %891 = vmatpush1.bf16.msra.mxu0 %v797
      %892 = vmatprep.subr.bf16.mxu0 0
      %893 = vmatpush1.bf16.msra.mxu0 %v800
      %894 = vmatprep.subr.bf16.mxu0 0
      %895 = vmatpush1.bf16.msra.mxu0 %v803
      %896 = vmatprep.subr.bf16.mxu0 0
      %897 = vmatpush1.bf16.msra.mxu0 %v806
      %898 = vmatprep.subr.bf16.mxu0 0
      %899 = vmatpush1.bf16.msra.mxu0 %v809
      %900 = vmatprep.subr.bf16.mxu0 0
      %901 = vmatpush1.bf16.msra.mxu0 %v812
      %902 = vmatprep.subr.bf16.mxu0 0
      %903 = vmatpush1.bf16.msra.mxu0 %v815
      %904 = vmatprep.subr.bf16.mxu0 0
      %905 = vmatpush1.bf16.msra.mxu0 %v818
      %906 = vmatprep.subr.bf16.mxu0 0
      %907 = vmatpush1.bf16.msra.mxu0 %v821
      %908 = vmatprep.mubr.bf16.mxu0 %v832
      %909 = vmatmul.mubr.bf16.gmra.mrb[0].mxu0 %v831
      %v910 = vpop.f32.mrb[0].mxu0
      %v911 = vadd.f32 %v826, %v910
      %v912 = vpop.f32.mrb[0].mxu0
      %v913 = vpop.f32.mrb[0].mxu0
      %v914 = vpop.f32.mrb[0].mxu0
      %915 = vdwg.mxu0
      %vm916 = vcmp.gt.f32.partialorder %v870, 0.0
      %vm917 = vcmp.gt.f32.partialorder %v872, 0.0
      %vm918 = vcmp.gt.f32.partialorder %v911, 0.0
      %v919 = vmul.f32 %v870, 0.2
      %v920 = vmul.f32 %v872, 0.2
      %v921 = vmul.f32 %v911, 0.2
      %v922 = vsel %vm916, %v870, %v919
      %v923 = vsel %vm917, %v872, %v920
      %v924 = vsel %vm918, %v911, %v921
      %v925 = vpack.c.bf16 %v922, %v922
      %v926 = vpack.c.bf16 %v923, %v923
      %v927 = vpack.c.bf16 %v924, %v924
      %v931 = vunpack.c.l.b16 %v925
      %v932 = vunpack.c.l.b16 %v926
      %v933 = vunpack.c.l.b16 %v927
      %v934 = vpack.c.b16 %v932, %v931
      %v935 = vpack.c.b16 %v933, %v933
      %938 = vst [vmem:[%s229] sm:$0xff] %v934
      %939 = vst [vmem:[%s229 + $0x8] sm:$0xf] %v935
      %p940 = scmp.lt.s32.totalorder %s18, 1
      %s941 = scalar_select %p940, %s18, 1
      %p942 = scmp.lt.s32.totalorder %s19, 0
      %s943 = scalar_select %p942, %s19, 0
      %s944 = smul.addr %s943, 3
      %s945 = smul.addr %s941, 3
      %s946 = sadd.s32 %s944, %s945
      %s947 = smul.addr %s946, 4
      %s948 = scalar_lea.vmem %s3, %s947
      // Predicated region
      $region33: #{_lambda_.4} parent=31 // pred_check
        %p949 = pneg %p124
      $region34: #{_lambda_.4} parent=31 // pred_check_branch
        %951 = sbr.rel (%p949) target = $region36
      $region35: #{_lambda_.4} parent=31 // pred_region
        _
      $region36: #{_lambda_.4} parent=31 // pred_fallthru
        _
    $region32: #{_lambda_.4} parent=5 // pred_fallthru
      _
    %p952 = scmp.le.s32.totalorder 2, %s9
    // Predicated region
    $region37: #{_lambda_.4} parent=5 // pred_check
      %p953 = pneg %p952
    $region38: #{_lambda_.4} parent=5 // pred_check_branch
      %955 = sbr.rel (%p953) target = $region40
    $region39: #{_lambda_.4} parent=5 // pred_region
      %s956 = ssub.s32 %s9, 2
      // Predicated region
      $region41: #{_lambda_.4} parent=39 // pred_check
        %p957 = pneg %p130
      $region42: #{_lambda_.4} parent=39 // pred_check_branch
        %959 = sbr.rel (%p957) target = $region44
      $region43: #{_lambda_.4} parent=39 // pred_region
        %p960 = scmp.lt.s32.totalorder %s20, 1
        %s961 = scalar_select %p960, %s20, 1
        %p962 = scmp.lt.s32.totalorder %s21, 0
        %s963 = scalar_select %p962, %s21, 0
        %s964 = smul.addr %s963, 3
        %s965 = smul.addr %s961, 3
        %s966 = sadd.s32 %s964, %s965
        %s967 = smul.addr %s966, 4
        %s968 = scalar_lea.vmem %s3, %s967
      $region44: #{_lambda_.4} parent=39 // pred_fallthru
        _
    $region40: #{_lambda_.4} parent=5 // pred_fallthru
      _
  $region6: #{_lambda_.4} parent=0 // loop_footer
    %s13 = sadd.s32 1, %s9
  $region7: #{_lambda_.4} parent=0 // loop_footer_branch
    %8 = sbr.rel target = $region3
  $region8: #{_lambda_.4} parent=0 // loop_exit
    _

// kernel: _lambda_.5
$region0: #{_lambda_.5}
  #allocation0 [shape = 'u32[]', space=smem, size = 0x4, offset = 0x4, fixed_abs, tag = 'smem constant byte address 0x4 - core index']
  #allocation1 [shape = 'u32[144,128]{1,0:T(1,128)}', space=vmem, size = 0x12000, scoped, tag = 'internal scratch']
  #allocation2 [shape = 'bf16[256,128]{1,0:T(16,128)(2,1)}', space=vmem, size = 0x10000, scoped, tag = 'scratch operand']
  %s0 = inlined_call_operand.vmem [shape: bf16[2,4,16,256], index: 0, kind: input, shape index: {}]
  %s1 = inlined_call_operand.vmem [shape: bf16[16,256], index: 1, kind: input, shape index: {}]
  %s2 = inlined_call_operand.vmem [shape: f32[1,128], index: 2, kind: input, shape index: {}]
  %s3 = inlined_call_operand.vmem [shape: bf16[2,16,128], index: 3, kind: output, shape index: {}]
  %s4 = sld [smem:[#allocation0]]
  $region45: #{_lambda_.5} parent=0
    _
  %s6 = ssub.s32 1, %s4
  %s7 = scalar_select 0, %s6, %s4
  loop: start=0, step=1, limit=4
  $region2: #{_lambda_.5} parent=0 // loop_pre_header
    _
  $region3: #{_lambda_.5} parent=0 // loop_header
    %s9 = sphi 0, %s13
    %p10 = scmp.ge.s32.totalorder %s9, 4
    %s16 = sphi 0, %s28
    %s17 = sphi 0, %s24
    %s18 = sphi 0, %s16
    %s19 = sphi 0, %s17
    %s20 = sphi 0, %s18
    %s21 = sphi 0, %s19
    %s31 = sphi 0, %s33
    %s34 = sphi 0, %s31
    %s35 = sphi 0, %s34
    %s51 = sphi 0, %s35
    %s57 = sphi 0, %s59
    %s60 = sphi 0, %s57
    %s61 = sphi 0, %s60
    %s77 = sphi 0, %s61
    %s81 = sphi 0, %s81
    %s83 = sphi 0, %s81
    %s84 = sphi 0, %s83
    %s98 = sphi 0, %s84
    %s106 = sphi 0, %s108
    %s109 = sphi 0, %s106
    %s110 = sphi 0, %s109
    %s126 = sphi 0, %s110
  $region4: #{_lambda_.5} parent=0 // loop_header_branch
    %12 = sbr.rel (%p10) target = $region8
  $region5: #{_lambda_.5} parent=0 // loop_body
    %s14 = ssub.s32 %s9, 1
    %s15 = ssub.s32 %s9, 2
    %s22 = sadd.s32 1, %s17
    %p23 = scmp.ge.s32.totalorder %s22, 1
    %s24 = scalar_select %p23, 0, %s22
    %s25 = sadd.s32 1, %s16
    %s26 = scalar_select %p23, %s25, %s16
    %p27 = scmp.ge.s32.totalorder %s26, 2
    %s28 = scalar_select %p27, 0, %s26
    %s29 = ssub.s32 %s16, %s28
    %p30 = scmp.eq.s32.totalorder %s29, 0
    %s32 = sadd.s32 %s31, 1
    %s33 = scalar_select %p30, %s31, %s32
    %p36 = pneg %p30
    %p37 = scmp.eq.s32.totalorder %s9, 1
    %p38 = por %p36, %p37
    %p39 = scmp.ne.s32.totalorder %s31, %s34
    %p40 = scmp.eq.s32.totalorder %s9, 0
    %p41 = por %p39, %p40
    %p42 = scmp.ne.s32.totalorder %s31, %s34
    %p43 = scmp.eq.s32.totalorder %s14, 1
    %p44 = por %p42, %p43
    %p45 = scmp.ne.s32.totalorder %s34, %s35
    %p46 = scmp.eq.s32.totalorder %s14, 0
    %p47 = por %p45, %p46
    %p48 = scmp.ne.s32.totalorder %s34, %s35
    %p49 = scmp.eq.s32.totalorder %s15, 1
    %p50 = por %p48, %p49
    %p52 = scmp.ne.s32.totalorder %s35, %s51
    %p53 = scmp.eq.s32.totalorder %s15, 0
    %p54 = por %p52, %p53
    %s55 = ssub.s32 %s17, %s24
    %p56 = scmp.eq.s32.totalorder %s55, 0
    %s58 = sadd.s32 %s57, 1
    %s59 = scalar_select %p56, %s57, %s58
    %p62 = pneg %p56
    %p63 = scmp.eq.s32.totalorder %s9, 1
    %p64 = por %p62, %p63
    %p65 = scmp.ne.s32.totalorder %s57, %s60
    %p66 = scmp.eq.s32.totalorder %s9, 0
    %p67 = por %p65, %p66
    %p68 = scmp.ne.s32.totalorder %s57, %s60
    %p69 = scmp.eq.s32.totalorder %s14, 1
    %p70 = por %p68, %p69
    %p71 = scmp.ne.s32.totalorder %s60, %s61
    %p72 = scmp.eq.s32.totalorder %s14, 0
    %p73 = por %p71, %p72
    %p74 = scmp.ne.s32.totalorder %s60, %s61
    %p75 = scmp.eq.s32.totalorder %s15, 1
    %p76 = por %p74, %p75
    %p78 = scmp.ne.s32.totalorder %s61, %s77
    %p79 = scmp.eq.s32.totalorder %s15, 0
    %p80 = por %p78, %p79
    %s82 = sadd.s32 %s81, 1
    %p85 = scmp.eq.s32.totalorder %s9, 1
    %p86 = scmp.ne.s32.totalorder %s81, %s83
    %p87 = scmp.eq.s32.totalorder %s9, 0
    %p88 = por %p86, %p87
    %p89 = scmp.ne.s32.totalorder %s81, %s83
    %p90 = scmp.eq.s32.totalorder %s14, 1
    %p91 = por %p89, %p90
    %p92 = scmp.ne.s32.totalorder %s83, %s84
    %p93 = scmp.eq.s32.totalorder %s14, 0
    %p94 = por %p92, %p93
    %p95 = scmp.ne.s32.totalorder %s83, %s84
    %p96 = scmp.eq.s32.totalorder %s15, 1
    %p97 = por %p95, %p96
    %p99 = scmp.ne.s32.totalorder %s84, %s98
    %p100 = scmp.eq.s32.totalorder %s15, 0
    %p101 = por %p99, %p100
    %s102 = ssub.s32 %s16, %s28
    %s103 = ssub.s32 %s17, %s24
    %s104 = sor.u32 %s102, %s103
    %p105 = scmp.eq.s32.totalorder %s104, 0
    %s107 = sadd.s32 %s106, 1
    %s108 = scalar_select %p105, %s106, %s107
    %p111 = pneg %p105
    %p112 = scmp.eq.s32.totalorder %s9, 1
    %p113 = por %p111, %p112
    %p114 = scmp.ne.s32.totalorder %s106, %s109
    %p115 = scmp.eq.s32.totalorder %s9, 0
    %p116 = por %p114, %p115
    %p117 = scmp.ne.s32.totalorder %s106, %s109
    %p118 = scmp.eq.s32.totalorder %s14, 1
    %p119 = por %p117, %p118
    %p120 = scmp.ne.s32.totalorder %s109, %s110
    %p121 = scmp.eq.s32.totalorder %s14, 0
    %p122 = por %p120, %p121
    %p123 = scmp.ne.s32.totalorder %s109, %s110
    %p124 = scmp.eq.s32.totalorder %s15, 1
    %p125 = por %p123, %p124
    %p127 = scmp.ne.s32.totalorder %s110, %s126
    %p128 = scmp.eq.s32.totalorder %s15, 0
    %p129 = por %p127, %p128
    %p130 = scmp.le.s32.totalorder 1, %s9
    %p131 = scmp.lt.s32.totalorder %s9, 3
    %p132 = pnand %p130, %p131
    %p133 = pneg %p132
    // Predicated region
    $region9: #{_lambda_.5} parent=5 // pred_check
      _
    $region10: #{_lambda_.5} parent=5 // pred_check_branch
      %135 = sbr.rel (%p132) target = $region12
    $region11: #{_lambda_.5} parent=5 // pred_region
      %s136 = ssub.s32 %s9, 1
      // Predicated region
      $region13: #{_lambda_.5} parent=11 // pred_check
        %p137 = pneg %p73
      $region14: #{_lambda_.5} parent=11 // pred_check_branch
        %139 = sbr.rel (%p137) target = $region16
      $region15: #{_lambda_.5} parent=11 // pred_region
        %s140 = smul.u32 2, %s19
        %p141 = scmp.lt.s32.totalorder %s140, 1
        %s142 = scalar_select %p141, %s140, 1
        %s143 = smul.addr %s142, 2
        %s144 = smul.addr %s143, 4
        %s145 = scalar_lea.vmem %s1, %s144
        %s146 = smul.u32 2, %s19
      $region16: #{_lambda_.5} parent=11 // pred_fallthru
        _
      // Predicated region
      $region17: #{_lambda_.5} parent=11 // pred_check
        %p147 = pneg %p94
      $region18: #{_lambda_.5} parent=11 // pred_check_branch
        %149 = sbr.rel (%p147) target = $region20
      $region19: #{_lambda_.5} parent=11 // pred_region
        _
      $region20: #{_lambda_.5} parent=11 // pred_fallthru
        _
    $region12: #{_lambda_.5} parent=5 // pred_fallthru
      _
    %p150 = scmp.lt.s32.totalorder %s9, 2
    // Predicated region
    $region21: #{_lambda_.5} parent=5 // pred_check
      %p151 = pneg %p150
    $region22: #{_lambda_.5} parent=5 // pred_check_branch
      %153 = sbr.rel (%p151) target = $region24
    $region23: #{_lambda_.5} parent=5 // pred_region
      // Predicated region
      $region25: #{_lambda_.5} parent=23 // pred_check
        %p154 = pneg %p41
      $region26: #{_lambda_.5} parent=23 // pred_check_branch
        %156 = sbr.rel (%p154) target = $region28
      $region27: #{_lambda_.5} parent=23 // pred_region
        %p157 = scmp.lt.s32.totalorder %s16, 1
        %s158 = scalar_select %p157, %s16, 1
        %s159 = smul.addr %s158, 16
        %s160 = smul.addr %s159, 4
        %s161 = scalar_lea.vmem %s0, %s160
      $region28: #{_lambda_.5} parent=23 // pred_fallthru
        _
    $region24: #{_lambda_.5} parent=5 // pred_fallthru
      _
    %p162 = scmp.le.s32.totalorder 1, %s9
    %p163 = scmp.lt.s32.totalorder %s9, 3
    %p164 = pnand %p162, %p163
    %p165 = pneg %p164
    // Predicated region
    $region29: #{_lambda_.5} parent=5 // pred_check
      _
    $region30: #{_lambda_.5} parent=5 // pred_check_branch
      %167 = sbr.rel (%p164) target = $region32
    $region31: #{_lambda_.5} parent=5 // pred_region
      %s168 = ssub.s32 %s9, 1
      %p169 = scmp.lt.s32.totalorder %s18, 1
      %s170 = scalar_select %p169, %s18, 1
      %s171 = smul.addr %s170, 16
      %s172 = smul.addr %s171, 4
      %s173 = scalar_lea.vmem %s0, %s172
      %p174 = pneg %p47
      %p175 = pneg %p44
      %s176 = smul.u32 2, %s19
      %p177 = scmp.lt.s32.totalorder %s176, 1
      %s178 = scalar_select %p177, %s176, 1
      %s179 = smul.addr %s178, 2
      %s180 = smul.addr %s179, 4
      %s181 = scalar_lea.vmem %s1, %s180
      %p182 = pneg %p73
      %p183 = pneg %p70
      %p184 = pneg %p94
      %p185 = pneg %p91
      %p186 = pneg %p122
      %p187 = pneg %p119
      %s188 = smul.u32 2, %s19
      %p189 = scmp.lt.s32.totalorder %s18, 1
      %s190 = scalar_select %p189, %s18, 1
      %p191 = scmp.lt.s32.totalorder %s188, 1
      %s192 = scalar_select %p191, %s188, 1
      %s193 = smul.addr %s190, 2
      %s194 = sadd.s32 %s192, %s193
      %s195 = smul.addr %s194, 4
      %s196 = scalar_lea.vmem %s3, %s195
      %p197 = scmp.lt.s32.totalorder %s18, 1
      %s198 = scalar_select %p197, %s18, 1
      %s199 = smul.addr %s198, 16
      %s200 = smul.addr %s199, 4
      %s201 = scalar_lea.vmem %s0, %s200
      %s202 = smul.u32 2, %s19
      %p203 = scmp.lt.s32.totalorder %s202, 1
      %s204 = scalar_select %p203, %s202, 1
      %s205 = smul.addr %s204, 2
      %s206 = smul.addr %s205, 4
      %s207 = scalar_lea.vmem %s1, %s206
      %s208 = smul.u32 2, %s19
      %s209 = smul.u32 2, %s19
      %p210 = scmp.lt.s32.totalorder %s18, 1
      %s211 = scalar_select %p210, %s18, 1
      %p212 = scmp.lt.s32.totalorder %s209, 1
      %s213 = scalar_select %p212, %s209, 1
      %s214 = smul.addr %s211, 2
      %s215 = sadd.s32 %s213, %s214
      %s216 = smul.addr %s215, 4
      %s217 = scalar_lea.vmem %s3, %s216
      %s218 = smul.u32 2, %s19
      %v220 = vld [vmem:[%s201] sm:$0xf]
      %v221 = vld [vmem:[%s201 + $0x8] sm:$0xf]
      %v224 = vunpack.c.l.b16 %v220
      %v225 = vunpack.c.l.b16 %v221
      %v226 = vpack.c.b16 %v225, %v224
      %228 = vst [vmem:[#allocation2] sm:$0xff] %v226
      %s229 = scalar_lea.vmem %s201, 16
      %v230 = vld [vmem:[%s229] sm:$0xf]
      %v231 = vld [vmem:[%s229 + $0x8] sm:$0xf]
      %v234 = vunpack.c.l.b16 %v230
      %v235 = vunpack.c.l.b16 %v231
      %v236 = vpack.c.b16 %v235, %v234
      %238 = vst [vmem:[#allocation2 + $0x8] sm:$0xff] %v236
      %v239 = vld [vmem:[%s201] sm:$0xff]
      %v240 = vld [vmem:[%s201 + $0x8] sm:$0xff]
      %v243 = vunpack.c.l.b16 %v239
      %v244 = vunpack.c.h.b16 %v239
      %v245 = vunpack.c.l.b16 %v240
      %v246 = vunpack.c.h.b16 %v240
      %v247 = vpack.c.b16 %v245, %v243
      %v248 = vpack.c.b16 %v246, %v244
      %249 = vrot.lane.b32.xlu0 %v247, 127
      %v250 = vpop.permute.xlu0 %249
      %251 = vrot.lane.b32.xlu0 %v248, 127
      %v252 = vpop.permute.xlu0 %251
      %vm253 = vcmask 1039360
      %v254 = vsel %vm253, %v250, %v252
      %256 = vst [vmem:[#allocation2 + $0x10] sm:$0xff] %v254
      %v257 = vld [vmem:[%s229] sm:$0xff]
      %v258 = vld [vmem:[%s229 + $0x8] sm:$0xff]
      %v261 = vunpack.c.l.b16 %v257
      %v262 = vunpack.c.h.b16 %v257
      %v263 = vunpack.c.l.b16 %v258
      %v264 = vunpack.c.h.b16 %v258
      %v265 = vpack.c.b16 %v263, %v261
      %v266 = vpack.c.b16 %v264, %v262
      %267 = vrot.lane.b32.xlu0 %v265, 127
      %v268 = vpop.permute.xlu0 %267
      %269 = vrot.lane.b32.xlu0 %v266, 127
      %v270 = vpop.permute.xlu0 %269
      %v271 = vsel %vm253, %v268, %v270
      %273 = vst [vmem:[#allocation2 + $0x18] sm:$0xff] %v271
      %s274 = scalar_lea.vmem %s201, 32
      %v275 = vld [vmem:[%s274] sm:$0xf]
      %v276 = vld [vmem:[%s274 + $0x8] sm:$0xf]
      %v279 = vunpack.c.l.b16 %v275
      %v280 = vunpack.c.l.b16 %v276
      %v281 = vpack.c.b16 %v280, %v279
      %283 = vst [vmem:[#allocation2 + $0x20] sm:$0xff] %v281
      %s284 = scalar_lea.vmem %s201, 48
      %v285 = vld [vmem:[%s284] sm:$0xf]
      %v286 = vld [vmem:[%s284 + $0x8] sm:$0xf]
      %v289 = vunpack.c.l.b16 %v285
      %v290 = vunpack.c.l.b16 %v286
      %v291 = vpack.c.b16 %v290, %v289
      %293 = vst [vmem:[#allocation2 + $0x28] sm:$0xff] %v291
      %v294 = vld [vmem:[%s274] sm:$0xff]
      %v295 = vld [vmem:[%s274 + $0x8] sm:$0xff]
      %v298 = vunpack.c.l.b16 %v294
      %v299 = vunpack.c.h.b16 %v294
      %v300 = vunpack.c.l.b16 %v295
      %v301 = vunpack.c.h.b16 %v295
      %v302 = vpack.c.b16 %v300, %v298
      %v303 = vpack.c.b16 %v301, %v299
      %304 = vrot.lane.b32.xlu0 %v302, 127
      %v305 = vpop.permute.xlu0 %304
      %306 = vrot.lane.b32.xlu0 %v303, 127
      %v307 = vpop.permute.xlu0 %306
      %v308 = vsel %vm253, %v305, %v307
      %310 = vst [vmem:[#allocation2 + $0x30] sm:$0xff] %v308
      %v311 = vld [vmem:[%s284] sm:$0xff]
      %v312 = vld [vmem:[%s284 + $0x8] sm:$0xff]
      %v315 = vunpack.c.l.b16 %v311
      %v316 = vunpack.c.h.b16 %v311
      %v317 = vunpack.c.l.b16 %v312
      %v318 = vunpack.c.h.b16 %v312
      %v319 = vpack.c.b16 %v317, %v315
      %v320 = vpack.c.b16 %v318, %v316
      %321 = vrot.lane.b32.xlu0 %v319, 127
      %v322 = vpop.permute.xlu0 %321
      %323 = vrot.lane.b32.xlu0 %v320, 127
      %v324 = vpop.permute.xlu0 %323
      %v325 = vsel %vm253, %v322, %v324
      %327 = vst [vmem:[#allocation2 + $0x38] sm:$0xff] %v325
      %v328 = vld [vmem:[%s201] sm:$0xff]
      %v329 = vld [vmem:[%s201 + $0x8] sm:$0xff]
      %v332 = vunpack.c.l.b16 %v328
      %v333 = vunpack.c.h.b16 %v328
      %v334 = vunpack.c.l.b16 %v329
      %v335 = vunpack.c.h.b16 %v329
      %v336 = vpack.c.b16 %v334, %v332
      %v337 = vpack.c.b16 %v335, %v333
      %338 = vrot.lane.b32.xlu0 %v336, 119
      %v339 = vpop.permute.xlu0 %338
      %340 = vrot.lane.b32.xlu0 %v337, 119
      %v341 = vpop.permute.xlu0 %340
      %vm342 = vcmask 973824
      %v343 = vsel %vm342, %v339, %v341
      %345 = vst [vmem:[#allocation2 + $0x40] sm:$0xff] %v343
      %v346 = vld [vmem:[%s229] sm:$0xff]
      %v347 = vld [vmem:[%s229 + $0x8] sm:$0xff]
      %v350 = vunpack.c.l.b16 %v346
      %v351 = vunpack.c.h.b16 %v346
      %v352 = vunpack.c.l.b16 %v347
      %v353 = vunpack.c.h.b16 %v347
      %v354 = vpack.c.b16 %v352, %v350
      %v355 = vpack.c.b16 %v353, %v351
      %356 = vrot.lane.b32.xlu0 %v354, 119
      %v357 = vpop.permute.xlu0 %356
      %358 = vrot.lane.b32.xlu0 %v355, 119
      %v359 = vpop.permute.xlu0 %358
      %v360 = vsel %vm342, %v357, %v359
      %362 = vst [vmem:[#allocation2 + $0x48] sm:$0xff] %v360
      %v363 = vld [vmem:[%s201] sm:$0xff]
      %v364 = vld [vmem:[%s201 + $0x8] sm:$0xff]
      %v367 = vunpack.c.l.b16 %v363
      %v368 = vunpack.c.h.b16 %v363
      %v369 = vunpack.c.l.b16 %v364
      %v370 = vunpack.c.h.b16 %v364
      %v371 = vpack.c.b16 %v369, %v367
      %v372 = vpack.c.b16 %v370, %v368
      %373 = vrot.lane.b32.xlu0 %v371, 118
      %v374 = vpop.permute.xlu0 %373
      %375 = vrot.lane.b32.xlu0 %v372, 118
      %v376 = vpop.permute.xlu0 %375
      %vm377 = vcmask 965632
      %v378 = vsel %vm377, %v374, %v376
      %380 = vst [vmem:[#allocation2 + $0x50] sm:$0xff] %v378
      %v381 = vld [vmem:[%s229] sm:$0xff]
      %v382 = vld [vmem:[%s229 + $0x8] sm:$0xff]
      %v385 = vunpack.c.l.b16 %v381
      %v386 = vunpack.c.h.b16 %v381
      %v387 = vunpack.c.l.b16 %v382
      %v388 = vunpack.c.h.b16 %v382
      %v389 = vpack.c.b16 %v387, %v385
      %v390 = vpack.c.b16 %v388, %v386
      %391 = vrot.lane.b32.xlu0 %v389, 118
      %v392 = vpop.permute.xlu0 %391
      %393 = vrot.lane.b32.xlu0 %v390, 118
      %v394 = vpop.permute.xlu0 %393
      %v395 = vsel %vm377, %v392, %v394
      %397 = vst [vmem:[#allocation2 + $0x58] sm:$0xff] %v395
      %v398 = vld [vmem:[%s274] sm:$0xff]
      %v399 = vld [vmem:[%s274 + $0x8] sm:$0xff]
      %v402 = vunpack.c.l.b16 %v398
      %v403 = vunpack.c.h.b16 %v398
      %v404 = vunpack.c.l.b16 %v399
      %v405 = vunpack.c.h.b16 %v399
      %v406 = vpack.c.b16 %v404, %v402
      %v407 = vpack.c.b16 %v405, %v403
      %408 = vrot.lane.b32.xlu0 %v406, 119
      %v409 = vpop.permute.xlu0 %408
      %410 = vrot.lane.b32.xlu0 %v407, 119
      %v411 = vpop.permute.xlu0 %410
      %v412 = vsel %vm342, %v409, %v411
      %414 = vst [vmem:[#allocation2 + $0x60] sm:$0xff] %v412
      %v415 = vld [vmem:[%s284] sm:$0xff]
      %v416 = vld [vmem:[%s284 + $0x8] sm:$0xff]
      %v419 = vunpack.c.l.b16 %v415
      %v420 = vunpack.c.h.b16 %v415
      %v421 = vunpack.c.l.b16 %v416
      %v422 = vunpack.c.h.b16 %v416
      %v423 = vpack.c.b16 %v421, %v419
      %v424 = vpack.c.b16 %v422, %v420
      %425 = vrot.lane.b32.xlu0 %v423, 119
      %v426 = vpop.permute.xlu0 %425
      %427 = vrot.lane.b32.xlu0 %v424, 119
      %v428 = vpop.permute.xlu0 %427
      %v429 = vsel %vm342, %v426, %v428
      %431 = vst [vmem:[#allocation2 + $0x68] sm:$0xff] %v429
      %v432 = vld [vmem:[%s274] sm:$0xff]
      %v433 = vld [vmem:[%s274 + $0x8] sm:$0xff]
      %v436 = vunpack.c.l.b16 %v432
      %v437 = vunpack.c.h.b16 %v432
      %v438 = vunpack.c.l.b16 %v433
      %v439 = vunpack.c.h.b16 %v433
      %v440 = vpack.c.b16 %v438, %v436
      %v441 = vpack.c.b16 %v439, %v437
      %442 = vrot.lane.b32.xlu0 %v440, 118
      %v443 = vpop.permute.xlu0 %442
      %444 = vrot.lane.b32.xlu0 %v441, 118
      %v445 = vpop.permute.xlu0 %444
      %v446 = vsel %vm377, %v443, %v445
      %448 = vst [vmem:[#allocation2 + $0x70] sm:$0xff] %v446
      %v449 = vld [vmem:[%s284] sm:$0xff]
      %v450 = vld [vmem:[%s284 + $0x8] sm:$0xff]
      %v453 = vunpack.c.l.b16 %v449
      %v454 = vunpack.c.h.b16 %v449
      %v455 = vunpack.c.l.b16 %v450
      %v456 = vunpack.c.h.b16 %v450
      %v457 = vpack.c.b16 %v455, %v453
      %v458 = vpack.c.b16 %v456, %v454
      %459 = vrot.lane.b32.xlu0 %v457, 118
      %v460 = vpop.permute.xlu0 %459
      %461 = vrot.lane.b32.xlu0 %v458, 118
      %v462 = vpop.permute.xlu0 %461
      %v463 = vsel %vm377, %v460, %v462
      %465 = vst [vmem:[#allocation2 + $0x78] sm:$0xff] %v463
      %v466 = vld [vmem:[%s207] sm:$0xff]
      %v467 = vld [vmem:[%s207 + $0x8] sm:$0xff]
      %v468 = vld [vmem:[#allocation2] sm:$0xff]
      %v469 = vld [vmem:[#allocation2 + $0x8] sm:$0xff]
      %v470 = vld [vmem:[#allocation2 + $0x10] sm:$0xff]
      %v471 = vld [vmem:[#allocation2 + $0x18] sm:$0xff]
      %v472 = vld [vmem:[#allocation2 + $0x20] sm:$0xff]
      %v473 = vld [vmem:[#allocation2 + $0x28] sm:$0xff]
      %v474 = vld [vmem:[#allocation2 + $0x30] sm:$0xff]
      %v475 = vld [vmem:[#allocation2 + $0x38] sm:$0xff]
      %v476 = vld [vmem:[#allocation2 + $0x40] sm:$0xff]
      %v477 = vld [vmem:[#allocation2 + $0x48] sm:$0xff]
      %v478 = vld [vmem:[#allocation2 + $0x50] sm:$0xff]
      %v479 = vld [vmem:[#allocation2 + $0x58] sm:$0xff]
      %v480 = vld [vmem:[#allocation2 + $0x60] sm:$0xff]
      %v481 = vld [vmem:[#allocation2 + $0x68] sm:$0xff]
      %v482 = vld [vmem:[#allocation2 + $0x70] sm:$0xff]
      %v483 = vld [vmem:[#allocation2 + $0x78] sm:$0xff]
      %v486 = vunpack.c.l.b16 %v466
      %v487 = vunpack.c.h.b16 %v466
      %v488 = vunpack.c.l.b16 %v467
      %v489 = vunpack.c.h.b16 %v467
      %v490 = vpack.c.b16 %v488, %v486
      %v491 = vpack.c.b16 %v489, %v487
      %494 = vmatprep.subr.bf16.mxu0 0
      %495 = vmatpush1.bf16.msra.mxu0 %v468
      %496 = vmatprep.subr.bf16.mxu0 0
      %497 = vmatpush1.bf16.msra.mxu0 %v469
      %498 = vmatprep.subr.bf16.mxu0 0
      %499 = vmatpush1.bf16.msra.mxu0 %v470
      %500 = vmatprep.subr.bf16.mxu0 0
      %501 = vmatpush1.bf16.msra.mxu0 %v471
      %502 = vmatprep.subr.bf16.mxu0 0
      %503 = vmatpush1.bf16.msra.mxu0 %v472
      %504 = vmatprep.subr.bf16.mxu0 0
      %505 = vmatpush1.bf16.msra.mxu0 %v473
      %506 = vmatprep.subr.bf16.mxu0 0
      %507 = vmatpush1.bf16.msra.mxu0 %v474
      %508 = vmatprep.subr.bf16.mxu0 0
      %509 = vmatpush1.bf16.msra.mxu0 %v475
      %510 = vmatprep.subr.bf16.mxu0 0
      %511 = vmatpush1.bf16.msra.mxu0 %v476
      %512 = vmatprep.subr.bf16.mxu0 0
      %513 = vmatpush1.bf16.msra.mxu0 %v477
      %514 = vmatprep.subr.bf16.mxu0 0
      %515 = vmatpush1.bf16.msra.mxu0 %v478
      %516 = vmatprep.subr.bf16.mxu0 0
      %517 = vmatpush1.bf16.msra.mxu0 %v479
      %518 = vmatprep.subr.bf16.mxu0 0
      %519 = vmatpush1.bf16.msra.mxu0 %v480
      %520 = vmatprep.subr.bf16.mxu0 0
      %521 = vmatpush1.bf16.msra.mxu0 %v481
      %522 = vmatprep.subr.bf16.mxu0 0
      %523 = vmatpush1.bf16.msra.mxu0 %v482
      %524 = vmatprep.subr.bf16.mxu0 0
      %525 = vmatpush1.bf16.msra.mxu0 %v483
      %526 = vmatprep.mubr.bf16.mxu0 %v491
      %527 = vmatmul.mubr.bf16.gmra.mrb[0].mxu0 %v490
      %v528 = vpop.f32.mrb[0].mxu0
      %v529 = vadd.f32 0.0, %v528
      %v530 = vpop.f32.mrb[0].mxu0
      %v531 = vpop.f32.mrb[0].mxu0
      %v532 = vadd.f32 0.0, %v531
      %v533 = vpop.f32.mrb[0].mxu0
      %534 = vdwg.mxu0
      %v535 = vld [vmem:[%s2] sm:$0x1]
      %v537 = vlaneseq
      %v538 = vshrl.u32 %v537, 7
      %v539 = vsub.s32 0, %v538
      %v540 = vrot.slane %v535, %v539
      %v542 = vmul.f32 %v529, %v540
      %v543 = vmul.f32 %v532, %v540
      %544 = vadd.xlane.f32.xlu0 %v542
      %v545 = vpop.xlane.xlu0 %544
      %546 = vadd.xlane.f32.xlu0 %v543
      %v547 = vpop.xlane.xlu0 %546
      %v548 = vmul.f32 %v545, 0.015625
      %v549 = vmul.f32 %v547, 0.015625
      %v550 = vsub.f32 %v529, %v548
      %v551 = vsub.f32 %v532, %v549
      %v552 = vmul.f32 %v550, %v550
      %v553 = vmul.f32 %v551, %v551
      %v554 = vmul.f32 %v552, %v540
      %v555 = vmul.f32 %v553, %v540
      %556 = vadd.xlane.f32.xlu0 %v554
      %v557 = vpop.xlane.xlu0 %556
      %558 = vadd.xlane.f32.xlu0 %v555
      %v559 = vpop.xlane.xlu0 %558
      %v560 = vmul.f32 %v557, 0.015625
      %v561 = vmul.f32 %v559, 0.015625
      %v562 = vadd.f32 %v560, 1e-05
      %v563 = vadd.f32 %v561, 1e-05
      %v564 = vrsqrt.pop %v562
      %v565 = vrsqrt.pop %v563
      %v566 = vmul.f32 %v550, %v564
      %v567 = vmul.f32 %v551, %v565
      %vm568 = vcmp.gt.f32.partialorder %v566, 0.0
      %vm569 = vcmp.gt.f32.partialorder %v567, 0.0
      %v570 = vmul.f32 %v566, 0.2
      %v571 = vmul.f32 %v567, 0.2
      %v572 = vsel %vm568, %v566, %v570
      %v573 = vsel %vm569, %v567, %v571
      %v574 = vpack.c.bf16 %v573, %v572
      %v576 = vunpack.c.l.b16 %v574
      %v577 = vunpack.c.h.b16 %v574
      %v578 = vpack.c.b16 %v576, %v576
      %v579 = vpack.c.b16 %v577, %v577
      %582 = vst [vmem:[%s217] sm:$0xf] %v578
      %583 = vst [vmem:[%s217 + $0x4] sm:$0xf] %v579
      %s584 = smul.u32 2, %s19
      %p585 = scmp.lt.s32.totalorder %s18, 1
      %s586 = scalar_select %p585, %s18, 1
      %p587 = scmp.lt.s32.totalorder %s584, 1
      %s588 = scalar_select %p587, %s584, 1
      %s589 = smul.addr %s586, 2
      %s590 = sadd.s32 %s588, %s589
      %s591 = smul.addr %s590, 4
      %s592 = scalar_lea.vmem %s3, %s591
      // Predicated region
      $region33: #{_lambda_.5} parent=31 // pred_check
        %p593 = pneg %p119
      $region34: #{_lambda_.5} parent=31 // pred_check_branch
        %595 = sbr.rel (%p593) target = $region36
      $region35: #{_lambda_.5} parent=31 // pred_region
        %s596 = smul.u32 2, %s19
      $region36: #{_lambda_.5} parent=31 // pred_fallthru
        _
    $region32: #{_lambda_.5} parent=5 // pred_fallthru
      _
    %p597 = scmp.le.s32.totalorder 2, %s9
    // Predicated region
    $region37: #{_lambda_.5} parent=5 // pred_check
      %p598 = pneg %p597
    $region38: #{_lambda_.5} parent=5 // pred_check_branch
      %600 = sbr.rel (%p598) target = $region40
    $region39: #{_lambda_.5} parent=5 // pred_region
      %s601 = ssub.s32 %s9, 2
      // Predicated region
      $region41: #{_lambda_.5} parent=39 // pred_check
        %p602 = pneg %p125
      $region42: #{_lambda_.5} parent=39 // pred_check_branch
        %604 = sbr.rel (%p602) target = $region44
      $region43: #{_lambda_.5} parent=39 // pred_region
        %s605 = smul.u32 2, %s21
        %p606 = scmp.lt.s32.totalorder %s20, 1
        %s607 = scalar_select %p606, %s20, 1
        %p608 = scmp.lt.s32.totalorder %s605, 1
        %s609 = scalar_select %p608, %s605, 1
        %s610 = smul.addr %s607, 2
        %s611 = sadd.s32 %s609, %s610
        %s612 = smul.addr %s611, 4
        %s613 = scalar_lea.vmem %s3, %s612
      $region44: #{_lambda_.5} parent=39 // pred_fallthru
        _
    $region40: #{_lambda_.5} parent=5 // pred_fallthru
      _
  $region6: #{_lambda_.5} parent=0 // loop_footer
    %s13 = sadd.s32 1, %s9
  $region7: #{_lambda_.5} parent=0 // loop_footer_branch
    %8 = sbr.rel target = $region3
  $region8: #{_lambda_.5} parent=0 // loop_exit
    _

// kernel: _lambda_.6
$region0: #{_lambda_.6}
  #allocation0 [shape = 'u32[]', space=smem, size = 0x4, offset = 0x4, fixed_abs, tag = 'smem constant byte address 0x4 - core index']
  #allocation1 [shape = 'u32[144,128]{1,0:T(1,128)}', space=vmem, size = 0x12000, scoped, tag = 'internal scratch']
  #allocation2 [shape = 'bf16[256,128]{1,0:T(16,128)(2,1)}', space=vmem, size = 0x10000, scoped, tag = 'scratch operand']
  %s0 = inlined_call_operand.vmem [shape: bf16[2,4,16,256], index: 0, kind: input, shape index: {}]
  %s1 = inlined_call_operand.vmem [shape: bf16[32,256], index: 1, kind: input, shape index: {}]
  %s2 = inlined_call_operand.vmem [shape: f32[1,128], index: 2, kind: input, shape index: {}]
  %s3 = inlined_call_operand.vmem [shape: bf16[2,32,128], index: 3, kind: output, shape index: {}]
  %s4 = sld [smem:[#allocation0]]
  $region45: #{_lambda_.6} parent=0
    _
  %s6 = ssub.s32 1, %s4
  %s7 = scalar_select 0, %s6, %s4
  loop: start=0, step=1, limit=4
  $region2: #{_lambda_.6} parent=0 // loop_pre_header
    _
  $region3: #{_lambda_.6} parent=0 // loop_header
    %s9 = sphi 0, %s13
    %p10 = scmp.ge.s32.totalorder %s9, 4
    %s16 = sphi 0, %s28
    %s17 = sphi 0, %s24
    %s18 = sphi 0, %s16
    %s19 = sphi 0, %s17
    %s20 = sphi 0, %s18
    %s21 = sphi 0, %s19
    %s31 = sphi 0, %s33
    %s34 = sphi 0, %s31
    %s35 = sphi 0, %s34
    %s51 = sphi 0, %s35
    %s57 = sphi 0, %s59
    %s60 = sphi 0, %s57
    %s61 = sphi 0, %s60
    %s77 = sphi 0, %s61
    %s81 = sphi 0, %s81
    %s83 = sphi 0, %s81
    %s84 = sphi 0, %s83
    %s98 = sphi 0, %s84
    %s106 = sphi 0, %s108
    %s109 = sphi 0, %s106
    %s110 = sphi 0, %s109
    %s126 = sphi 0, %s110
  $region4: #{_lambda_.6} parent=0 // loop_header_branch
    %12 = sbr.rel (%p10) target = $region8
  $region5: #{_lambda_.6} parent=0 // loop_body
    %s14 = ssub.s32 %s9, 1
    %s15 = ssub.s32 %s9, 2
    %s22 = sadd.s32 1, %s17
    %p23 = scmp.ge.s32.totalorder %s22, 1
    %s24 = scalar_select %p23, 0, %s22
    %s25 = sadd.s32 1, %s16
    %s26 = scalar_select %p23, %s25, %s16
    %p27 = scmp.ge.s32.totalorder %s26, 2
    %s28 = scalar_select %p27, 0, %s26
    %s29 = ssub.s32 %s16, %s28
    %p30 = scmp.eq.s32.totalorder %s29, 0
    %s32 = sadd.s32 %s31, 1
    %s33 = scalar_select %p30, %s31, %s32
    %p36 = pneg %p30
    %p37 = scmp.eq.s32.totalorder %s9, 1
    %p38 = por %p36, %p37
    %p39 = scmp.ne.s32.totalorder %s31, %s34
    %p40 = scmp.eq.s32.totalorder %s9, 0
    %p41 = por %p39, %p40
    %p42 = scmp.ne.s32.totalorder %s31, %s34
    %p43 = scmp.eq.s32.totalorder %s14, 1
    %p44 = por %p42, %p43
    %p45 = scmp.ne.s32.totalorder %s34, %s35
    %p46 = scmp.eq.s32.totalorder %s14, 0
    %p47 = por %p45, %p46
    %p48 = scmp.ne.s32.totalorder %s34, %s35
    %p49 = scmp.eq.s32.totalorder %s15, 1
    %p50 = por %p48, %p49
    %p52 = scmp.ne.s32.totalorder %s35, %s51
    %p53 = scmp.eq.s32.totalorder %s15, 0
    %p54 = por %p52, %p53
    %s55 = ssub.s32 %s17, %s24
    %p56 = scmp.eq.s32.totalorder %s55, 0
    %s58 = sadd.s32 %s57, 1
    %s59 = scalar_select %p56, %s57, %s58
    %p62 = pneg %p56
    %p63 = scmp.eq.s32.totalorder %s9, 1
    %p64 = por %p62, %p63
    %p65 = scmp.ne.s32.totalorder %s57, %s60
    %p66 = scmp.eq.s32.totalorder %s9, 0
    %p67 = por %p65, %p66
    %p68 = scmp.ne.s32.totalorder %s57, %s60
    %p69 = scmp.eq.s32.totalorder %s14, 1
    %p70 = por %p68, %p69
    %p71 = scmp.ne.s32.totalorder %s60, %s61
    %p72 = scmp.eq.s32.totalorder %s14, 0
    %p73 = por %p71, %p72
    %p74 = scmp.ne.s32.totalorder %s60, %s61
    %p75 = scmp.eq.s32.totalorder %s15, 1
    %p76 = por %p74, %p75
    %p78 = scmp.ne.s32.totalorder %s61, %s77
    %p79 = scmp.eq.s32.totalorder %s15, 0
    %p80 = por %p78, %p79
    %s82 = sadd.s32 %s81, 1
    %p85 = scmp.eq.s32.totalorder %s9, 1
    %p86 = scmp.ne.s32.totalorder %s81, %s83
    %p87 = scmp.eq.s32.totalorder %s9, 0
    %p88 = por %p86, %p87
    %p89 = scmp.ne.s32.totalorder %s81, %s83
    %p90 = scmp.eq.s32.totalorder %s14, 1
    %p91 = por %p89, %p90
    %p92 = scmp.ne.s32.totalorder %s83, %s84
    %p93 = scmp.eq.s32.totalorder %s14, 0
    %p94 = por %p92, %p93
    %p95 = scmp.ne.s32.totalorder %s83, %s84
    %p96 = scmp.eq.s32.totalorder %s15, 1
    %p97 = por %p95, %p96
    %p99 = scmp.ne.s32.totalorder %s84, %s98
    %p100 = scmp.eq.s32.totalorder %s15, 0
    %p101 = por %p99, %p100
    %s102 = ssub.s32 %s16, %s28
    %s103 = ssub.s32 %s17, %s24
    %s104 = sor.u32 %s102, %s103
    %p105 = scmp.eq.s32.totalorder %s104, 0
    %s107 = sadd.s32 %s106, 1
    %s108 = scalar_select %p105, %s106, %s107
    %p111 = pneg %p105
    %p112 = scmp.eq.s32.totalorder %s9, 1
    %p113 = por %p111, %p112
    %p114 = scmp.ne.s32.totalorder %s106, %s109
    %p115 = scmp.eq.s32.totalorder %s9, 0
    %p116 = por %p114, %p115
    %p117 = scmp.ne.s32.totalorder %s106, %s109
    %p118 = scmp.eq.s32.totalorder %s14, 1
    %p119 = por %p117, %p118
    %p120 = scmp.ne.s32.totalorder %s109, %s110
    %p121 = scmp.eq.s32.totalorder %s14, 0
    %p122 = por %p120, %p121
    %p123 = scmp.ne.s32.totalorder %s109, %s110
    %p124 = scmp.eq.s32.totalorder %s15, 1
    %p125 = por %p123, %p124
    %p127 = scmp.ne.s32.totalorder %s110, %s126
    %p128 = scmp.eq.s32.totalorder %s15, 0
    %p129 = por %p127, %p128
    %p130 = scmp.le.s32.totalorder 1, %s9
    %p131 = scmp.lt.s32.totalorder %s9, 3
    %p132 = pnand %p130, %p131
    %p133 = pneg %p132
    // Predicated region
    $region9: #{_lambda_.6} parent=5 // pred_check
      _
    $region10: #{_lambda_.6} parent=5 // pred_check_branch
      %135 = sbr.rel (%p132) target = $region12
    $region11: #{_lambda_.6} parent=5 // pred_region
      %s136 = ssub.s32 %s9, 1
      // Predicated region
      $region13: #{_lambda_.6} parent=11 // pred_check
        %p137 = pneg %p73
      $region14: #{_lambda_.6} parent=11 // pred_check_branch
        %139 = sbr.rel (%p137) target = $region16
      $region15: #{_lambda_.6} parent=11 // pred_region
        %s140 = smul.u32 4, %s19
        %p141 = scmp.lt.s32.totalorder %s140, 3
        %s142 = scalar_select %p141, %s140, 3
        %s143 = smul.addr %s142, 2
        %s144 = smul.addr %s143, 4
        %s145 = scalar_lea.vmem %s1, %s144
        %s146 = smul.u32 4, %s19
      $region16: #{_lambda_.6} parent=11 // pred_fallthru
        _
      // Predicated region
      $region17: #{_lambda_.6} parent=11 // pred_check
        %p147 = pneg %p94
      $region18: #{_lambda_.6} parent=11 // pred_check_branch
        %149 = sbr.rel (%p147) target = $region20
      $region19: #{_lambda_.6} parent=11 // pred_region
        _
      $region20: #{_lambda_.6} parent=11 // pred_fallthru
        _
    $region12: #{_lambda_.6} parent=5 // pred_fallthru
      _
    %p150 = scmp.lt.s32.totalorder %s9, 2
    // Predicated region
    $region21: #{_lambda_.6} parent=5 // pred_check
      %p151 = pneg %p150
    $region22: #{_lambda_.6} parent=5 // pred_check_branch
      %153 = sbr.rel (%p151) target = $region24
    $region23: #{_lambda_.6} parent=5 // pred_region
      // Predicated region
      $region25: #{_lambda_.6} parent=23 // pred_check
        %p154 = pneg %p41
      $region26: #{_lambda_.6} parent=23 // pred_check_branch
        %156 = sbr.rel (%p154) target = $region28
      $region27: #{_lambda_.6} parent=23 // pred_region
        %p157 = scmp.lt.s32.totalorder %s16, 1
        %s158 = scalar_select %p157, %s16, 1
        %s159 = smul.addr %s158, 16
        %s160 = smul.addr %s159, 4
        %s161 = scalar_lea.vmem %s0, %s160
      $region28: #{_lambda_.6} parent=23 // pred_fallthru
        _
    $region24: #{_lambda_.6} parent=5 // pred_fallthru
      _
    %p162 = scmp.le.s32.totalorder 1, %s9
    %p163 = scmp.lt.s32.totalorder %s9, 3
    %p164 = pnand %p162, %p163
    %p165 = pneg %p164
    // Predicated region
    $region29: #{_lambda_.6} parent=5 // pred_check
      _
    $region30: #{_lambda_.6} parent=5 // pred_check_branch
      %167 = sbr.rel (%p164) target = $region32
    $region31: #{_lambda_.6} parent=5 // pred_region
      %s168 = ssub.s32 %s9, 1
      %p169 = scmp.lt.s32.totalorder %s18, 1
      %s170 = scalar_select %p169, %s18, 1
      %s171 = smul.addr %s170, 16
      %s172 = smul.addr %s171, 4
      %s173 = scalar_lea.vmem %s0, %s172
      %p174 = pneg %p47
      %p175 = pneg %p44
      %s176 = smul.u32 4, %s19
      %p177 = scmp.lt.s32.totalorder %s176, 3
      %s178 = scalar_select %p177, %s176, 3
      %s179 = smul.addr %s178, 2
      %s180 = smul.addr %s179, 4
      %s181 = scalar_lea.vmem %s1, %s180
      %p182 = pneg %p73
      %p183 = pneg %p70
      %p184 = pneg %p94
      %p185 = pneg %p91
      %p186 = pneg %p122
      %p187 = pneg %p119
      %s188 = smul.u32 4, %s19
      %p189 = scmp.lt.s32.totalorder %s18, 1
      %s190 = scalar_select %p189, %s18, 1
      %p191 = scmp.lt.s32.totalorder %s188, 3
      %s192 = scalar_select %p191, %s188, 3
      %s193 = smul.addr %s190, 4
      %s194 = sadd.s32 %s192, %s193
      %s195 = smul.addr %s194, 4
      %s196 = scalar_lea.vmem %s3, %s195
      %p197 = scmp.lt.s32.totalorder %s18, 1
      %s198 = scalar_select %p197, %s18, 1
      %s199 = smul.addr %s198, 16
      %s200 = smul.addr %s199, 4
      %s201 = scalar_lea.vmem %s0, %s200
      %s202 = smul.u32 4, %s19
      %p203 = scmp.lt.s32.totalorder %s202, 3
      %s204 = scalar_select %p203, %s202, 3
      %s205 = smul.addr %s204, 2
      %s206 = smul.addr %s205, 4
      %s207 = scalar_lea.vmem %s1, %s206
      %s208 = smul.u32 4, %s19
      %s209 = smul.u32 4, %s19
      %p210 = scmp.lt.s32.totalorder %s18, 1
      %s211 = scalar_select %p210, %s18, 1
      %p212 = scmp.lt.s32.totalorder %s209, 3
      %s213 = scalar_select %p212, %s209, 3
      %s214 = smul.addr %s211, 4
      %s215 = sadd.s32 %s213, %s214
      %s216 = smul.addr %s215, 4
      %s217 = scalar_lea.vmem %s3, %s216
      %s218 = smul.u32 4, %s19
      %v220 = vld [vmem:[%s201] sm:$0xf]
      %v221 = vld [vmem:[%s201 + $0x8] sm:$0xf]
      %v224 = vunpack.c.l.b16 %v220
      %v225 = vunpack.c.l.b16 %v221
      %v226 = vpack.c.b16 %v225, %v224
      %228 = vst [vmem:[#allocation2] sm:$0xff] %v226
      %s229 = scalar_lea.vmem %s201, 16
      %v230 = vld [vmem:[%s229] sm:$0xf]
      %v231 = vld [vmem:[%s229 + $0x8] sm:$0xf]
      %v234 = vunpack.c.l.b16 %v230
      %v235 = vunpack.c.l.b16 %v231
      %v236 = vpack.c.b16 %v235, %v234
      %238 = vst [vmem:[#allocation2 + $0x8] sm:$0xff] %v236
      %v239 = vld [vmem:[%s201] sm:$0xff]
      %v240 = vld [vmem:[%s201 + $0x8] sm:$0xff]
      %v243 = vunpack.c.l.b16 %v239
      %v244 = vunpack.c.h.b16 %v239
      %v245 = vunpack.c.l.b16 %v240
      %v246 = vunpack.c.h.b16 %v240
      %v247 = vpack.c.b16 %v245, %v243
      %v248 = vpack.c.b16 %v246, %v244
      %249 = vrot.lane.b32.xlu0 %v247, 127
      %v250 = vpop.permute.xlu0 %249
      %251 = vrot.lane.b32.xlu0 %v248, 127
      %v252 = vpop.permute.xlu0 %251
      %vm253 = vcmask 1039360
      %v254 = vsel %vm253, %v250, %v252
      %256 = vst [vmem:[#allocation2 + $0x10] sm:$0xff] %v254
      %v257 = vld [vmem:[%s229] sm:$0xff]
      %v258 = vld [vmem:[%s229 + $0x8] sm:$0xff]
      %v261 = vunpack.c.l.b16 %v257
      %v262 = vunpack.c.h.b16 %v257
      %v263 = vunpack.c.l.b16 %v258
      %v264 = vunpack.c.h.b16 %v258
      %v265 = vpack.c.b16 %v263, %v261
      %v266 = vpack.c.b16 %v264, %v262
      %267 = vrot.lane.b32.xlu0 %v265, 127
      %v268 = vpop.permute.xlu0 %267
      %269 = vrot.lane.b32.xlu0 %v266, 127
      %v270 = vpop.permute.xlu0 %269
      %v271 = vsel %vm253, %v268, %v270
      %273 = vst [vmem:[#allocation2 + $0x18] sm:$0xff] %v271
      %s274 = scalar_lea.vmem %s201, 32
      %v275 = vld [vmem:[%s274] sm:$0xf]
      %v276 = vld [vmem:[%s274 + $0x8] sm:$0xf]
      %v279 = vunpack.c.l.b16 %v275
      %v280 = vunpack.c.l.b16 %v276
      %v281 = vpack.c.b16 %v280, %v279
      %283 = vst [vmem:[#allocation2 + $0x20] sm:$0xff] %v281
      %s284 = scalar_lea.vmem %s201, 48
      %v285 = vld [vmem:[%s284] sm:$0xf]
      %v286 = vld [vmem:[%s284 + $0x8] sm:$0xf]
      %v289 = vunpack.c.l.b16 %v285
      %v290 = vunpack.c.l.b16 %v286
      %v291 = vpack.c.b16 %v290, %v289
      %293 = vst [vmem:[#allocation2 + $0x28] sm:$0xff] %v291
      %v294 = vld [vmem:[%s274] sm:$0xff]
      %v295 = vld [vmem:[%s274 + $0x8] sm:$0xff]
      %v298 = vunpack.c.l.b16 %v294
      %v299 = vunpack.c.h.b16 %v294
      %v300 = vunpack.c.l.b16 %v295
      %v301 = vunpack.c.h.b16 %v295
      %v302 = vpack.c.b16 %v300, %v298
      %v303 = vpack.c.b16 %v301, %v299
      %304 = vrot.lane.b32.xlu0 %v302, 127
      %v305 = vpop.permute.xlu0 %304
      %306 = vrot.lane.b32.xlu0 %v303, 127
      %v307 = vpop.permute.xlu0 %306
      %v308 = vsel %vm253, %v305, %v307
      %310 = vst [vmem:[#allocation2 + $0x30] sm:$0xff] %v308
      %v311 = vld [vmem:[%s284] sm:$0xff]
      %v312 = vld [vmem:[%s284 + $0x8] sm:$0xff]
      %v315 = vunpack.c.l.b16 %v311
      %v316 = vunpack.c.h.b16 %v311
      %v317 = vunpack.c.l.b16 %v312
      %v318 = vunpack.c.h.b16 %v312
      %v319 = vpack.c.b16 %v317, %v315
      %v320 = vpack.c.b16 %v318, %v316
      %321 = vrot.lane.b32.xlu0 %v319, 127
      %v322 = vpop.permute.xlu0 %321
      %323 = vrot.lane.b32.xlu0 %v320, 127
      %v324 = vpop.permute.xlu0 %323
      %v325 = vsel %vm253, %v322, %v324
      %327 = vst [vmem:[#allocation2 + $0x38] sm:$0xff] %v325
      %v328 = vld [vmem:[%s201] sm:$0xff]
      %v329 = vld [vmem:[%s201 + $0x8] sm:$0xff]
      %v332 = vunpack.c.l.b16 %v328
      %v333 = vunpack.c.h.b16 %v328
      %v334 = vunpack.c.l.b16 %v329
      %v335 = vunpack.c.h.b16 %v329
      %v336 = vpack.c.b16 %v334, %v332
      %v337 = vpack.c.b16 %v335, %v333
      %338 = vrot.lane.b32.xlu0 %v336, 123
      %v339 = vpop.permute.xlu0 %338
      %340 = vrot.lane.b32.xlu0 %v337, 123
      %v341 = vpop.permute.xlu0 %340
      %vm342 = vcmask 1006592
      %v343 = vsel %vm342, %v339, %v341
      %345 = vst [vmem:[#allocation2 + $0x40] sm:$0xff] %v343
      %v346 = vld [vmem:[%s229] sm:$0xff]
      %v347 = vld [vmem:[%s229 + $0x8] sm:$0xff]
      %v350 = vunpack.c.l.b16 %v346
      %v351 = vunpack.c.h.b16 %v346
      %v352 = vunpack.c.l.b16 %v347
      %v353 = vunpack.c.h.b16 %v347
      %v354 = vpack.c.b16 %v352, %v350
      %v355 = vpack.c.b16 %v353, %v351
      %356 = vrot.lane.b32.xlu0 %v354, 123
      %v357 = vpop.permute.xlu0 %356
      %358 = vrot.lane.b32.xlu0 %v355, 123
      %v359 = vpop.permute.xlu0 %358
      %v360 = vsel %vm342, %v357, %v359
      %362 = vst [vmem:[#allocation2 + $0x48] sm:$0xff] %v360
      %v363 = vld [vmem:[%s201] sm:$0xff]
      %v364 = vld [vmem:[%s201 + $0x8] sm:$0xff]
      %v367 = vunpack.c.l.b16 %v363
      %v368 = vunpack.c.h.b16 %v363
      %v369 = vunpack.c.l.b16 %v364
      %v370 = vunpack.c.h.b16 %v364
      %v371 = vpack.c.b16 %v369, %v367
      %v372 = vpack.c.b16 %v370, %v368
      %373 = vrot.lane.b32.xlu0 %v371, 122
      %v374 = vpop.permute.xlu0 %373
      %375 = vrot.lane.b32.xlu0 %v372, 122
      %v376 = vpop.permute.xlu0 %375
      %vm377 = vcmask 998400
      %v378 = vsel %vm377, %v374, %v376
      %380 = vst [vmem:[#allocation2 + $0x50] sm:$0xff] %v378
      %v381 = vld [vmem:[%s229] sm:$0xff]
      %v382 = vld [vmem:[%s229 + $0x8] sm:$0xff]
      %v385 = vunpack.c.l.b16 %v381
      %v386 = vunpack.c.h.b16 %v381
      %v387 = vunpack.c.l.b16 %v382
      %v388 = vunpack.c.h.b16 %v382
      %v389 = vpack.c.b16 %v387, %v385
      %v390 = vpack.c.b16 %v388, %v386
      %391 = vrot.lane.b32.xlu0 %v389, 122
      %v392 = vpop.permute.xlu0 %391
      %393 = vrot.lane.b32.xlu0 %v390, 122
      %v394 = vpop.permute.xlu0 %393
      %v395 = vsel %vm377, %v392, %v394
      %397 = vst [vmem:[#allocation2 + $0x58] sm:$0xff] %v395
      %v398 = vld [vmem:[%s274] sm:$0xff]
      %v399 = vld [vmem:[%s274 + $0x8] sm:$0xff]
      %v402 = vunpack.c.l.b16 %v398
      %v403 = vunpack.c.h.b16 %v398
      %v404 = vunpack.c.l.b16 %v399
      %v405 = vunpack.c.h.b16 %v399
      %v406 = vpack.c.b16 %v404, %v402
      %v407 = vpack.c.b16 %v405, %v403
      %408 = vrot.lane.b32.xlu0 %v406, 123
      %v409 = vpop.permute.xlu0 %408
      %410 = vrot.lane.b32.xlu0 %v407, 123
      %v411 = vpop.permute.xlu0 %410
      %v412 = vsel %vm342, %v409, %v411
      %414 = vst [vmem:[#allocation2 + $0x60] sm:$0xff] %v412
      %v415 = vld [vmem:[%s284] sm:$0xff]
      %v416 = vld [vmem:[%s284 + $0x8] sm:$0xff]
      %v419 = vunpack.c.l.b16 %v415
      %v420 = vunpack.c.h.b16 %v415
      %v421 = vunpack.c.l.b16 %v416
      %v422 = vunpack.c.h.b16 %v416
      %v423 = vpack.c.b16 %v421, %v419
      %v424 = vpack.c.b16 %v422, %v420
      %425 = vrot.lane.b32.xlu0 %v423, 123
      %v426 = vpop.permute.xlu0 %425
      %427 = vrot.lane.b32.xlu0 %v424, 123
      %v428 = vpop.permute.xlu0 %427
      %v429 = vsel %vm342, %v426, %v428
      %431 = vst [vmem:[#allocation2 + $0x68] sm:$0xff] %v429
      %v432 = vld [vmem:[%s274] sm:$0xff]
      %v433 = vld [vmem:[%s274 + $0x8] sm:$0xff]
      %v436 = vunpack.c.l.b16 %v432
      %v437 = vunpack.c.h.b16 %v432
      %v438 = vunpack.c.l.b16 %v433
      %v439 = vunpack.c.h.b16 %v433
      %v440 = vpack.c.b16 %v438, %v436
      %v441 = vpack.c.b16 %v439, %v437
      %442 = vrot.lane.b32.xlu0 %v440, 122
      %v443 = vpop.permute.xlu0 %442
      %444 = vrot.lane.b32.xlu0 %v441, 122
      %v445 = vpop.permute.xlu0 %444
      %v446 = vsel %vm377, %v443, %v445
      %448 = vst [vmem:[#allocation2 + $0x70] sm:$0xff] %v446
      %v449 = vld [vmem:[%s284] sm:$0xff]
      %v450 = vld [vmem:[%s284 + $0x8] sm:$0xff]
      %v453 = vunpack.c.l.b16 %v449
      %v454 = vunpack.c.h.b16 %v449
      %v455 = vunpack.c.l.b16 %v450
      %v456 = vunpack.c.h.b16 %v450
      %v457 = vpack.c.b16 %v455, %v453
      %v458 = vpack.c.b16 %v456, %v454
      %459 = vrot.lane.b32.xlu0 %v457, 122
      %v460 = vpop.permute.xlu0 %459
      %461 = vrot.lane.b32.xlu0 %v458, 122
      %v462 = vpop.permute.xlu0 %461
      %v463 = vsel %vm377, %v460, %v462
      %465 = vst [vmem:[#allocation2 + $0x78] sm:$0xff] %v463
      %v466 = vld [vmem:[%s207] sm:$0xff]
      %v467 = vld [vmem:[%s207 + $0x8] sm:$0xff]
      %v468 = vld [vmem:[%s207 + $0x10] sm:$0xff]
      %v469 = vld [vmem:[%s207 + $0x18] sm:$0xff]
      %v470 = vld [vmem:[#allocation2] sm:$0xff]
      %v471 = vld [vmem:[#allocation2 + $0x8] sm:$0xff]
      %v472 = vld [vmem:[#allocation2 + $0x10] sm:$0xff]
      %v473 = vld [vmem:[#allocation2 + $0x18] sm:$0xff]
      %v474 = vld [vmem:[#allocation2 + $0x20] sm:$0xff]
      %v475 = vld [vmem:[#allocation2 + $0x28] sm:$0xff]
      %v476 = vld [vmem:[#allocation2 + $0x30] sm:$0xff]
      %v477 = vld [vmem:[#allocation2 + $0x38] sm:$0xff]
      %v478 = vld [vmem:[#allocation2 + $0x40] sm:$0xff]
      %v479 = vld [vmem:[#allocation2 + $0x48] sm:$0xff]
      %v480 = vld [vmem:[#allocation2 + $0x50] sm:$0xff]
      %v481 = vld [vmem:[#allocation2 + $0x58] sm:$0xff]
      %v482 = vld [vmem:[#allocation2 + $0x60] sm:$0xff]
      %v483 = vld [vmem:[#allocation2 + $0x68] sm:$0xff]
      %v484 = vld [vmem:[#allocation2 + $0x70] sm:$0xff]
      %v485 = vld [vmem:[#allocation2 + $0x78] sm:$0xff]
      %v490 = vunpack.c.l.b16 %v466
      %v491 = vunpack.c.h.b16 %v466
      %v492 = vunpack.c.l.b16 %v467
      %v493 = vunpack.c.h.b16 %v467
      %v494 = vunpack.c.l.b16 %v468
      %v495 = vunpack.c.h.b16 %v468
      %v496 = vunpack.c.l.b16 %v469
      %v497 = vunpack.c.h.b16 %v469
      %v498 = vpack.c.b16 %v492, %v490
      %v499 = vpack.c.b16 %v493, %v491
      %v500 = vpack.c.b16 %v496, %v494
      %v501 = vpack.c.b16 %v497, %v495
      %506 = vmatprep.subr.bf16.mxu0 0
      %507 = vmatpush1.bf16.msra.mxu0 %v470
      %508 = vmatprep.subr.bf16.mxu0 0
      %509 = vmatpush1.bf16.msra.mxu0 %v471
      %510 = vmatprep.subr.bf16.mxu0 0
      %511 = vmatpush1.bf16.msra.mxu0 %v472
      %512 = vmatprep.subr.bf16.mxu0 0
      %513 = vmatpush1.bf16.msra.mxu0 %v473
      %514 = vmatprep.subr.bf16.mxu0 0
      %515 = vmatpush1.bf16.msra.mxu0 %v474
      %516 = vmatprep.subr.bf16.mxu0 0
      %517 = vmatpush1.bf16.msra.mxu0 %v475
      %518 = vmatprep.subr.bf16.mxu0 0
      %519 = vmatpush1.bf16.msra.mxu0 %v476
      %520 = vmatprep.subr.bf16.mxu0 0
      %521 = vmatpush1.bf16.msra.mxu0 %v477
      %522 = vmatprep.subr.bf16.mxu0 0
      %523 = vmatpush1.bf16.msra.mxu0 %v478
      %524 = vmatprep.subr.bf16.mxu0 0
      %525 = vmatpush1.bf16.msra.mxu0 %v479
      %526 = vmatprep.subr.bf16.mxu0 0
      %527 = vmatpush1.bf16.msra.mxu0 %v480
      %528 = vmatprep.subr.bf16.mxu0 0
      %529 = vmatpush1.bf16.msra.mxu0 %v481
      %530 = vmatprep.subr.bf16.mxu0 0
      %531 = vmatpush1.bf16.msra.mxu0 %v482
      %532 = vmatprep.subr.bf16.mxu0 0
      %533 = vmatpush1.bf16.msra.mxu0 %v483
      %534 = vmatprep.subr.bf16.mxu0 0
      %535 = vmatpush1.bf16.msra.mxu0 %v484
      %536 = vmatprep.subr.bf16.mxu0 0
      %537 = vmatpush1.bf16.msra.mxu0 %v485
      %538 = vmatprep.mubr.bf16.mxu0 %v499
      %539 = vmatmul.mubr.bf16.gmra.mrb[0].mxu0 %v498
      %v540 = vpop.f32.mrb[0].mxu0
      %v541 = vadd.f32 0.0, %v540
      %v542 = vpop.f32.mrb[0].mxu0
      %v543 = vpop.f32.mrb[0].mxu0
      %v544 = vadd.f32 0.0, %v543
      %v545 = vpop.f32.mrb[0].mxu0
      %546 = vmatprep.mubr.bf16.mxu0 %v501
      %547 = vmatmul.mubr.bf16.gmra.mrb[0].mxu0 %v500
      %v548 = vpop.f32.mrb[0].mxu0
      %v549 = vadd.f32 0.0, %v548
      %v550 = vpop.f32.mrb[0].mxu0
      %v551 = vpop.f32.mrb[0].mxu0
      %v552 = vadd.f32 0.0, %v551
      %v553 = vpop.f32.mrb[0].mxu0
      %554 = vdwg.mxu0
      %v555 = vld [vmem:[%s2] sm:$0x1]
      %v557 = vlaneseq
      %v558 = vshrl.u32 %v557, 7
      %v559 = vsub.s32 0, %v558
      %v560 = vrot.slane %v555, %v559
      %v562 = vmul.f32 %v541, %v560
      %v563 = vmul.f32 %v544, %v560
      %v564 = vmul.f32 %v549, %v560
      %v565 = vmul.f32 %v552, %v560
      %566 = vadd.xlane.f32.xlu0 %v562
      %v567 = vpop.xlane.xlu0 %566
      %568 = vadd.xlane.f32.xlu0 %v563
      %v569 = vpop.xlane.xlu0 %568
      %570 = vadd.xlane.f32.xlu0 %v564
      %v571 = vpop.xlane.xlu0 %570
      %572 = vadd.xlane.f32.xlu0 %v565
      %v573 = vpop.xlane.xlu0 %572
      %v574 = vmul.f32 %v567, 0.0625
      %v575 = vmul.f32 %v569, 0.0625
      %v576 = vmul.f32 %v571, 0.0625
      %v577 = vmul.f32 %v573, 0.0625
      %v578 = vsub.f32 %v541, %v574
      %v579 = vsub.f32 %v544, %v575
      %v580 = vsub.f32 %v549, %v576
      %v581 = vsub.f32 %v552, %v577
      %v582 = vmul.f32 %v578, %v578
      %v583 = vmul.f32 %v579, %v579
      %v584 = vmul.f32 %v580, %v580
      %v585 = vmul.f32 %v581, %v581
      %v586 = vmul.f32 %v582, %v560
      %v587 = vmul.f32 %v583, %v560
      %v588 = vmul.f32 %v584, %v560
      %v589 = vmul.f32 %v585, %v560
      %590 = vadd.xlane.f32.xlu0 %v586
      %v591 = vpop.xlane.xlu0 %590
      %592 = vadd.xlane.f32.xlu0 %v587
      %v593 = vpop.xlane.xlu0 %592
      %594 = vadd.xlane.f32.xlu0 %v588
      %v595 = vpop.xlane.xlu0 %594
      %596 = vadd.xlane.f32.xlu0 %v589
      %v597 = vpop.xlane.xlu0 %596
      %v598 = vmul.f32 %v591, 0.0625
      %v599 = vmul.f32 %v593, 0.0625
      %v600 = vmul.f32 %v595, 0.0625
      %v601 = vmul.f32 %v597, 0.0625
      %v602 = vadd.f32 %v598, 1e-05
      %v603 = vadd.f32 %v599, 1e-05
      %v604 = vadd.f32 %v600, 1e-05
      %v605 = vadd.f32 %v601, 1e-05
      %v606 = vrsqrt.pop %v602
      %v607 = vrsqrt.pop %v603
      %v608 = vrsqrt.pop %v604
      %v609 = vrsqrt.pop %v605
      %v610 = vmul.f32 %v578, %v606
      %v611 = vmul.f32 %v579, %v607
      %v612 = vmul.f32 %v580, %v608
      %v613 = vmul.f32 %v581, %v609
      %vm614 = vcmp.gt.f32.partialorder %v610, 0.0
      %vm615 = vcmp.gt.f32.partialorder %v611, 0.0
      %vm616 = vcmp.gt.f32.partialorder %v612, 0.0
      %vm617 = vcmp.gt.f32.partialorder %v613, 0.0
      %v618 = vmul.f32 %v610, 0.2
      %v619 = vmul.f32 %v611, 0.2
      %v620 = vmul.f32 %v612, 0.2
      %v621 = vmul.f32 %v613, 0.2
      %v622 = vsel %vm614, %v610, %v618
      %v623 = vsel %vm615, %v611, %v619
      %v624 = vsel %vm616, %v612, %v620
      %v625 = vsel %vm617, %v613, %v621
      %v626 = vpack.c.bf16 %v623, %v622
      %v627 = vpack.c.bf16 %v625, %v624
      %v630 = vunpack.c.l.b16 %v626
      %v631 = vunpack.c.h.b16 %v626
      %v632 = vunpack.c.l.b16 %v627
      %v633 = vunpack.c.h.b16 %v627
      %v634 = vpack.c.b16 %v630, %v630
      %v635 = vpack.c.b16 %v631, %v631
      %v636 = vpack.c.b16 %v632, %v632
      %v637 = vpack.c.b16 %v633, %v633
      %642 = vst [vmem:[%s217] sm:$0xf] %v634
      %643 = vst [vmem:[%s217 + $0x4] sm:$0xf] %v635
      %644 = vst [vmem:[%s217 + $0x8] sm:$0xf] %v636
      %645 = vst [vmem:[%s217 + $0xc] sm:$0xf] %v637
      %s646 = smul.u32 4, %s19
      %p647 = scmp.lt.s32.totalorder %s18, 1
      %s648 = scalar_select %p647, %s18, 1
      %p649 = scmp.lt.s32.totalorder %s646, 3
      %s650 = scalar_select %p649, %s646, 3
      %s651 = smul.addr %s648, 4
      %s652 = sadd.s32 %s650, %s651
      %s653 = smul.addr %s652, 4
      %s654 = scalar_lea.vmem %s3, %s653
      // Predicated region
      $region33: #{_lambda_.6} parent=31 // pred_check
        %p655 = pneg %p119
      $region34: #{_lambda_.6} parent=31 // pred_check_branch
        %657 = sbr.rel (%p655) target = $region36
      $region35: #{_lambda_.6} parent=31 // pred_region
        %s658 = smul.u32 4, %s19
      $region36: #{_lambda_.6} parent=31 // pred_fallthru
        _
    $region32: #{_lambda_.6} parent=5 // pred_fallthru
      _
    %p659 = scmp.le.s32.totalorder 2, %s9
    // Predicated region
    $region37: #{_lambda_.6} parent=5 // pred_check
      %p660 = pneg %p659
    $region38: #{_lambda_.6} parent=5 // pred_check_branch
      %662 = sbr.rel (%p660) target = $region40
    $region39: #{_lambda_.6} parent=5 // pred_region
      %s663 = ssub.s32 %s9, 2
      // Predicated region
      $region41: #{_lambda_.6} parent=39 // pred_check
        %p664 = pneg %p125
      $region42: #{_lambda_.6} parent=39 // pred_check_branch
        %666 = sbr.rel (%p664) target = $region44
      $region43: #{_lambda_.6} parent=39 // pred_region
        %s667 = smul.u32 4, %s21
        %p668 = scmp.lt.s32.totalorder %s20, 1
        %s669 = scalar_select %p668, %s20, 1
        %p670 = scmp.lt.s32.totalorder %s667, 3
        %s671 = scalar_select %p670, %s667, 3
        %s672 = smul.addr %s669, 4
        %s673 = sadd.s32 %s671, %s672
        %s674 = smul.addr %s673, 4
        %s675 = scalar_lea.vmem %s3, %s674
      $region44: #{_lambda_.6} parent=39 // pred_fallthru
        _
    $region40: #{_lambda_.6} parent=5 // pred_fallthru
      _
  $region6: #{_lambda_.6} parent=0 // loop_footer
    %s13 = sadd.s32 1, %s9
  $region7: #{_lambda_.6} parent=0 // loop_footer_branch
    %8 = sbr.rel target = $region3
  $region8: #{_lambda_.6} parent=0 // loop_exit
    _

// kernel: _lambda_.7
$region0: #{_lambda_.7}
  #allocation0 [shape = 'u32[]', space=smem, size = 0x4, offset = 0x4, fixed_abs, tag = 'smem constant byte address 0x4 - core index']
  #allocation1 [shape = 'u32[144,128]{1,0:T(1,128)}', space=vmem, size = 0x12000, scoped, tag = 'internal scratch']
  #allocation2 [shape = 'bf16[512,128]{1,0:T(16,128)(2,1)}', space=vmem, size = 0x20000, scoped, tag = 'scratch operand']
  %s0 = inlined_call_operand.vmem [shape: bf16[2,1,32,256], index: 0, kind: input, shape index: {}]
  %s1 = inlined_call_operand.vmem [shape: bf16[64,512], index: 1, kind: input, shape index: {}]
  %s2 = inlined_call_operand.vmem [shape: f32[1,128], index: 2, kind: input, shape index: {}]
  %s3 = inlined_call_operand.vmem [shape: bf16[2,64,128], index: 3, kind: output, shape index: {}]
  %s4 = sld [smem:[#allocation0]]
  $region45: #{_lambda_.7} parent=0
    _
  %s6 = ssub.s32 1, %s4
  %s7 = scalar_select 0, %s6, %s4
  loop: start=0, step=1, limit=4
  $region2: #{_lambda_.7} parent=0 // loop_pre_header
    _
  $region3: #{_lambda_.7} parent=0 // loop_header
    %s9 = sphi 0, %s13
    %p10 = scmp.ge.s32.totalorder %s9, 4
    %s16 = sphi 0, %s28
    %s17 = sphi 0, %s24
    %s18 = sphi 0, %s16
    %s19 = sphi 0, %s17
    %s20 = sphi 0, %s18
    %s21 = sphi 0, %s19
    %s31 = sphi 0, %s33
    %s34 = sphi 0, %s31
    %s35 = sphi 0, %s34
    %s51 = sphi 0, %s35
    %s57 = sphi 0, %s59
    %s60 = sphi 0, %s57
    %s61 = sphi 0, %s60
    %s77 = sphi 0, %s61
    %s81 = sphi 0, %s81
    %s83 = sphi 0, %s81
    %s84 = sphi 0, %s83
    %s98 = sphi 0, %s84
    %s106 = sphi 0, %s108
    %s109 = sphi 0, %s106
    %s110 = sphi 0, %s109
    %s126 = sphi 0, %s110
  $region4: #{_lambda_.7} parent=0 // loop_header_branch
    %12 = sbr.rel (%p10) target = $region8
  $region5: #{_lambda_.7} parent=0 // loop_body
    %s14 = ssub.s32 %s9, 1
    %s15 = ssub.s32 %s9, 2
    %s22 = sadd.s32 1, %s17
    %p23 = scmp.ge.s32.totalorder %s22, 1
    %s24 = scalar_select %p23, 0, %s22
    %s25 = sadd.s32 1, %s16
    %s26 = scalar_select %p23, %s25, %s16
    %p27 = scmp.ge.s32.totalorder %s26, 2
    %s28 = scalar_select %p27, 0, %s26
    %s29 = ssub.s32 %s16, %s28
    %p30 = scmp.eq.s32.totalorder %s29, 0
    %s32 = sadd.s32 %s31, 1
    %s33 = scalar_select %p30, %s31, %s32
    %p36 = pneg %p30
    %p37 = scmp.eq.s32.totalorder %s9, 1
    %p38 = por %p36, %p37
    %p39 = scmp.ne.s32.totalorder %s31, %s34
    %p40 = scmp.eq.s32.totalorder %s9, 0
    %p41 = por %p39, %p40
    %p42 = scmp.ne.s32.totalorder %s31, %s34
    %p43 = scmp.eq.s32.totalorder %s14, 1
    %p44 = por %p42, %p43
    %p45 = scmp.ne.s32.totalorder %s34, %s35
    %p46 = scmp.eq.s32.totalorder %s14, 0
    %p47 = por %p45, %p46
    %p48 = scmp.ne.s32.totalorder %s34, %s35
    %p49 = scmp.eq.s32.totalorder %s15, 1
    %p50 = por %p48, %p49
    %p52 = scmp.ne.s32.totalorder %s35, %s51
    %p53 = scmp.eq.s32.totalorder %s15, 0
    %p54 = por %p52, %p53
    %s55 = ssub.s32 %s17, %s24
    %p56 = scmp.eq.s32.totalorder %s55, 0
    %s58 = sadd.s32 %s57, 1
    %s59 = scalar_select %p56, %s57, %s58
    %p62 = pneg %p56
    %p63 = scmp.eq.s32.totalorder %s9, 1
    %p64 = por %p62, %p63
    %p65 = scmp.ne.s32.totalorder %s57, %s60
    %p66 = scmp.eq.s32.totalorder %s9, 0
    %p67 = por %p65, %p66
    %p68 = scmp.ne.s32.totalorder %s57, %s60
    %p69 = scmp.eq.s32.totalorder %s14, 1
    %p70 = por %p68, %p69
    %p71 = scmp.ne.s32.totalorder %s60, %s61
    %p72 = scmp.eq.s32.totalorder %s14, 0
    %p73 = por %p71, %p72
    %p74 = scmp.ne.s32.totalorder %s60, %s61
    %p75 = scmp.eq.s32.totalorder %s15, 1
    %p76 = por %p74, %p75
    %p78 = scmp.ne.s32.totalorder %s61, %s77
    %p79 = scmp.eq.s32.totalorder %s15, 0
    %p80 = por %p78, %p79
    %s82 = sadd.s32 %s81, 1
    %p85 = scmp.eq.s32.totalorder %s9, 1
    %p86 = scmp.ne.s32.totalorder %s81, %s83
    %p87 = scmp.eq.s32.totalorder %s9, 0
    %p88 = por %p86, %p87
    %p89 = scmp.ne.s32.totalorder %s81, %s83
    %p90 = scmp.eq.s32.totalorder %s14, 1
    %p91 = por %p89, %p90
    %p92 = scmp.ne.s32.totalorder %s83, %s84
    %p93 = scmp.eq.s32.totalorder %s14, 0
    %p94 = por %p92, %p93
    %p95 = scmp.ne.s32.totalorder %s83, %s84
    %p96 = scmp.eq.s32.totalorder %s15, 1
    %p97 = por %p95, %p96
    %p99 = scmp.ne.s32.totalorder %s84, %s98
    %p100 = scmp.eq.s32.totalorder %s15, 0
    %p101 = por %p99, %p100
    %s102 = ssub.s32 %s16, %s28
    %s103 = ssub.s32 %s17, %s24
    %s104 = sor.u32 %s102, %s103
    %p105 = scmp.eq.s32.totalorder %s104, 0
    %s107 = sadd.s32 %s106, 1
    %s108 = scalar_select %p105, %s106, %s107
    %p111 = pneg %p105
    %p112 = scmp.eq.s32.totalorder %s9, 1
    %p113 = por %p111, %p112
    %p114 = scmp.ne.s32.totalorder %s106, %s109
    %p115 = scmp.eq.s32.totalorder %s9, 0
    %p116 = por %p114, %p115
    %p117 = scmp.ne.s32.totalorder %s106, %s109
    %p118 = scmp.eq.s32.totalorder %s14, 1
    %p119 = por %p117, %p118
    %p120 = scmp.ne.s32.totalorder %s109, %s110
    %p121 = scmp.eq.s32.totalorder %s14, 0
    %p122 = por %p120, %p121
    %p123 = scmp.ne.s32.totalorder %s109, %s110
    %p124 = scmp.eq.s32.totalorder %s15, 1
    %p125 = por %p123, %p124
    %p127 = scmp.ne.s32.totalorder %s110, %s126
    %p128 = scmp.eq.s32.totalorder %s15, 0
    %p129 = por %p127, %p128
    %p130 = scmp.le.s32.totalorder 1, %s9
    %p131 = scmp.lt.s32.totalorder %s9, 3
    %p132 = pnand %p130, %p131
    %p133 = pneg %p132
    // Predicated region
    $region9: #{_lambda_.7} parent=5 // pred_check
      _
    $region10: #{_lambda_.7} parent=5 // pred_check_branch
      %135 = sbr.rel (%p132) target = $region12
    $region11: #{_lambda_.7} parent=5 // pred_region
      %s136 = ssub.s32 %s9, 1
      // Predicated region
      $region13: #{_lambda_.7} parent=11 // pred_check
        %p137 = pneg %p73
      $region14: #{_lambda_.7} parent=11 // pred_check_branch
        %139 = sbr.rel (%p137) target = $region16
      $region15: #{_lambda_.7} parent=11 // pred_region
        %s140 = smul.u32 8, %s19
        %p141 = scmp.lt.s32.totalorder %s140, 7
        %s142 = scalar_select %p141, %s140, 7
        %s143 = smul.addr %s142, 4
        %s144 = smul.addr %s143, 4
        %s145 = scalar_lea.vmem %s1, %s144
        %s146 = smul.u32 8, %s19
      $region16: #{_lambda_.7} parent=11 // pred_fallthru
        _
      // Predicated region
      $region17: #{_lambda_.7} parent=11 // pred_check
        %p147 = pneg %p94
      $region18: #{_lambda_.7} parent=11 // pred_check_branch
        %149 = sbr.rel (%p147) target = $region20
      $region19: #{_lambda_.7} parent=11 // pred_region
        _
      $region20: #{_lambda_.7} parent=11 // pred_fallthru
        _
    $region12: #{_lambda_.7} parent=5 // pred_fallthru
      _
    %p150 = scmp.lt.s32.totalorder %s9, 2
    // Predicated region
    $region21: #{_lambda_.7} parent=5 // pred_check
      %p151 = pneg %p150
    $region22: #{_lambda_.7} parent=5 // pred_check_branch
      %153 = sbr.rel (%p151) target = $region24
    $region23: #{_lambda_.7} parent=5 // pred_region
      // Predicated region
      $region25: #{_lambda_.7} parent=23 // pred_check
        %p154 = pneg %p41
      $region26: #{_lambda_.7} parent=23 // pred_check_branch
        %156 = sbr.rel (%p154) target = $region28
      $region27: #{_lambda_.7} parent=23 // pred_region
        %p157 = scmp.lt.s32.totalorder %s16, 1
        %s158 = scalar_select %p157, %s16, 1
        %s159 = smul.addr %s158, 8
        %s160 = smul.addr %s159, 4
        %s161 = scalar_lea.vmem %s0, %s160
      $region28: #{_lambda_.7} parent=23 // pred_fallthru
        _
    $region24: #{_lambda_.7} parent=5 // pred_fallthru
      _
    %p162 = scmp.le.s32.totalorder 1, %s9
    %p163 = scmp.lt.s32.totalorder %s9, 3
    %p164 = pnand %p162, %p163
    %p165 = pneg %p164
    // Predicated region
    $region29: #{_lambda_.7} parent=5 // pred_check
      _
    $region30: #{_lambda_.7} parent=5 // pred_check_branch
      %167 = sbr.rel (%p164) target = $region32
    $region31: #{_lambda_.7} parent=5 // pred_region
      %s168 = ssub.s32 %s9, 1
      %p169 = scmp.lt.s32.totalorder %s18, 1
      %s170 = scalar_select %p169, %s18, 1
      %s171 = smul.addr %s170, 8
      %s172 = smul.addr %s171, 4
      %s173 = scalar_lea.vmem %s0, %s172
      %p174 = pneg %p47
      %p175 = pneg %p44
      %s176 = smul.u32 8, %s19
      %p177 = scmp.lt.s32.totalorder %s176, 7
      %s178 = scalar_select %p177, %s176, 7
      %s179 = smul.addr %s178, 4
      %s180 = smul.addr %s179, 4
      %s181 = scalar_lea.vmem %s1, %s180
      %p182 = pneg %p73
      %p183 = pneg %p70
      %p184 = pneg %p94
      %p185 = pneg %p91
      %p186 = pneg %p122
      %p187 = pneg %p119
      %s188 = smul.u32 8, %s19
      %p189 = scmp.lt.s32.totalorder %s18, 1
      %s190 = scalar_select %p189, %s18, 1
      %p191 = scmp.lt.s32.totalorder %s188, 7
      %s192 = scalar_select %p191, %s188, 7
      %s193 = smul.addr %s190, 8
      %s194 = sadd.s32 %s192, %s193
      %s195 = smul.addr %s194, 4
      %s196 = scalar_lea.vmem %s3, %s195
      %p197 = scmp.lt.s32.totalorder %s18, 1
      %s198 = scalar_select %p197, %s18, 1
      %s199 = smul.addr %s198, 8
      %s200 = smul.addr %s199, 4
      %s201 = scalar_lea.vmem %s0, %s200
      %s202 = smul.u32 8, %s19
      %p203 = scmp.lt.s32.totalorder %s202, 7
      %s204 = scalar_select %p203, %s202, 7
      %s205 = smul.addr %s204, 4
      %s206 = smul.addr %s205, 4
      %s207 = scalar_lea.vmem %s1, %s206
      %s208 = smul.u32 8, %s19
      %s209 = smul.u32 8, %s19
      %p210 = scmp.lt.s32.totalorder %s18, 1
      %s211 = scalar_select %p210, %s18, 1
      %p212 = scmp.lt.s32.totalorder %s209, 7
      %s213 = scalar_select %p212, %s209, 7
      %s214 = smul.addr %s211, 8
      %s215 = sadd.s32 %s213, %s214
      %s216 = smul.addr %s215, 4
      %s217 = scalar_lea.vmem %s3, %s216
      %s218 = smul.u32 8, %s19
      %v220 = vld [vmem:[%s201] sm:$0xf]
      %v221 = vld [vmem:[%s201 + $0x8] sm:$0xf]
      %v222 = vld [vmem:[%s201 + $0x10] sm:$0xf]
      %v223 = vld [vmem:[%s201 + $0x18] sm:$0xf]
      %v228 = vunpack.c.l.b16 %v220
      %v229 = vunpack.c.l.b16 %v221
      %v230 = vunpack.c.l.b16 %v222
      %v231 = vunpack.c.l.b16 %v223
      %v232 = vpack.c.b16 %v229, %v228
      %v233 = vpack.c.b16 %v231, %v230
      %236 = vst [vmem:[#allocation2] sm:$0xff] %v232
      %237 = vst [vmem:[#allocation2 + $0x8] sm:$0xff] %v233
      %v238 = vld [vmem:[%s201] sm:$0xff]
      %v239 = vld [vmem:[%s201 + $0x8] sm:$0xff]
      %v240 = vld [vmem:[%s201 + $0x10] sm:$0xff]
      %v241 = vld [vmem:[%s201 + $0x18] sm:$0xff]
      %v246 = vunpack.c.l.b16 %v238
      %v247 = vunpack.c.h.b16 %v238
      %v248 = vunpack.c.l.b16 %v239
      %v249 = vunpack.c.h.b16 %v239
      %v250 = vunpack.c.l.b16 %v240
      %v251 = vunpack.c.h.b16 %v240
      %v252 = vunpack.c.l.b16 %v241
      %v253 = vunpack.c.h.b16 %v241
      %v254 = vpack.c.b16 %v248, %v246
      %v255 = vpack.c.b16 %v249, %v247
      %v256 = vpack.c.b16 %v252, %v250
      %v257 = vpack.c.b16 %v253, %v251
      %258 = vrot.lane.b32.xlu0 %v254, 127
      %v259 = vpop.permute.xlu0 %258
      %260 = vrot.lane.b32.xlu0 %v255, 127
      %v261 = vpop.permute.xlu0 %260
      %262 = vrot.lane.b32.xlu0 %v256, 127
      %v263 = vpop.permute.xlu0 %262
      %264 = vrot.lane.b32.xlu0 %v257, 127
      %v265 = vpop.permute.xlu0 %264
      %vm266 = vcmask 1039360
      %v267 = vsel %vm266, %v259, %v261
      %v268 = vsel %vm266, %v263, %v265
      %271 = vst [vmem:[#allocation2 + $0x10] sm:$0xff] %v267
      %272 = vst [vmem:[#allocation2 + $0x18] sm:$0xff] %v268
      %v273 = vld [vmem:[%s201] sm:$0xff]
      %v274 = vld [vmem:[%s201 + $0x8] sm:$0xff]
      %v275 = vld [vmem:[%s201 + $0x10] sm:$0xff]
      %v276 = vld [vmem:[%s201 + $0x18] sm:$0xff]
      %v281 = vunpack.c.l.b16 %v273
      %v282 = vunpack.c.h.b16 %v273
      %v283 = vunpack.c.l.b16 %v274
      %v284 = vunpack.c.h.b16 %v274
      %v285 = vunpack.c.l.b16 %v275
      %v286 = vunpack.c.h.b16 %v275
      %v287 = vunpack.c.l.b16 %v276
      %v288 = vunpack.c.h.b16 %v276
      %v289 = vpack.c.b16 %v283, %v281
      %v290 = vpack.c.b16 %v284, %v282
      %v291 = vpack.c.b16 %v287, %v285
      %v292 = vpack.c.b16 %v288, %v286
      %293 = vrot.lane.b32.xlu0 %v289, 126
      %v294 = vpop.permute.xlu0 %293
      %295 = vrot.lane.b32.xlu0 %v290, 126
      %v296 = vpop.permute.xlu0 %295
      %297 = vrot.lane.b32.xlu0 %v291, 126
      %v298 = vpop.permute.xlu0 %297
      %299 = vrot.lane.b32.xlu0 %v292, 126
      %v300 = vpop.permute.xlu0 %299
      %vm301 = vcmask 1031168
      %v302 = vsel %vm301, %v294, %v296
      %v303 = vsel %vm301, %v298, %v300
      %306 = vst [vmem:[#allocation2 + $0x20] sm:$0xff] %v302
      %307 = vst [vmem:[#allocation2 + $0x28] sm:$0xff] %v303
      %v308 = vld [vmem:[%s201] sm:$0xff]
      %v309 = vld [vmem:[%s201 + $0x8] sm:$0xff]
      %v310 = vld [vmem:[%s201 + $0x10] sm:$0xff]
      %v311 = vld [vmem:[%s201 + $0x18] sm:$0xff]
      %v316 = vunpack.c.l.b16 %v308
      %v317 = vunpack.c.h.b16 %v308
      %v318 = vunpack.c.l.b16 %v309
      %v319 = vunpack.c.h.b16 %v309
      %v320 = vunpack.c.l.b16 %v310
      %v321 = vunpack.c.h.b16 %v310
      %v322 = vunpack.c.l.b16 %v311
      %v323 = vunpack.c.h.b16 %v311
      %v324 = vpack.c.b16 %v318, %v316
      %v325 = vpack.c.b16 %v319, %v317
      %v326 = vpack.c.b16 %v322, %v320
      %v327 = vpack.c.b16 %v323, %v321
      %328 = vrot.lane.b32.xlu0 %v324, 125
      %v329 = vpop.permute.xlu0 %328
      %330 = vrot.lane.b32.xlu0 %v325, 125
      %v331 = vpop.permute.xlu0 %330
      %332 = vrot.lane.b32.xlu0 %v326, 125
      %v333 = vpop.permute.xlu0 %332
      %334 = vrot.lane.b32.xlu0 %v327, 125
      %v335 = vpop.permute.xlu0 %334
      %vm336 = vcmask 1022976
      %v337 = vsel %vm336, %v329, %v331
      %v338 = vsel %vm336, %v333, %v335
      %341 = vst [vmem:[#allocation2 + $0x30] sm:$0xff] %v337
      %342 = vst [vmem:[#allocation2 + $0x38] sm:$0xff] %v338
      %v343 = vld [vmem:[%s201] sm:$0xff]
      %v344 = vld [vmem:[%s201 + $0x8] sm:$0xff]
      %v345 = vld [vmem:[%s201 + $0x10] sm:$0xff]
      %v346 = vld [vmem:[%s201 + $0x18] sm:$0xff]
      %v351 = vunpack.c.l.b16 %v343
      %v352 = vunpack.c.h.b16 %v343
      %v353 = vunpack.c.l.b16 %v344
      %v354 = vunpack.c.h.b16 %v344
      %v355 = vunpack.c.l.b16 %v345
      %v356 = vunpack.c.h.b16 %v345
      %v357 = vunpack.c.l.b16 %v346
      %v358 = vunpack.c.h.b16 %v346
      %v359 = vpack.c.b16 %v353, %v351
      %v360 = vpack.c.b16 %v354, %v352
      %v361 = vpack.c.b16 %v357, %v355
      %v362 = vpack.c.b16 %v358, %v356
      %363 = vrot.lane.b32.xlu0 %v359, 122
      %v364 = vpop.permute.xlu0 %363
      %365 = vrot.lane.b32.xlu0 %v360, 122
      %v366 = vpop.permute.xlu0 %365
      %367 = vrot.lane.b32.xlu0 %v361, 122
      %v368 = vpop.permute.xlu0 %367
      %369 = vrot.lane.b32.xlu0 %v362, 122
      %v370 = vpop.permute.xlu0 %369
      %vm371 = vcmask 998400
      %v372 = vsel %vm371, %v364, %v366
      %v373 = vsel %vm371, %v368, %v370
      %376 = vst [vmem:[#allocation2 + $0x40] sm:$0xff] %v372
      %377 = vst [vmem:[#allocation2 + $0x48] sm:$0xff] %v373
      %v378 = vld [vmem:[%s201] sm:$0xff]
      %v379 = vld [vmem:[%s201 + $0x8] sm:$0xff]
      %v380 = vld [vmem:[%s201 + $0x10] sm:$0xff]
      %v381 = vld [vmem:[%s201 + $0x18] sm:$0xff]
      %v386 = vunpack.c.l.b16 %v378
      %v387 = vunpack.c.h.b16 %v378
      %v388 = vunpack.c.l.b16 %v379
      %v389 = vunpack.c.h.b16 %v379
      %v390 = vunpack.c.l.b16 %v380
      %v391 = vunpack.c.h.b16 %v380
      %v392 = vunpack.c.l.b16 %v381
      %v393 = vunpack.c.h.b16 %v381
      %v394 = vpack.c.b16 %v388, %v386
      %v395 = vpack.c.b16 %v389, %v387
      %v396 = vpack.c.b16 %v392, %v390
      %v397 = vpack.c.b16 %v393, %v391
      %398 = vrot.lane.b32.xlu0 %v394, 121
      %v399 = vpop.permute.xlu0 %398
      %400 = vrot.lane.b32.xlu0 %v395, 121
      %v401 = vpop.permute.xlu0 %400
      %402 = vrot.lane.b32.xlu0 %v396, 121
      %v403 = vpop.permute.xlu0 %402
      %404 = vrot.lane.b32.xlu0 %v397, 121
      %v405 = vpop.permute.xlu0 %404
      %vm406 = vcmask 990208
      %v407 = vsel %vm406, %v399, %v401
      %v408 = vsel %vm406, %v403, %v405
      %411 = vst [vmem:[#allocation2 + $0x50] sm:$0xff] %v407
      %412 = vst [vmem:[#allocation2 + $0x58] sm:$0xff] %v408
      %v413 = vld [vmem:[%s201] sm:$0xff]
      %v414 = vld [vmem:[%s201 + $0x8] sm:$0xff]
      %v415 = vld [vmem:[%s201 + $0x10] sm:$0xff]
      %v416 = vld [vmem:[%s201 + $0x18] sm:$0xff]
      %v421 = vunpack.c.l.b16 %v413
      %v422 = vunpack.c.h.b16 %v413
      %v423 = vunpack.c.l.b16 %v414
      %v424 = vunpack.c.h.b16 %v414
      %v425 = vunpack.c.l.b16 %v415
      %v426 = vunpack.c.h.b16 %v415
      %v427 = vunpack.c.l.b16 %v416
      %v428 = vunpack.c.h.b16 %v416
      %v429 = vpack.c.b16 %v423, %v421
      %v430 = vpack.c.b16 %v424, %v422
      %v431 = vpack.c.b16 %v427, %v425
      %v432 = vpack.c.b16 %v428, %v426
      %433 = vrot.lane.b32.xlu0 %v429, 120
      %v434 = vpop.permute.xlu0 %433
      %435 = vrot.lane.b32.xlu0 %v430, 120
      %v436 = vpop.permute.xlu0 %435
      %437 = vrot.lane.b32.xlu0 %v431, 120
      %v438 = vpop.permute.xlu0 %437
      %439 = vrot.lane.b32.xlu0 %v432, 120
      %v440 = vpop.permute.xlu0 %439
      %vm441 = vcmask 982016
      %v442 = vsel %vm441, %v434, %v436
      %v443 = vsel %vm441, %v438, %v440
      %446 = vst [vmem:[#allocation2 + $0x60] sm:$0xff] %v442
      %447 = vst [vmem:[#allocation2 + $0x68] sm:$0xff] %v443
      %v448 = vld [vmem:[%s201] sm:$0xff]
      %v449 = vld [vmem:[%s201 + $0x8] sm:$0xff]
      %v450 = vld [vmem:[%s201 + $0x10] sm:$0xff]
      %v451 = vld [vmem:[%s201 + $0x18] sm:$0xff]
      %v456 = vunpack.c.l.b16 %v448
      %v457 = vunpack.c.h.b16 %v448
      %v458 = vunpack.c.l.b16 %v449
      %v459 = vunpack.c.h.b16 %v449
      %v460 = vunpack.c.l.b16 %v450
      %v461 = vunpack.c.h.b16 %v450
      %v462 = vunpack.c.l.b16 %v451
      %v463 = vunpack.c.h.b16 %v451
      %v464 = vpack.c.b16 %v458, %v456
      %v465 = vpack.c.b16 %v459, %v457
      %v466 = vpack.c.b16 %v462, %v460
      %v467 = vpack.c.b16 %v463, %v461
      %468 = vrot.lane.b32.xlu0 %v464, 119
      %v469 = vpop.permute.xlu0 %468
      %470 = vrot.lane.b32.xlu0 %v465, 119
      %v471 = vpop.permute.xlu0 %470
      %472 = vrot.lane.b32.xlu0 %v466, 119
      %v473 = vpop.permute.xlu0 %472
      %474 = vrot.lane.b32.xlu0 %v467, 119
      %v475 = vpop.permute.xlu0 %474
      %vm476 = vcmask 973824
      %v477 = vsel %vm476, %v469, %v471
      %v478 = vsel %vm476, %v473, %v475
      %481 = vst [vmem:[#allocation2 + $0x70] sm:$0xff] %v477
      %482 = vst [vmem:[#allocation2 + $0x78] sm:$0xff] %v478
      %v483 = vld [vmem:[%s201] sm:$0xff]
      %v484 = vld [vmem:[%s201 + $0x8] sm:$0xff]
      %v485 = vld [vmem:[%s201 + $0x10] sm:$0xff]
      %v486 = vld [vmem:[%s201 + $0x18] sm:$0xff]
      %v491 = vunpack.c.l.b16 %v483
      %v492 = vunpack.c.h.b16 %v483
      %v493 = vunpack.c.l.b16 %v484
      %v494 = vunpack.c.h.b16 %v484
      %v495 = vunpack.c.l.b16 %v485
      %v496 = vunpack.c.h.b16 %v485
      %v497 = vunpack.c.l.b16 %v486
      %v498 = vunpack.c.h.b16 %v486
      %v499 = vpack.c.b16 %v493, %v491
      %v500 = vpack.c.b16 %v494, %v492
      %v501 = vpack.c.b16 %v497, %v495
      %v502 = vpack.c.b16 %v498, %v496
      %503 = vrot.lane.b32.xlu0 %v499, 116
      %v504 = vpop.permute.xlu0 %503
      %505 = vrot.lane.b32.xlu0 %v500, 116
      %v506 = vpop.permute.xlu0 %505
      %507 = vrot.lane.b32.xlu0 %v501, 116
      %v508 = vpop.permute.xlu0 %507
      %509 = vrot.lane.b32.xlu0 %v502, 116
      %v510 = vpop.permute.xlu0 %509
      %vm511 = vcmask 949248
      %v512 = vsel %vm511, %v504, %v506
      %v513 = vsel %vm511, %v508, %v510
      %516 = vst [vmem:[#allocation2 + $0x80] sm:$0xff] %v512
      %517 = vst [vmem:[#allocation2 + $0x88] sm:$0xff] %v513
      %v518 = vld [vmem:[%s201] sm:$0xff]
      %v519 = vld [vmem:[%s201 + $0x8] sm:$0xff]
      %v520 = vld [vmem:[%s201 + $0x10] sm:$0xff]
      %v521 = vld [vmem:[%s201 + $0x18] sm:$0xff]
      %v526 = vunpack.c.l.b16 %v518
      %v527 = vunpack.c.h.b16 %v518
      %v528 = vunpack.c.l.b16 %v519
      %v529 = vunpack.c.h.b16 %v519
      %v530 = vunpack.c.l.b16 %v520
      %v531 = vunpack.c.h.b16 %v520
      %v532 = vunpack.c.l.b16 %v521
      %v533 = vunpack.c.h.b16 %v521
      %v534 = vpack.c.b16 %v528, %v526
      %v535 = vpack.c.b16 %v529, %v527
      %v536 = vpack.c.b16 %v532, %v530
      %v537 = vpack.c.b16 %v533, %v531
      %538 = vrot.lane.b32.xlu0 %v534, 115
      %v539 = vpop.permute.xlu0 %538
      %540 = vrot.lane.b32.xlu0 %v535, 115
      %v541 = vpop.permute.xlu0 %540
      %542 = vrot.lane.b32.xlu0 %v536, 115
      %v543 = vpop.permute.xlu0 %542
      %544 = vrot.lane.b32.xlu0 %v537, 115
      %v545 = vpop.permute.xlu0 %544
      %vm546 = vcmask 941056
      %v547 = vsel %vm546, %v539, %v541
      %v548 = vsel %vm546, %v543, %v545
      %551 = vst [vmem:[#allocation2 + $0x90] sm:$0xff] %v547
      %552 = vst [vmem:[#allocation2 + $0x98] sm:$0xff] %v548
      %v553 = vld [vmem:[%s201] sm:$0xff]
      %v554 = vld [vmem:[%s201 + $0x8] sm:$0xff]
      %v555 = vld [vmem:[%s201 + $0x10] sm:$0xff]
      %v556 = vld [vmem:[%s201 + $0x18] sm:$0xff]
      %v561 = vunpack.c.l.b16 %v553
      %v562 = vunpack.c.h.b16 %v553
      %v563 = vunpack.c.l.b16 %v554
      %v564 = vunpack.c.h.b16 %v554
      %v565 = vunpack.c.l.b16 %v555
      %v566 = vunpack.c.h.b16 %v555
      %v567 = vunpack.c.l.b16 %v556
      %v568 = vunpack.c.h.b16 %v556
      %v569 = vpack.c.b16 %v563, %v561
      %v570 = vpack.c.b16 %v564, %v562
      %v571 = vpack.c.b16 %v567, %v565
      %v572 = vpack.c.b16 %v568, %v566
      %573 = vrot.lane.b32.xlu0 %v569, 114
      %v574 = vpop.permute.xlu0 %573
      %575 = vrot.lane.b32.xlu0 %v570, 114
      %v576 = vpop.permute.xlu0 %575
      %577 = vrot.lane.b32.xlu0 %v571, 114
      %v578 = vpop.permute.xlu0 %577
      %579 = vrot.lane.b32.xlu0 %v572, 114
      %v580 = vpop.permute.xlu0 %579
      %vm581 = vcmask 932864
      %v582 = vsel %vm581, %v574, %v576
      %v583 = vsel %vm581, %v578, %v580
      %586 = vst [vmem:[#allocation2 + $0xa0] sm:$0xff] %v582
      %587 = vst [vmem:[#allocation2 + $0xa8] sm:$0xff] %v583
      %v588 = vld [vmem:[%s201] sm:$0xff]
      %v589 = vld [vmem:[%s201 + $0x8] sm:$0xff]
      %v590 = vld [vmem:[%s201 + $0x10] sm:$0xff]
      %v591 = vld [vmem:[%s201 + $0x18] sm:$0xff]
      %v596 = vunpack.c.l.b16 %v588
      %v597 = vunpack.c.h.b16 %v588
      %v598 = vunpack.c.l.b16 %v589
      %v599 = vunpack.c.h.b16 %v589
      %v600 = vunpack.c.l.b16 %v590
      %v601 = vunpack.c.h.b16 %v590
      %v602 = vunpack.c.l.b16 %v591
      %v603 = vunpack.c.h.b16 %v591
      %v604 = vpack.c.b16 %v598, %v596
      %v605 = vpack.c.b16 %v599, %v597
      %v606 = vpack.c.b16 %v602, %v600
      %v607 = vpack.c.b16 %v603, %v601
      %608 = vrot.lane.b32.xlu0 %v604, 113
      %v609 = vpop.permute.xlu0 %608
      %610 = vrot.lane.b32.xlu0 %v605, 113
      %v611 = vpop.permute.xlu0 %610
      %612 = vrot.lane.b32.xlu0 %v606, 113
      %v613 = vpop.permute.xlu0 %612
      %614 = vrot.lane.b32.xlu0 %v607, 113
      %v615 = vpop.permute.xlu0 %614
      %vm616 = vcmask 924672
      %v617 = vsel %vm616, %v609, %v611
      %v618 = vsel %vm616, %v613, %v615
      %621 = vst [vmem:[#allocation2 + $0xb0] sm:$0xff] %v617
      %622 = vst [vmem:[#allocation2 + $0xb8] sm:$0xff] %v618
      %v623 = vld [vmem:[%s201] sm:$0xff]
      %v624 = vld [vmem:[%s201 + $0x8] sm:$0xff]
      %v625 = vld [vmem:[%s201 + $0x10] sm:$0xff]
      %v626 = vld [vmem:[%s201 + $0x18] sm:$0xff]
      %v631 = vunpack.c.l.b16 %v623
      %v632 = vunpack.c.h.b16 %v623
      %v633 = vunpack.c.l.b16 %v624
      %v634 = vunpack.c.h.b16 %v624
      %v635 = vunpack.c.l.b16 %v625
      %v636 = vunpack.c.h.b16 %v625
      %v637 = vunpack.c.l.b16 %v626
      %v638 = vunpack.c.h.b16 %v626
      %v639 = vpack.c.b16 %v633, %v631
      %v640 = vpack.c.b16 %v634, %v632
      %v641 = vpack.c.b16 %v637, %v635
      %v642 = vpack.c.b16 %v638, %v636
      %643 = vrot.lane.b32.xlu0 %v639, 110
      %v644 = vpop.permute.xlu0 %643
      %645 = vrot.lane.b32.xlu0 %v640, 110
      %v646 = vpop.permute.xlu0 %645
      %647 = vrot.lane.b32.xlu0 %v641, 110
      %v648 = vpop.permute.xlu0 %647
      %649 = vrot.lane.b32.xlu0 %v642, 110
      %v650 = vpop.permute.xlu0 %649
      %vm651 = vcmask 900096
      %v652 = vsel %vm651, %v644, %v646
      %v653 = vsel %vm651, %v648, %v650
      %656 = vst [vmem:[#allocation2 + $0xc0] sm:$0xff] %v652
      %657 = vst [vmem:[#allocation2 + $0xc8] sm:$0xff] %v653
      %v658 = vld [vmem:[%s201] sm:$0xff]
      %v659 = vld [vmem:[%s201 + $0x8] sm:$0xff]
      %v660 = vld [vmem:[%s201 + $0x10] sm:$0xff]
      %v661 = vld [vmem:[%s201 + $0x18] sm:$0xff]
      %v666 = vunpack.c.l.b16 %v658
      %v667 = vunpack.c.h.b16 %v658
      %v668 = vunpack.c.l.b16 %v659
      %v669 = vunpack.c.h.b16 %v659
      %v670 = vunpack.c.l.b16 %v660
      %v671 = vunpack.c.h.b16 %v660
      %v672 = vunpack.c.l.b16 %v661
      %v673 = vunpack.c.h.b16 %v661
      %v674 = vpack.c.b16 %v668, %v666
      %v675 = vpack.c.b16 %v669, %v667
      %v676 = vpack.c.b16 %v672, %v670
      %v677 = vpack.c.b16 %v673, %v671
      %678 = vrot.lane.b32.xlu0 %v674, 109
      %v679 = vpop.permute.xlu0 %678
      %680 = vrot.lane.b32.xlu0 %v675, 109
      %v681 = vpop.permute.xlu0 %680
      %682 = vrot.lane.b32.xlu0 %v676, 109
      %v683 = vpop.permute.xlu0 %682
      %684 = vrot.lane.b32.xlu0 %v677, 109
      %v685 = vpop.permute.xlu0 %684
      %vm686 = vcmask 891904
      %v687 = vsel %vm686, %v679, %v681
      %v688 = vsel %vm686, %v683, %v685
      %691 = vst [vmem:[#allocation2 + $0xd0] sm:$0xff] %v687
      %692 = vst [vmem:[#allocation2 + $0xd8] sm:$0xff] %v688
      %v693 = vld [vmem:[%s201] sm:$0xff]
      %v694 = vld [vmem:[%s201 + $0x8] sm:$0xff]
      %v695 = vld [vmem:[%s201 + $0x10] sm:$0xff]
      %v696 = vld [vmem:[%s201 + $0x18] sm:$0xff]
      %v701 = vunpack.c.l.b16 %v693
      %v702 = vunpack.c.h.b16 %v693
      %v703 = vunpack.c.l.b16 %v694
      %v704 = vunpack.c.h.b16 %v694
      %v705 = vunpack.c.l.b16 %v695
      %v706 = vunpack.c.h.b16 %v695
      %v707 = vunpack.c.l.b16 %v696
      %v708 = vunpack.c.h.b16 %v696
      %v709 = vpack.c.b16 %v703, %v701
      %v710 = vpack.c.b16 %v704, %v702
      %v711 = vpack.c.b16 %v707, %v705
      %v712 = vpack.c.b16 %v708, %v706
      %713 = vrot.lane.b32.xlu0 %v709, 108
      %v714 = vpop.permute.xlu0 %713
      %715 = vrot.lane.b32.xlu0 %v710, 108
      %v716 = vpop.permute.xlu0 %715
      %717 = vrot.lane.b32.xlu0 %v711, 108
      %v718 = vpop.permute.xlu0 %717
      %719 = vrot.lane.b32.xlu0 %v712, 108
      %v720 = vpop.permute.xlu0 %719
      %vm721 = vcmask 883712
      %v722 = vsel %vm721, %v714, %v716
      %v723 = vsel %vm721, %v718, %v720
      %726 = vst [vmem:[#allocation2 + $0xe0] sm:$0xff] %v722
      %727 = vst [vmem:[#allocation2 + $0xe8] sm:$0xff] %v723
      %v728 = vld [vmem:[%s201] sm:$0xff]
      %v729 = vld [vmem:[%s201 + $0x8] sm:$0xff]
      %v730 = vld [vmem:[%s201 + $0x10] sm:$0xff]
      %v731 = vld [vmem:[%s201 + $0x18] sm:$0xff]
      %v736 = vunpack.c.l.b16 %v728
      %v737 = vunpack.c.h.b16 %v728
      %v738 = vunpack.c.l.b16 %v729
      %v739 = vunpack.c.h.b16 %v729
      %v740 = vunpack.c.l.b16 %v730
      %v741 = vunpack.c.h.b16 %v730
      %v742 = vunpack.c.l.b16 %v731
      %v743 = vunpack.c.h.b16 %v731
      %v744 = vpack.c.b16 %v738, %v736
      %v745 = vpack.c.b16 %v739, %v737
      %v746 = vpack.c.b16 %v742, %v740
      %v747 = vpack.c.b16 %v743, %v741
      %748 = vrot.lane.b32.xlu0 %v744, 107
      %v749 = vpop.permute.xlu0 %748
      %750 = vrot.lane.b32.xlu0 %v745, 107
      %v751 = vpop.permute.xlu0 %750
      %752 = vrot.lane.b32.xlu0 %v746, 107
      %v753 = vpop.permute.xlu0 %752
      %754 = vrot.lane.b32.xlu0 %v747, 107
      %v755 = vpop.permute.xlu0 %754
      %vm756 = vcmask 875520
      %v757 = vsel %vm756, %v749, %v751
      %v758 = vsel %vm756, %v753, %v755
      %761 = vst [vmem:[#allocation2 + $0xf0] sm:$0xff] %v757
      %762 = vst [vmem:[#allocation2 + $0xf8] sm:$0xff] %v758
      %v763 = vld [vmem:[%s207] sm:$0xff]
      %v764 = vld [vmem:[%s207 + $0x8] sm:$0xff]
      %v765 = vld [vmem:[%s207 + $0x10] sm:$0xff]
      %v766 = vld [vmem:[%s207 + $0x18] sm:$0xff]
      %v767 = vld [vmem:[%s207 + $0x20] sm:$0xff]
      %v768 = vld [vmem:[%s207 + $0x28] sm:$0xff]
      %v769 = vld [vmem:[%s207 + $0x30] sm:$0xff]
      %v770 = vld [vmem:[%s207 + $0x38] sm:$0xff]
      %v771 = vld [vmem:[%s207 + $0x40] sm:$0xff]
      %v772 = vld [vmem:[%s207 + $0x48] sm:$0xff]
      %v773 = vld [vmem:[%s207 + $0x50] sm:$0xff]
      %v774 = vld [vmem:[%s207 + $0x58] sm:$0xff]
      %v775 = vld [vmem:[%s207 + $0x60] sm:$0xff]
      %v776 = vld [vmem:[%s207 + $0x68] sm:$0xff]
      %v777 = vld [vmem:[%s207 + $0x70] sm:$0xff]
      %v778 = vld [vmem:[%s207 + $0x78] sm:$0xff]
      %v779 = vld [vmem:[#allocation2] sm:$0xff]
      %v780 = vld [vmem:[#allocation2 + $0x8] sm:$0xff]
      %v781 = vld [vmem:[#allocation2 + $0x10] sm:$0xff]
      %v782 = vld [vmem:[#allocation2 + $0x18] sm:$0xff]
      %v783 = vld [vmem:[#allocation2 + $0x20] sm:$0xff]
      %v784 = vld [vmem:[#allocation2 + $0x28] sm:$0xff]
      %v785 = vld [vmem:[#allocation2 + $0x30] sm:$0xff]
      %v786 = vld [vmem:[#allocation2 + $0x38] sm:$0xff]
      %v787 = vld [vmem:[#allocation2 + $0x40] sm:$0xff]
      %v788 = vld [vmem:[#allocation2 + $0x48] sm:$0xff]
      %v789 = vld [vmem:[#allocation2 + $0x50] sm:$0xff]
      %v790 = vld [vmem:[#allocation2 + $0x58] sm:$0xff]
      %v791 = vld [vmem:[#allocation2 + $0x60] sm:$0xff]
      %v792 = vld [vmem:[#allocation2 + $0x68] sm:$0xff]
      %v793 = vld [vmem:[#allocation2 + $0x70] sm:$0xff]
      %v794 = vld [vmem:[#allocation2 + $0x78] sm:$0xff]
      %v795 = vld [vmem:[#allocation2 + $0x80] sm:$0xff]
      %v796 = vld [vmem:[#allocation2 + $0x88] sm:$0xff]
      %v797 = vld [vmem:[#allocation2 + $0x90] sm:$0xff]
      %v798 = vld [vmem:[#allocation2 + $0x98] sm:$0xff]
      %v799 = vld [vmem:[#allocation2 + $0xa0] sm:$0xff]
      %v800 = vld [vmem:[#allocation2 + $0xa8] sm:$0xff]
      %v801 = vld [vmem:[#allocation2 + $0xb0] sm:$0xff]
      %v802 = vld [vmem:[#allocation2 + $0xb8] sm:$0xff]
      %v803 = vld [vmem:[#allocation2 + $0xc0] sm:$0xff]
      %v804 = vld [vmem:[#allocation2 + $0xc8] sm:$0xff]
      %v805 = vld [vmem:[#allocation2 + $0xd0] sm:$0xff]
      %v806 = vld [vmem:[#allocation2 + $0xd8] sm:$0xff]
      %v807 = vld [vmem:[#allocation2 + $0xe0] sm:$0xff]
      %v808 = vld [vmem:[#allocation2 + $0xe8] sm:$0xff]
      %v809 = vld [vmem:[#allocation2 + $0xf0] sm:$0xff]
      %v810 = vld [vmem:[#allocation2 + $0xf8] sm:$0xff]
      %v827 = vunpack.c.l.b16 %v763
      %v828 = vunpack.c.h.b16 %v763
      %v829 = vunpack.c.l.b16 %v764
      %v830 = vunpack.c.h.b16 %v764
      %v831 = vunpack.c.l.b16 %v765
      %v832 = vunpack.c.h.b16 %v765
      %v833 = vunpack.c.l.b16 %v766
      %v834 = vunpack.c.h.b16 %v766
      %v835 = vunpack.c.l.b16 %v767
      %v836 = vunpack.c.h.b16 %v767
      %v837 = vunpack.c.l.b16 %v768
      %v838 = vunpack.c.h.b16 %v768
      %v839 = vunpack.c.l.b16 %v769
      %v840 = vunpack.c.h.b16 %v769
      %v841 = vunpack.c.l.b16 %v770
      %v842 = vunpack.c.h.b16 %v770
      %v843 = vunpack.c.l.b16 %v771
      %v844 = vunpack.c.h.b16 %v771
      %v845 = vunpack.c.l.b16 %v772
      %v846 = vunpack.c.h.b16 %v772
      %v847 = vunpack.c.l.b16 %v773
      %v848 = vunpack.c.h.b16 %v773
      %v849 = vunpack.c.l.b16 %v774
      %v850 = vunpack.c.h.b16 %v774
      %v851 = vunpack.c.l.b16 %v775
      %v852 = vunpack.c.h.b16 %v775
      %v853 = vunpack.c.l.b16 %v776
      %v854 = vunpack.c.h.b16 %v776
      %v855 = vunpack.c.l.b16 %v777
      %v856 = vunpack.c.h.b16 %v777
      %v857 = vunpack.c.l.b16 %v778
      %v858 = vunpack.c.h.b16 %v778
      %v859 = vpack.c.b16 %v831, %v827
      %v860 = vpack.c.b16 %v832, %v828
      %v861 = vpack.c.b16 %v833, %v829
      %v862 = vpack.c.b16 %v834, %v830
      %v863 = vpack.c.b16 %v839, %v835
      %v864 = vpack.c.b16 %v840, %v836
      %v865 = vpack.c.b16 %v841, %v837
      %v866 = vpack.c.b16 %v842, %v838
      %v867 = vpack.c.b16 %v847, %v843
      %v868 = vpack.c.b16 %v848, %v844
      %v869 = vpack.c.b16 %v849, %v845
      %v870 = vpack.c.b16 %v850, %v846
      %v871 = vpack.c.b16 %v855, %v851
      %v872 = vpack.c.b16 %v856, %v852
      %v873 = vpack.c.b16 %v857, %v853
      %v874 = vpack.c.b16 %v858, %v854
      %891 = vmatprep.subr.bf16.mxu0 0
      %892 = vmatpush1.bf16.msra.mxu0 %v779
      %893 = vmatprep.subr.bf16.mxu0 0
      %894 = vmatpush1.bf16.msra.mxu0 %v780
      %895 = vmatprep.subr.bf16.mxu0 0
      %896 = vmatpush1.bf16.msra.mxu0 %v781
      %897 = vmatprep.subr.bf16.mxu0 0
      %898 = vmatpush1.bf16.msra.mxu0 %v782
      %899 = vmatprep.subr.bf16.mxu0 0
      %900 = vmatpush1.bf16.msra.mxu0 %v783
      %901 = vmatprep.subr.bf16.mxu0 0
      %902 = vmatpush1.bf16.msra.mxu0 %v784
      %903 = vmatprep.subr.bf16.mxu0 0
      %904 = vmatpush1.bf16.msra.mxu0 %v785
      %905 = vmatprep.subr.bf16.mxu0 0
      %906 = vmatpush1.bf16.msra.mxu0 %v786
      %907 = vmatprep.subr.bf16.mxu0 0
      %908 = vmatpush1.bf16.msra.mxu0 %v787
      %909 = vmatprep.subr.bf16.mxu0 0
      %910 = vmatpush1.bf16.msra.mxu0 %v788
      %911 = vmatprep.subr.bf16.mxu0 0
      %912 = vmatpush1.bf16.msra.mxu0 %v789
      %913 = vmatprep.subr.bf16.mxu0 0
      %914 = vmatpush1.bf16.msra.mxu0 %v790
      %915 = vmatprep.subr.bf16.mxu0 0
      %916 = vmatpush1.bf16.msra.mxu0 %v791
      %917 = vmatprep.subr.bf16.mxu0 0
      %918 = vmatpush1.bf16.msra.mxu0 %v792
      %919 = vmatprep.subr.bf16.mxu0 0
      %920 = vmatpush1.bf16.msra.mxu0 %v793
      %921 = vmatprep.subr.bf16.mxu0 0
      %922 = vmatpush1.bf16.msra.mxu0 %v794
      %923 = vmatprep.mubr.bf16.mxu0 %v860
      %924 = vmatmul.mubr.bf16.gmra.mrb[0].mxu0 %v859
      %v925 = vpop.f32.mrb[0].mxu0
      %v926 = vadd.f32 0.0, %v925
      %v927 = vpop.f32.mrb[0].mxu0
      %v928 = vpop.f32.mrb[0].mxu0
      %v929 = vadd.f32 0.0, %v928
      %v930 = vpop.f32.mrb[0].mxu0
      %931 = vmatprep.mubr.bf16.mxu0 %v864
      %932 = vmatmul.mubr.bf16.gmra.mrb[0].mxu0 %v863
      %v933 = vpop.f32.mrb[0].mxu0
      %v934 = vadd.f32 0.0, %v933
      %v935 = vpop.f32.mrb[0].mxu0
      %v936 = vpop.f32.mrb[0].mxu0
      %v937 = vadd.f32 0.0, %v936
      %v938 = vpop.f32.mrb[0].mxu0
      %939 = vmatprep.mubr.bf16.mxu0 %v868
      %940 = vmatmul.mubr.bf16.gmra.mrb[0].mxu0 %v867
      %v941 = vpop.f32.mrb[0].mxu0
      %v942 = vadd.f32 0.0, %v941
      %v943 = vpop.f32.mrb[0].mxu0
      %v944 = vpop.f32.mrb[0].mxu0
      %v945 = vadd.f32 0.0, %v944
      %v946 = vpop.f32.mrb[0].mxu0
      %947 = vmatprep.mubr.bf16.mxu0 %v872
      %948 = vmatmul.mubr.bf16.gmra.mrb[0].mxu0 %v871
      %v949 = vpop.f32.mrb[0].mxu0
      %v950 = vadd.f32 0.0, %v949
      %v951 = vpop.f32.mrb[0].mxu0
      %v952 = vpop.f32.mrb[0].mxu0
      %v953 = vadd.f32 0.0, %v952
      %v954 = vpop.f32.mrb[0].mxu0
      %955 = vdwg.mxu0
      %956 = vmatprep.subr.bf16.mxu0 0
      %957 = vmatpush1.bf16.msra.mxu0 %v795
      %958 = vmatprep.subr.bf16.mxu0 0
      %959 = vmatpush1.bf16.msra.mxu0 %v796
      %960 = vmatprep.subr.bf16.mxu0 0
      %961 = vmatpush1.bf16.msra.mxu0 %v797
      %962 = vmatprep.subr.bf16.mxu0 0
      %963 = vmatpush1.bf16.msra.mxu0 %v798
      %964 = vmatprep.subr.bf16.mxu0 0
      %965 = vmatpush1.bf16.msra.mxu0 %v799
      %966 = vmatprep.subr.bf16.mxu0 0
      %967 = vmatpush1.bf16.msra.mxu0 %v800
      %968 = vmatprep.subr.bf16.mxu0 0
      %969 = vmatpush1.bf16.msra.mxu0 %v801
      %970 = vmatprep.subr.bf16.mxu0 0
      %971 = vmatpush1.bf16.msra.mxu0 %v802
      %972 = vmatprep.subr.bf16.mxu0 0
      %973 = vmatpush1.bf16.msra.mxu0 %v803
      %974 = vmatprep.subr.bf16.mxu0 0
      %975 = vmatpush1.bf16.msra.mxu0 %v804
      %976 = vmatprep.subr.bf16.mxu0 0
      %977 = vmatpush1.bf16.msra.mxu0 %v805
      %978 = vmatprep.subr.bf16.mxu0 0
      %979 = vmatpush1.bf16.msra.mxu0 %v806
      %980 = vmatprep.subr.bf16.mxu0 0
      %981 = vmatpush1.bf16.msra.mxu0 %v807
      %982 = vmatprep.subr.bf16.mxu0 0
      %983 = vmatpush1.bf16.msra.mxu0 %v808
      %984 = vmatprep.subr.bf16.mxu0 0
      %985 = vmatpush1.bf16.msra.mxu0 %v809
      %986 = vmatprep.subr.bf16.mxu0 0
      %987 = vmatpush1.bf16.msra.mxu0 %v810
      %988 = vmatprep.mubr.bf16.mxu0 %v862
      %989 = vmatmul.mubr.bf16.gmra.mrb[0].mxu0 %v861
      %v990 = vpop.f32.mrb[0].mxu0
      %v991 = vadd.f32 %v926, %v990
      %v992 = vpop.f32.mrb[0].mxu0
      %v993 = vpop.f32.mrb[0].mxu0
      %v994 = vadd.f32 %v929, %v993
      %v995 = vpop.f32.mrb[0].mxu0
      %996 = vmatprep.mubr.bf16.mxu0 %v866
      %997 = vmatmul.mubr.bf16.gmra.mrb[0].mxu0 %v865
      %v998 = vpop.f32.mrb[0].mxu0
      %v999 = vadd.f32 %v934, %v998
      %v1000 = vpop.f32.mrb[0].mxu0
      %v1001 = vpop.f32.mrb[0].mxu0
      %v1002 = vadd.f32 %v937, %v1001
      %v1003 = vpop.f32.mrb[0].mxu0
      %1004 = vmatprep.mubr.bf16.mxu0 %v870
      %1005 = vmatmul.mubr.bf16.gmra.mrb[0].mxu0 %v869
      %v1006 = vpop.f32.mrb[0].mxu0
      %v1007 = vadd.f32 %v942, %v1006
      %v1008 = vpop.f32.mrb[0].mxu0
      %v1009 = vpop.f32.mrb[0].mxu0
      %v1010 = vadd.f32 %v945, %v1009
      %v1011 = vpop.f32.mrb[0].mxu0
      %1012 = vmatprep.mubr.bf16.mxu0 %v874
      %1013 = vmatmul.mubr.bf16.gmra.mrb[0].mxu0 %v873
      %v1014 = vpop.f32.mrb[0].mxu0
      %v1015 = vadd.f32 %v950, %v1014
      %v1016 = vpop.f32.mrb[0].mxu0
      %v1017 = vpop.f32.mrb[0].mxu0
      %v1018 = vadd.f32 %v953, %v1017
      %v1019 = vpop.f32.mrb[0].mxu0
      %1020 = vdwg.mxu0
      %v1021 = vld [vmem:[%s2] sm:$0x1]
      %v1023 = vlaneseq
      %v1024 = vshrl.u32 %v1023, 7
      %v1025 = vsub.s32 0, %v1024
      %v1026 = vrot.slane %v1021, %v1025
      %v1028 = vmul.f32 %v991, %v1026
      %v1029 = vmul.f32 %v994, %v1026
      %v1030 = vmul.f32 %v999, %v1026
      %v1031 = vmul.f32 %v1002, %v1026
      %v1032 = vmul.f32 %v1007, %v1026
      %v1033 = vmul.f32 %v1010, %v1026
      %v1034 = vmul.f32 %v1015, %v1026
      %v1035 = vmul.f32 %v1018, %v1026
      %1036 = vadd.xlane.f32.xlu0 %v1028
      %v1037 = vpop.xlane.xlu0 %1036
      %1038 = vadd.xlane.f32.xlu0 %v1029
      %v1039 = vpop.xlane.xlu0 %1038
      %1040 = vadd.xlane.f32.xlu0 %v1030
      %v1041 = vpop.xlane.xlu0 %1040
      %1042 = vadd.xlane.f32.xlu0 %v1031
      %v1043 = vpop.xlane.xlu0 %1042
      %1044 = vadd.xlane.f32.xlu0 %v1032
      %v1045 = vpop.xlane.xlu0 %1044
      %1046 = vadd.xlane.f32.xlu0 %v1033
      %v1047 = vpop.xlane.xlu0 %1046
      %1048 = vadd.xlane.f32.xlu0 %v1034
      %v1049 = vpop.xlane.xlu0 %1048
      %1050 = vadd.xlane.f32.xlu0 %v1035
      %v1051 = vpop.xlane.xlu0 %1050
      %v1052 = vmul.f32 %v1037, 0.11111111
      %v1053 = vmul.f32 %v1039, 0.11111111
      %v1054 = vmul.f32 %v1041, 0.11111111
      %v1055 = vmul.f32 %v1043, 0.11111111
      %v1056 = vmul.f32 %v1045, 0.11111111
      %v1057 = vmul.f32 %v1047, 0.11111111
      %v1058 = vmul.f32 %v1049, 0.11111111
      %v1059 = vmul.f32 %v1051, 0.11111111
      %v1060 = vsub.f32 %v991, %v1052
      %v1061 = vsub.f32 %v994, %v1053
      %v1062 = vsub.f32 %v999, %v1054
      %v1063 = vsub.f32 %v1002, %v1055
      %v1064 = vsub.f32 %v1007, %v1056
      %v1065 = vsub.f32 %v1010, %v1057
      %v1066 = vsub.f32 %v1015, %v1058
      %v1067 = vsub.f32 %v1018, %v1059
      %v1068 = vmul.f32 %v1060, %v1060
      %v1069 = vmul.f32 %v1061, %v1061
      %v1070 = vmul.f32 %v1062, %v1062
      %v1071 = vmul.f32 %v1063, %v1063
      %v1072 = vmul.f32 %v1064, %v1064
      %v1073 = vmul.f32 %v1065, %v1065
      %v1074 = vmul.f32 %v1066, %v1066
      %v1075 = vmul.f32 %v1067, %v1067
      %v1076 = vmul.f32 %v1068, %v1026
      %v1077 = vmul.f32 %v1069, %v1026
      %v1078 = vmul.f32 %v1070, %v1026
      %v1079 = vmul.f32 %v1071, %v1026
      %v1080 = vmul.f32 %v1072, %v1026
      %v1081 = vmul.f32 %v1073, %v1026
      %v1082 = vmul.f32 %v1074, %v1026
      %v1083 = vmul.f32 %v1075, %v1026
      %1084 = vadd.xlane.f32.xlu0 %v1076
      %v1085 = vpop.xlane.xlu0 %1084
      %1086 = vadd.xlane.f32.xlu0 %v1077
      %v1087 = vpop.xlane.xlu0 %1086
      %1088 = vadd.xlane.f32.xlu0 %v1078
      %v1089 = vpop.xlane.xlu0 %1088
      %1090 = vadd.xlane.f32.xlu0 %v1079
      %v1091 = vpop.xlane.xlu0 %1090
      %1092 = vadd.xlane.f32.xlu0 %v1080
      %v1093 = vpop.xlane.xlu0 %1092
      %1094 = vadd.xlane.f32.xlu0 %v1081
      %v1095 = vpop.xlane.xlu0 %1094
      %1096 = vadd.xlane.f32.xlu0 %v1082
      %v1097 = vpop.xlane.xlu0 %1096
      %1098 = vadd.xlane.f32.xlu0 %v1083
      %v1099 = vpop.xlane.xlu0 %1098
      %v1100 = vmul.f32 %v1085, 0.11111111
      %v1101 = vmul.f32 %v1087, 0.11111111
      %v1102 = vmul.f32 %v1089, 0.11111111
      %v1103 = vmul.f32 %v1091, 0.11111111
      %v1104 = vmul.f32 %v1093, 0.11111111
      %v1105 = vmul.f32 %v1095, 0.11111111
      %v1106 = vmul.f32 %v1097, 0.11111111
      %v1107 = vmul.f32 %v1099, 0.11111111
      %v1108 = vadd.f32 %v1100, 1e-05
      %v1109 = vadd.f32 %v1101, 1e-05
      %v1110 = vadd.f32 %v1102, 1e-05
      %v1111 = vadd.f32 %v1103, 1e-05
      %v1112 = vadd.f32 %v1104, 1e-05
      %v1113 = vadd.f32 %v1105, 1e-05
      %v1114 = vadd.f32 %v1106, 1e-05
      %v1115 = vadd.f32 %v1107, 1e-05
      %v1116 = vrsqrt.pop %v1108
      %v1117 = vrsqrt.pop %v1109
      %v1118 = vrsqrt.pop %v1110
      %v1119 = vrsqrt.pop %v1111
      %v1120 = vrsqrt.pop %v1112
      %v1121 = vrsqrt.pop %v1113
      %v1122 = vrsqrt.pop %v1114
      %v1123 = vrsqrt.pop %v1115
      %v1124 = vmul.f32 %v1060, %v1116
      %v1125 = vmul.f32 %v1061, %v1117
      %v1126 = vmul.f32 %v1062, %v1118
      %v1127 = vmul.f32 %v1063, %v1119
      %v1128 = vmul.f32 %v1064, %v1120
      %v1129 = vmul.f32 %v1065, %v1121
      %v1130 = vmul.f32 %v1066, %v1122
      %v1131 = vmul.f32 %v1067, %v1123
      %vm1132 = vcmp.gt.f32.partialorder %v1124, 0.0
      %vm1133 = vcmp.gt.f32.partialorder %v1125, 0.0
      %vm1134 = vcmp.gt.f32.partialorder %v1126, 0.0
      %vm1135 = vcmp.gt.f32.partialorder %v1127, 0.0
      %vm1136 = vcmp.gt.f32.partialorder %v1128, 0.0
      %vm1137 = vcmp.gt.f32.partialorder %v1129, 0.0
      %vm1138 = vcmp.gt.f32.partialorder %v1130, 0.0
      %vm1139 = vcmp.gt.f32.partialorder %v1131, 0.0
      %v1140 = vmul.f32 %v1124, 0.2
      %v1141 = vmul.f32 %v1125, 0.2
      %v1142 = vmul.f32 %v1126, 0.2
      %v1143 = vmul.f32 %v1127, 0.2
      %v1144 = vmul.f32 %v1128, 0.2
      %v1145 = vmul.f32 %v1129, 0.2
      %v1146 = vmul.f32 %v1130, 0.2
      %v1147 = vmul.f32 %v1131, 0.2
      %v1148 = vsel %vm1132, %v1124, %v1140
      %v1149 = vsel %vm1133, %v1125, %v1141
      %v1150 = vsel %vm1134, %v1126, %v1142
      %v1151 = vsel %vm1135, %v1127, %v1143
      %v1152 = vsel %vm1136, %v1128, %v1144
      %v1153 = vsel %vm1137, %v1129, %v1145
      %v1154 = vsel %vm1138, %v1130, %v1146
      %v1155 = vsel %vm1139, %v1131, %v1147
      %v1156 = vpack.c.bf16 %v1149, %v1148
      %v1157 = vpack.c.bf16 %v1151, %v1150
      %v1158 = vpack.c.bf16 %v1153, %v1152
      %v1159 = vpack.c.bf16 %v1155, %v1154
      %v1164 = vunpack.c.l.b16 %v1156
      %v1165 = vunpack.c.h.b16 %v1156
      %v1166 = vunpack.c.l.b16 %v1157
      %v1167 = vunpack.c.h.b16 %v1157
      %v1168 = vunpack.c.l.b16 %v1158
      %v1169 = vunpack.c.h.b16 %v1158
      %v1170 = vunpack.c.l.b16 %v1159
      %v1171 = vunpack.c.h.b16 %v1159
      %v1172 = vpack.c.b16 %v1164, %v1164
      %v1173 = vpack.c.b16 %v1165, %v1165
      %v1174 = vpack.c.b16 %v1166, %v1166
      %v1175 = vpack.c.b16 %v1167, %v1167
      %v1176 = vpack.c.b16 %v1168, %v1168
      %v1177 = vpack.c.b16 %v1169, %v1169
      %v1178 = vpack.c.b16 %v1170, %v1170
      %v1179 = vpack.c.b16 %v1171, %v1171
      %1188 = vst [vmem:[%s217] sm:$0xf] %v1172
      %1189 = vst [vmem:[%s217 + $0x4] sm:$0xf] %v1173
      %1190 = vst [vmem:[%s217 + $0x8] sm:$0xf] %v1174
      %1191 = vst [vmem:[%s217 + $0xc] sm:$0xf] %v1175
      %1192 = vst [vmem:[%s217 + $0x10] sm:$0xf] %v1176
      %1193 = vst [vmem:[%s217 + $0x14] sm:$0xf] %v1177
      %1194 = vst [vmem:[%s217 + $0x18] sm:$0xf] %v1178
      %1195 = vst [vmem:[%s217 + $0x1c] sm:$0xf] %v1179
      %s1196 = smul.u32 8, %s19
      %p1197 = scmp.lt.s32.totalorder %s18, 1
      %s1198 = scalar_select %p1197, %s18, 1
      %p1199 = scmp.lt.s32.totalorder %s1196, 7
      %s1200 = scalar_select %p1199, %s1196, 7
      %s1201 = smul.addr %s1198, 8
      %s1202 = sadd.s32 %s1200, %s1201
      %s1203 = smul.addr %s1202, 4
      %s1204 = scalar_lea.vmem %s3, %s1203
      // Predicated region
      $region33: #{_lambda_.7} parent=31 // pred_check
        %p1205 = pneg %p119
      $region34: #{_lambda_.7} parent=31 // pred_check_branch
        %1207 = sbr.rel (%p1205) target = $region36
      $region35: #{_lambda_.7} parent=31 // pred_region
        %s1208 = smul.u32 8, %s19
      $region36: #{_lambda_.7} parent=31 // pred_fallthru
        _
    $region32: #{_lambda_.7} parent=5 // pred_fallthru
      _
    %p1209 = scmp.le.s32.totalorder 2, %s9
    // Predicated region
    $region37: #{_lambda_.7} parent=5 // pred_check
      %p1210 = pneg %p1209
    $region38: #{_lambda_.7} parent=5 // pred_check_branch
      %1212 = sbr.rel (%p1210) target = $region40
    $region39: #{_lambda_.7} parent=5 // pred_region
      %s1213 = ssub.s32 %s9, 2
      // Predicated region
      $region41: #{_lambda_.7} parent=39 // pred_check
        %p1214 = pneg %p125
      $region42: #{_lambda_.7} parent=39 // pred_check_branch
        %1216 = sbr.rel (%p1214) target = $region44
      $region43: #{_lambda_.7} parent=39 // pred_region
        %s1217 = smul.u32 8, %s21
        %p1218 = scmp.lt.s32.totalorder %s20, 1
        %s1219 = scalar_select %p1218, %s20, 1
        %p1220 = scmp.lt.s32.totalorder %s1217, 7
        %s1221 = scalar_select %p1220, %s1217, 7
        %s1222 = smul.addr %s1219, 8
        %s1223 = sadd.s32 %s1221, %s1222
        %s1224 = smul.addr %s1223, 4
        %s1225 = scalar_lea.vmem %s3, %s1224
      $region44: #{_lambda_.7} parent=39 // pred_fallthru
        _
    $region40: #{_lambda_.7} parent=5 // pred_fallthru
      _
  $region6: #{_lambda_.7} parent=0 // loop_footer
    %s13 = sadd.s32 1, %s9
  $region7: #{_lambda_.7} parent=0 // loop_footer_branch
    %8 = sbr.rel target = $region3
  $region8: #{_lambda_.7} parent=0 // loop_exit
    _

</llo_original>
